<compile_context>
chip_gen: v5e
topology: v5e:2x2
jax: 0.10.0
libtpu: 0.0.40
codegen_flags: <defaults>
</compile_context>

<pallas_src>
import functools

import jax
import jax.numpy as jnp
from jax.experimental import pallas as pl
from jax.experimental.pallas import tpu as pltpu


# ----------------------------------------------------------------------------
# Backbone stand-in kernel:  feat = relu(flatten(x) @ W_feat + b_feat)
# (mirrors `x = self._base_model(input).relu()` with the final fc replaced by Identity)
# ----------------------------------------------------------------------------
def _backbone_kernel(x_ref, w_ref, b_ref, o_ref):
    feat = jnp.dot(x_ref[...], w_ref[...], preferred_element_type=jnp.float32)
    feat = feat + b_ref[...]
    o_ref[...] = jnp.maximum(feat, 0.0)


# ----------------------------------------------------------------------------
# MC-dropout head kernel.
# grid = (nb,):  nb = number of hidden-feature tiles of fc_mu1 / fc_logvar1.
# LHS already contains all T dropout copies as rows:  (T*B padded, F).
# Per tile n:  h = leaky_relu(x_drop @ W1[:, n] + b1[n]);  out += h @ W2[n, :]
# for both the mu and logvar branches; bias of fc2 is added on the last tile.
# ----------------------------------------------------------------------------
def _head_kernel(nb,
                 xm_ref, xl_ref,
                 wmu1_ref, bmu1_ref, wmu2_ref, bmu2_ref,
                 wlv1_ref, blv1_ref, wlv2_ref, blv2_ref,
                 mu_out_ref, lv_out_ref):
    n = pl.program_id(0)

    @pl.when(n == 0)
    def _init():
        mu_out_ref[...] = jnp.zeros_like(mu_out_ref)
        lv_out_ref[...] = jnp.zeros_like(lv_out_ref)

    # ----- mu branch: leaky_relu(fc_mu1(x_drop)) tile, partial fc_mu2 -----
    h_mu = jnp.dot(xm_ref[...], wmu1_ref[...], preferred_element_type=jnp.float32)
    h_mu = h_mu + bmu1_ref[...]
    h_mu = jnp.where(h_mu >= 0, h_mu, 0.01 * h_mu)          # leaky_relu, slope 0.01
    mu_out_ref[...] += jnp.dot(h_mu.astype(jnp.bfloat16), wmu2_ref[...],
                               preferred_element_type=jnp.float32)

    # ----- logvar branch -----
    h_lv = jnp.dot(xl_ref[...], wlv1_ref[...], preferred_element_type=jnp.float32)
    h_lv = h_lv + blv1_ref[...]
    h_lv = jnp.where(h_lv >= 0, h_lv, 0.01 * h_lv)
    lv_out_ref[...] += jnp.dot(h_lv.astype(jnp.bfloat16), wlv2_ref[...],
                               preferred_element_type=jnp.float32)

    @pl.when(n == nb - 1)
    def _finalize():
        mu_out_ref[...] += bmu2_ref[...]
        lv_out_ref[...] += blv2_ref[...]


# ----------------------------------------------------------------------------
# Python wrapper mirroring BreastPathQModel
# ----------------------------------------------------------------------------
_FC_IN = {'resnet50': 2048, 'resnet101': 2048, 'densenet121': 1024,
          'densenet201': 1920, 'efficientnetb0': 1280, 'efficientnetb4': 1792}


def _linear_init(key, fan_in, fan_out):
    # torch.nn.Linear default init: U(-1/sqrt(fan_in), 1/sqrt(fan_in))
    kw, kb = jax.random.split(key)
    bound = 1.0 / (fan_in ** 0.5)
    w = jax.random.uniform(kw, (fan_in, fan_out), jnp.float32, -bound, bound)
    b = jax.random.uniform(kb, (1, fan_out), jnp.float32, -bound, bound)
    return w, b


def _pad_rows(a, multiple):
    r = a.shape[0]
    rp = ((r + multiple - 1) // multiple) * multiple
    if rp == r:
        return a
    return jnp.pad(a, ((0, rp - r), (0, 0)))


def _pad_cols(a, width):
    c = a.shape[1]
    if c == width:
        return a
    return jnp.pad(a, ((0, 0), (0, width - c)))


class BreastPathQModelPallas:
    def __init__(self, key, base_model='resnet50', in_channels=3, out_channels=1,
                 dropout_rate=0.2, image_hw=(16, 16)):
        assert base_model in _FC_IN
        self.F = _FC_IN[base_model]
        self.O = out_channels
        self.in_channels = in_channels
        # dropout_rate corresponds to the backbone's internal drop_rate (not modeled by the
        # stand-in); the head dropout uses _dropout_p = 0.5, exactly as in the reference.
        self._dropout_rate = dropout_rate
        self._dropout_T = 25
        self._dropout_p = 0.5
        flat_in = in_channels * image_hw[0] * image_hw[1]

        # lane-padded output widths so fc2 results / stores are lane-dense
        self.O_PAD = max(128, ((self.O + 127) // 128) * 128)
        self.LV_PAD = 128

        k0, k1, k2, k3, k4 = jax.random.split(key, 5)
        w_feat, b_feat = _linear_init(k0, flat_in, self.F)
        w_mu1, b_mu1 = _linear_init(k1, self.F, self.F)
        w_mu2, b_mu2 = _linear_init(k2, self.F, self.O)
        w_lv1, b_lv1 = _linear_init(k3, self.F, self.F)
        w_lv2, b_lv2 = _linear_init(k4, self.F, 1)

        # weights in bf16 (halves HBM traffic, native MXU dtype); biases stay f32
        self.w_feat = w_feat.astype(jnp.bfloat16)
        self.b_feat = b_feat
        self.w_mu1 = w_mu1.astype(jnp.bfloat16)
        self.b_mu1 = b_mu1
        self.w_mu2 = _pad_cols(w_mu2, self.O_PAD).astype(jnp.bfloat16)
        self.b_mu2 = _pad_cols(b_mu2, self.O_PAD)
        self.w_lv1 = w_lv1.astype(jnp.bfloat16)
        self.b_lv1 = b_lv1
        self.w_lv2 = _pad_cols(w_lv2, self.LV_PAD).astype(jnp.bfloat16)
        self.b_lv2 = _pad_cols(b_lv2, self.LV_PAD)

    # ---- backbone stand-in:  x = base_model(input).relu() ----
    def _backbone(self, x):
        B = x.shape[0]
        x_flat = x.reshape(B, -1).astype(jnp.bfloat16)
        return pl.pallas_call(
            _backbone_kernel,
            out_shape=jax.ShapeDtypeStruct((B, self.F), jnp.float32),
        )(x_flat, self.w_feat, self.b_feat)

    # ---- MC-dropout head: all T passes folded into matmul rows ----
    def _head(self, feat, T, dropout, key):
        B = feat.shape[0]
        F, O = self.F, self.O
        TB = T * B
        TB_pad = ((TB + 7) // 8) * 8

        # dropout (p = 0.5), one mask per MC pass per branch, generated with jax.random
        # (pltpu.prng_* is not available in interpret mode).
        x = feat[None, :, :]                                   # (1, B, F)
        if dropout:
            keep = jax.random.bernoulli(key, 1.0 - self._dropout_p, (2, T, B, F))
            scale = 1.0 / (1.0 - self._dropout_p)
            xm = jnp.where(keep[0], x * scale, 0.0)
            xl = jnp.where(keep[1], x * scale, 0.0)
        else:
            xm = jnp.broadcast_to(x, (T, B, F))
            xl = xm
        xm = _pad_rows(xm.reshape(TB, F), 8).astype(jnp.bfloat16)   # (TB_pad, F)
        xl = _pad_rows(xl.reshape(TB, F), 8).astype(jnp.bfloat16)

        # feature-tile size: largest of 512/256/128 dividing F (all supported F are *128)
        tn = next((t for t in (512, 256, 128) if F % t == 0), F)
        nb = F // tn
        kernel = functools.partial(_head_kernel, nb)

        grid_spec = pltpu.PrefetchScalarGridSpec(
            num_scalar_prefetch=0,
            grid=(nb,),
            in_specs=[
                pl.BlockSpec((TB_pad, F), lambda n: (0, 0)),            # x_drop (mu)
                pl.BlockSpec((TB_pad, F), lambda n: (0, 0)),            # x_drop (logvar)
                pl.BlockSpec((F, tn), lambda n: (0, n)),                # W_mu1 tile
                pl.BlockSpec((1, tn), lambda n: (0, n)),                # b_mu1 tile
                pl.BlockSpec((tn, self.O_PAD), lambda n: (n, 0)),       # W_mu2 tile
                pl.BlockSpec((1, self.O_PAD), lambda n: (0, 0)),        # b_mu2
                pl.BlockSpec((F, tn), lambda n: (0, n)),                # W_logvar1 tile
                pl.BlockSpec((1, tn), lambda n: (0, n)),                # b_logvar1 tile
                pl.BlockSpec((tn, self.LV_PAD), lambda n: (n, 0)),      # W_logvar2 tile
                pl.BlockSpec((1, self.LV_PAD), lambda n: (0, 0)),       # b_logvar2
            ],
            out_specs=[
                pl.BlockSpec((TB_pad, self.O_PAD), lambda n: (0, 0)),   # mu accumulator
                pl.BlockSpec((TB_pad, self.LV_PAD), lambda n: (0, 0)),  # logvar accumulator
            ],
        )

        mu_flat, lv_flat = pl.pallas_call(
            kernel,
            out_shape=(jax.ShapeDtypeStruct((TB_pad, self.O_PAD), jnp.float32),
                       jax.ShapeDtypeStruct((TB_pad, self.LV_PAD), jnp.float32)),
            grid_spec=grid_spec,
            compiler_params=pltpu.CompilerParams(
                dimension_semantics=("arbitrary",),
                vmem_limit_bytes=32 * 1024 * 1024),
        )(xm, xl,
          self.w_mu1, self.b_mu1, self.w_mu2, self.b_mu2,
          self.w_lv1, self.b_lv1, self.w_lv2, self.b_lv2)

        mu_accu = mu_flat[:TB, :O].reshape(T, B, O)
        lv_accu = lv_flat[:TB, :1].reshape(T, B, 1)
        return mu_accu, lv_accu

    def forward(self, x, dropout=True, mc_dropout=False, test=False, seed=0):
        if mc_dropout:
            assert dropout
            T = self._dropout_T
        else:
            T = 1
        feat = self._backbone(x)                         # x = base_model(input).relu()
        key = jax.random.PRNGKey(seed)
        mu_accu, lv_accu = self._head(feat, T, dropout, key)

        mu = jnp.mean(mu_accu, axis=0)
        # torch.var default is unbiased (ddof=1); like torch, this is NaN when T == 1
        # (i.e. mc_dropout=False). Kept to match reference semantics.
        muvar = jnp.var(mu_accu, axis=0, ddof=1)
        logvar = jnp.mean(lv_accu, axis=0)
        if test:
            return (jnp.clip(mu_accu, 0.0, 1.0),
                    jnp.minimum(lv_accu, 0.0),
                    jnp.clip(muvar, 0.0, 1.0))
        return mu, logvar, muvar


if __name__ == "__main__":
    key = jax.random.PRNGKey(0)
    k_x, k_p = jax.random.split(key)

    B, C, H, W = 2, 3, 16, 16
    model = BreastPathQModelPallas(k_p, base_model='resnet50', in_channels=C,
                                   out_channels=1, image_hw=(H, W))
    x = jax.random.normal(k_x, (B, C, H, W), dtype=jnp.float32)

    mu, logvar, muvar = model.forward(x, dropout=True, mc_dropout=True, test=False, seed=0)
    jax.block_until_ready((mu, logvar, muvar))

    assert mu.shape == (B, 1) and logvar.shape == (B, 1) and muvar.shape == (B, 1)
    assert bool(jnp.all(jnp.isfinite(mu))) and bool(jnp.all(jnp.isfinite(logvar)))
    assert bool(jnp.all(jnp.isfinite(muvar))) and bool(jnp.all(muvar >= 0))
    print("KERNEL_OK")
</pallas_src>

<mosaic_0001>
module attributes {stable_mosaic.version = 11 : i64} {
  func.func @_backbone_kernel(%arg0: memref<2x768xbf16, #tpu.memory_space<vmem>>, %arg1: memref<768x2048xbf16, #tpu.memory_space<vmem>>, %arg2: memref<1x2048xf32, #tpu.memory_space<vmem>>, %arg3: memref<2x2048xf32, #tpu.memory_space<vmem>>) attributes {dimension_semantics = [], scalar_prefetch = 0 : i64, scratch_operands = 0 : i64, tpu.core_type = #tpu.core_type<tc>} {
    %c0 = arith.constant 0 : index
    %c0_0 = arith.constant 0 : index
    %0 = vector.load %arg0[%c0, %c0_0] : memref<2x768xbf16, #tpu.memory_space<vmem>>, vector<2x768xbf16>
    %c0_1 = arith.constant 0 : index
    %c0_2 = arith.constant 0 : index
    %1 = vector.load %arg1[%c0_1, %c0_2] : memref<768x2048xbf16, #tpu.memory_space<vmem>>, vector<768x2048xbf16>
    %cst = arith.constant dense<0.000000e+00> : vector<2x2048xf32>
    %2 = tpu.matmul %0, %1, %cst {dimension_numbers = #tpu.dot_dimension_numbers<[1], [0], [0], [1], [0, 0, 1, 1], [], []>} : vector<2x768xbf16>, vector<768x2048xbf16>, vector<2x2048xf32> -> vector<2x2048xf32>
    %c0_3 = arith.constant 0 : index
    %c0_4 = arith.constant 0 : index
    %3 = vector.load %arg2[%c0_3, %c0_4] : memref<1x2048xf32, #tpu.memory_space<vmem>>, vector<1x2048xf32>
    %4 = vector.broadcast %3 : vector<1x2048xf32> to vector<2x2048xf32>
    %5 = arith.addf %2, %4 : vector<2x2048xf32>
    %cst_5 = arith.constant 0.000000e+00 : f32
    %6 = vector.broadcast %cst_5 : f32 to vector<2x2048xf32>
    %7 = arith.maximumf %5, %6 : vector<2x2048xf32>
    %c0_6 = arith.constant 0 : index
    %c0_7 = arith.constant 0 : index
    %8 = vector.load %arg3[%c0_6, %c0_7] : memref<2x2048xf32, #tpu.memory_space<vmem>>, vector<2x2048xf32>
    tpu.vector_store %arg3[%c0_6, %c0_7], %7 {strides = array<i32>} : memref<2x2048xf32, #tpu.memory_space<vmem>>, vector<2x2048xf32>,
    return
  }
}

</mosaic_0001>

<llo_original>
// kernel: tpu_custom_call.1
$region0: #{tpu_custom_call.1}
  #allocation0 [shape = 'u32[]', space=smem, size = 0x4, offset = 0x4, fixed_abs, tag = 'smem constant byte address 0x4 - core index']
  #allocation1 [shape = 'u32[72,128]{1,0:T(1,128)}', space=vmem, size = 0x9000, scoped, tag = 'internal scratch']
  %s0 = inlined_call_operand.hbm [shape: bf16[2,768], index: 0, kind: input, shape index: {}]
  %s1 = inlined_call_operand.hbm [shape: bf16[768,2048], index: 1, kind: input, shape index: {}]
  %s2 = inlined_call_operand.hbm [shape: f32[1,2048], index: 2, kind: input, shape index: {}]
  %s3 = inlined_call_operand.hbm [shape: f32[2,2048], index: 3, kind: output, shape index: {}]
  %s4 = sld [smem:[#allocation0]]
  $region34: #{tpu_custom_call.1} parent=0
    _
  %s6 = ssub.s32 1, %s4
  %s7 = scalar_select 0, %s6, %s4
  $region1: #{tpu_custom_call.1} parent=0
    #allocation2 [shape = 'u8[3072]{0}', space=vmem, size = 0xc00, scoped, tag = 'input window, operand 0, single buffered']
    #allocation3 [shape = 's32[1]{0}', space=sflag, size = 0x4, scoped, tag = 'scoped memory for tpu_custom_call.1']
    #allocation4 [shape = 's32[1]{0}', space=sflag, size = 0x4, scoped, tag = 'scoped memory for tpu_custom_call.1']
    #allocation5 [shape = 'u8[3145728]{0}', space=vmem, size = 0x300000, scoped, tag = 'input window, operand 1, single buffered']
    #allocation6 [shape = 's32[1]{0}', space=sflag, size = 0x4, scoped, tag = 'scoped memory for tpu_custom_call.1']
    #allocation7 [shape = 'u8[8192]{0}', space=vmem, size = 0x2000, scoped, tag = 'input window, operand 2, single buffered']
    #allocation8 [shape = 'u8[16384]{0}', space=vmem, size = 0x4000, scoped, tag = 'output window, operand 0, single buffered']
    %8 = vsyncpa [#allocation3], 0
    %9 = vsyncpa [#allocation6], 0
    %10 = vsyncpa [#allocation4], 0
    // Predicated region
    $region2: #{tpu_custom_call.1} parent=1 // pred_check
      _
    $region3: #{tpu_custom_call.1} parent=1 // pred_check_branch
      %12 = sbr.rel (0) target = $region5
    $region4: #{tpu_custom_call.1} parent=1 // pred_region
      %14 = vsyncadd [#allocation3], 0
      %s16 = sshll.u32 %s0, 4
      %s17 = int_to_ptr.hbm [resolvable:$true] %s16
      %s18 = sshll.u32 [#allocation2], 4
      %s19 = int_to_ptr.vmem [resolvable:$true] %s18
      %21 = dma.hbm_to_vmem [thread:$0]  %s17, 96, %s19, [#allocation3]
    $region5: #{tpu_custom_call.1} parent=1 // pred_fallthru
      _
    // Predicated region
    $region6: #{tpu_custom_call.1} parent=1 // pred_check
      _
    $region7: #{tpu_custom_call.1} parent=1 // pred_check_branch
      %23 = sbr.rel (0) target = $region9
    $region8: #{tpu_custom_call.1} parent=1 // pred_region
      %25 = vsyncadd [#allocation6], 0
      %s26 = sshll.u32 %s1, 4
      %s27 = int_to_ptr.hbm [resolvable:$true] %s26
      %s28 = sshll.u32 [#allocation5], 4
      %s29 = int_to_ptr.vmem [resolvable:$true] %s28
      %34 = dma.hbm_to_vmem [thread:$0]  %s27, 98304, %s29, [#allocation6], 1024, 1024, 64
    $region9: #{tpu_custom_call.1} parent=1 // pred_fallthru
      _
    // Predicated region
    $region10: #{tpu_custom_call.1} parent=1 // pred_check
      _
    $region11: #{tpu_custom_call.1} parent=1 // pred_check_branch
      %36 = sbr.rel (0) target = $region13
    $region12: #{tpu_custom_call.1} parent=1 // pred_region
      %38 = vsyncadd [#allocation6], 0
      %s40 = sshll.u32 %s2, 4
      %s41 = int_to_ptr.hbm [resolvable:$true] %s40
      %s42 = sshll.u32 [#allocation7], 4
      %s43 = int_to_ptr.vmem [resolvable:$true] %s42
      %45 = dma.hbm_to_vmem [thread:$0]  %s41, 256, %s43, [#allocation6]
    $region13: #{tpu_custom_call.1} parent=1 // pred_fallthru
      _
    // Predicated region
    $region14: #{tpu_custom_call.1} parent=1 // pred_check
      _
    $region15: #{tpu_custom_call.1} parent=1 // pred_check_branch
      %47 = sbr.rel (0) target = $region17
    $region16: #{tpu_custom_call.1} parent=1 // pred_region
      %49 = dma.done [#allocation3], 96
    $region17: #{tpu_custom_call.1} parent=1 // pred_fallthru
      _
    // Predicated region
    $region18: #{tpu_custom_call.1} parent=1 // pred_check
      _
    $region19: #{tpu_custom_call.1} parent=1 // pred_check_branch
      %51 = sbr.rel (0) target = $region21
    $region20: #{tpu_custom_call.1} parent=1 // pred_region
      %53 = dma.done [#allocation6], 98304
    $region21: #{tpu_custom_call.1} parent=1 // pred_fallthru
      _
    // Predicated region
    $region22: #{tpu_custom_call.1} parent=1 // pred_check
      _
    $region23: #{tpu_custom_call.1} parent=1 // pred_check_branch
      %55 = sbr.rel (0) target = $region25
    $region24: #{tpu_custom_call.1} parent=1 // pred_region
      %57 = dma.done [#allocation6], 256
    $region25: #{tpu_custom_call.1} parent=1 // pred_fallthru
      _
    %v58 = vld [vmem:[#allocation2] sm:$0x3f]
    %v59 = vld [vmem:[#allocation5] sm:$0xff]
    %v60 = vld [vmem:[#allocation5 + $0x8] sm:$0xff]
    %v61 = vld [vmem:[#allocation5 + $0x10] sm:$0xff]
    %v62 = vld [vmem:[#allocation5 + $0x18] sm:$0xff]
    %v63 = vld [vmem:[#allocation5 + $0x20] sm:$0xff]
    %v64 = vld [vmem:[#allocation5 + $0x28] sm:$0xff]
    %v65 = vld [vmem:[#allocation5 + $0x30] sm:$0xff]
    %v66 = vld [vmem:[#allocation5 + $0x38] sm:$0xff]
    %v67 = vld [vmem:[#allocation5 + $0x40] sm:$0xff]
    %v68 = vld [vmem:[#allocation5 + $0x48] sm:$0xff]
    %v69 = vld [vmem:[#allocation5 + $0x50] sm:$0xff]
    %v70 = vld [vmem:[#allocation5 + $0x58] sm:$0xff]
    %v71 = vld [vmem:[#allocation5 + $0x60] sm:$0xff]
    %v72 = vld [vmem:[#allocation5 + $0x68] sm:$0xff]
    %v73 = vld [vmem:[#allocation5 + $0x70] sm:$0xff]
    %v74 = vld [vmem:[#allocation5 + $0x78] sm:$0xff]
    %v75 = vld [vmem:[#allocation5 + $0x80] sm:$0xff]
    %v76 = vld [vmem:[#allocation5 + $0x88] sm:$0xff]
    %v77 = vld [vmem:[#allocation5 + $0x90] sm:$0xff]
    %v78 = vld [vmem:[#allocation5 + $0x98] sm:$0xff]
    %v79 = vld [vmem:[#allocation5 + $0xa0] sm:$0xff]
    %v80 = vld [vmem:[#allocation5 + $0xa8] sm:$0xff]
    %v81 = vld [vmem:[#allocation5 + $0xb0] sm:$0xff]
    %v82 = vld [vmem:[#allocation5 + $0xb8] sm:$0xff]
    %v83 = vld [vmem:[#allocation5 + $0xc0] sm:$0xff]
    %v84 = vld [vmem:[#allocation5 + $0xc8] sm:$0xff]
    %v85 = vld [vmem:[#allocation5 + $0xd0] sm:$0xff]
    %v86 = vld [vmem:[#allocation5 + $0xd8] sm:$0xff]
    %v87 = vld [vmem:[#allocation5 + $0xe0] sm:$0xff]
    %v88 = vld [vmem:[#allocation5 + $0xe8] sm:$0xff]
    %v89 = vld [vmem:[#allocation5 + $0xf0] sm:$0xff]
    %v90 = vld [vmem:[#allocation5 + $0xf8] sm:$0xff]
    %v91 = vld [vmem:[#allocation5 + $0x100] sm:$0xff]
    %v92 = vld [vmem:[#allocation5 + $0x108] sm:$0xff]
    %v93 = vld [vmem:[#allocation5 + $0x110] sm:$0xff]
    %v94 = vld [vmem:[#allocation5 + $0x118] sm:$0xff]
    %v95 = vld [vmem:[#allocation5 + $0x120] sm:$0xff]
    %v96 = vld [vmem:[#allocation5 + $0x128] sm:$0xff]
    %v97 = vld [vmem:[#allocation5 + $0x130] sm:$0xff]
    %v98 = vld [vmem:[#allocation5 + $0x138] sm:$0xff]
    %v99 = vld [vmem:[#allocation5 + $0x140] sm:$0xff]
    %v100 = vld [vmem:[#allocation5 + $0x148] sm:$0xff]
    %v101 = vld [vmem:[#allocation5 + $0x150] sm:$0xff]
    %v102 = vld [vmem:[#allocation5 + $0x158] sm:$0xff]
    %v103 = vld [vmem:[#allocation5 + $0x160] sm:$0xff]
    %v104 = vld [vmem:[#allocation5 + $0x168] sm:$0xff]
    %v105 = vld [vmem:[#allocation5 + $0x170] sm:$0xff]
    %v106 = vld [vmem:[#allocation5 + $0x178] sm:$0xff]
    %v107 = vld [vmem:[#allocation5 + $0x180] sm:$0xff]
    %v108 = vld [vmem:[#allocation5 + $0x188] sm:$0xff]
    %v109 = vld [vmem:[#allocation5 + $0x190] sm:$0xff]
    %v110 = vld [vmem:[#allocation5 + $0x198] sm:$0xff]
    %v111 = vld [vmem:[#allocation5 + $0x1a0] sm:$0xff]
    %v112 = vld [vmem:[#allocation5 + $0x1a8] sm:$0xff]
    %v113 = vld [vmem:[#allocation5 + $0x1b0] sm:$0xff]
    %v114 = vld [vmem:[#allocation5 + $0x1b8] sm:$0xff]
    %v115 = vld [vmem:[#allocation5 + $0x1c0] sm:$0xff]
    %v116 = vld [vmem:[#allocation5 + $0x1c8] sm:$0xff]
    %v117 = vld [vmem:[#allocation5 + $0x1d0] sm:$0xff]
    %v118 = vld [vmem:[#allocation5 + $0x1d8] sm:$0xff]
    %v119 = vld [vmem:[#allocation5 + $0x1e0] sm:$0xff]
    %v120 = vld [vmem:[#allocation5 + $0x1e8] sm:$0xff]
    %v121 = vld [vmem:[#allocation5 + $0x1f0] sm:$0xff]
    %v122 = vld [vmem:[#allocation5 + $0x1f8] sm:$0xff]
    %v123 = vld [vmem:[#allocation5 + $0x200] sm:$0xff]
    %v124 = vld [vmem:[#allocation5 + $0x208] sm:$0xff]
    %v125 = vld [vmem:[#allocation5 + $0x210] sm:$0xff]
    %v126 = vld [vmem:[#allocation5 + $0x218] sm:$0xff]
    %v127 = vld [vmem:[#allocation5 + $0x220] sm:$0xff]
    %v128 = vld [vmem:[#allocation5 + $0x228] sm:$0xff]
    %v129 = vld [vmem:[#allocation5 + $0x230] sm:$0xff]
    %v130 = vld [vmem:[#allocation5 + $0x238] sm:$0xff]
    %v131 = vld [vmem:[#allocation5 + $0x240] sm:$0xff]
    %v132 = vld [vmem:[#allocation5 + $0x248] sm:$0xff]
    %v133 = vld [vmem:[#allocation5 + $0x250] sm:$0xff]
    %v134 = vld [vmem:[#allocation5 + $0x258] sm:$0xff]
    %v135 = vld [vmem:[#allocation5 + $0x260] sm:$0xff]
    %v136 = vld [vmem:[#allocation5 + $0x268] sm:$0xff]
    %v137 = vld [vmem:[#allocation5 + $0x270] sm:$0xff]
    %v138 = vld [vmem:[#allocation5 + $0x278] sm:$0xff]
    %v139 = vld [vmem:[#allocation5 + $0x280] sm:$0xff]
    %v140 = vld [vmem:[#allocation5 + $0x288] sm:$0xff]
    %v141 = vld [vmem:[#allocation5 + $0x290] sm:$0xff]
    %v142 = vld [vmem:[#allocation5 + $0x298] sm:$0xff]
    %v143 = vld [vmem:[#allocation5 + $0x2a0] sm:$0xff]
    %v144 = vld [vmem:[#allocation5 + $0x2a8] sm:$0xff]
    %v145 = vld [vmem:[#allocation5 + $0x2b0] sm:$0xff]
    %v146 = vld [vmem:[#allocation5 + $0x2b8] sm:$0xff]
    %v147 = vld [vmem:[#allocation5 + $0x2c0] sm:$0xff]
    %v148 = vld [vmem:[#allocation5 + $0x2c8] sm:$0xff]
    %v149 = vld [vmem:[#allocation5 + $0x2d0] sm:$0xff]
    %v150 = vld [vmem:[#allocation5 + $0x2d8] sm:$0xff]
    %v151 = vld [vmem:[#allocation5 + $0x2e0] sm:$0xff]
    %v152 = vld [vmem:[#allocation5 + $0x2e8] sm:$0xff]
    %v153 = vld [vmem:[#allocation5 + $0x2f0] sm:$0xff]
    %v154 = vld [vmem:[#allocation5 + $0x2f8] sm:$0xff]
    %v155 = vld [vmem:[#allocation5 + $0x300] sm:$0xff]
    %v156 = vld [vmem:[#allocation5 + $0x308] sm:$0xff]
    %v157 = vld [vmem:[#allocation5 + $0x310] sm:$0xff]
    %v158 = vld [vmem:[#allocation5 + $0x318] sm:$0xff]
    %v159 = vld [vmem:[#allocation5 + $0x320] sm:$0xff]
    %v160 = vld [vmem:[#allocation5 + $0x328] sm:$0xff]
    %v161 = vld [vmem:[#allocation5 + $0x330] sm:$0xff]
    %v162 = vld [vmem:[#allocation5 + $0x338] sm:$0xff]
    %v163 = vld [vmem:[#allocation5 + $0x340] sm:$0xff]
    %v164 = vld [vmem:[#allocation5 + $0x348] sm:$0xff]
    %v165 = vld [vmem:[#allocation5 + $0x350] sm:$0xff]
    %v166 = vld [vmem:[#allocation5 + $0x358] sm:$0xff]
    %v167 = vld [vmem:[#allocation5 + $0x360] sm:$0xff]
    %v168 = vld [vmem:[#allocation5 + $0x368] sm:$0xff]
    %v169 = vld [vmem:[#allocation5 + $0x370] sm:$0xff]
    %v170 = vld [vmem:[#allocation5 + $0x378] sm:$0xff]
    %v171 = vld [vmem:[#allocation5 + $0x380] sm:$0xff]
    %v172 = vld [vmem:[#allocation5 + $0x388] sm:$0xff]
    %v173 = vld [vmem:[#allocation5 + $0x390] sm:$0xff]
    %v174 = vld [vmem:[#allocation5 + $0x398] sm:$0xff]
    %v175 = vld [vmem:[#allocation5 + $0x3a0] sm:$0xff]
    %v176 = vld [vmem:[#allocation5 + $0x3a8] sm:$0xff]
    %v177 = vld [vmem:[#allocation5 + $0x3b0] sm:$0xff]
    %v178 = vld [vmem:[#allocation5 + $0x3b8] sm:$0xff]
    %v179 = vld [vmem:[#allocation5 + $0x3c0] sm:$0xff]
    %v180 = vld [vmem:[#allocation5 + $0x3c8] sm:$0xff]
    %v181 = vld [vmem:[#allocation5 + $0x3d0] sm:$0xff]
    %v182 = vld [vmem:[#allocation5 + $0x3d8] sm:$0xff]
    %v183 = vld [vmem:[#allocation5 + $0x3e0] sm:$0xff]
    %v184 = vld [vmem:[#allocation5 + $0x3e8] sm:$0xff]
    %v185 = vld [vmem:[#allocation5 + $0x3f0] sm:$0xff]
    %v186 = vld [vmem:[#allocation5 + $0x3f8] sm:$0xff]
    %v187 = vld [vmem:[#allocation5 + $0x400] sm:$0xff]
    %v188 = vld [vmem:[#allocation5 + $0x408] sm:$0xff]
    %v189 = vld [vmem:[#allocation5 + $0x410] sm:$0xff]
    %v190 = vld [vmem:[#allocation5 + $0x418] sm:$0xff]
    %v191 = vld [vmem:[#allocation5 + $0x420] sm:$0xff]
    %v192 = vld [vmem:[#allocation5 + $0x428] sm:$0xff]
    %v193 = vld [vmem:[#allocation5 + $0x430] sm:$0xff]
    %v194 = vld [vmem:[#allocation5 + $0x438] sm:$0xff]
    %v195 = vld [vmem:[#allocation5 + $0x440] sm:$0xff]
    %v196 = vld [vmem:[#allocation5 + $0x448] sm:$0xff]
    %v197 = vld [vmem:[#allocation5 + $0x450] sm:$0xff]
    %v198 = vld [vmem:[#allocation5 + $0x458] sm:$0xff]
    %v199 = vld [vmem:[#allocation5 + $0x460] sm:$0xff]
    %v200 = vld [vmem:[#allocation5 + $0x468] sm:$0xff]
    %v201 = vld [vmem:[#allocation5 + $0x470] sm:$0xff]
    %v202 = vld [vmem:[#allocation5 + $0x478] sm:$0xff]
    %v203 = vld [vmem:[#allocation5 + $0x480] sm:$0xff]
    %v204 = vld [vmem:[#allocation5 + $0x488] sm:$0xff]
    %v205 = vld [vmem:[#allocation5 + $0x490] sm:$0xff]
    %v206 = vld [vmem:[#allocation5 + $0x498] sm:$0xff]
    %v207 = vld [vmem:[#allocation5 + $0x4a0] sm:$0xff]
    %v208 = vld [vmem:[#allocation5 + $0x4a8] sm:$0xff]
    %v209 = vld [vmem:[#allocation5 + $0x4b0] sm:$0xff]
    %v210 = vld [vmem:[#allocation5 + $0x4b8] sm:$0xff]
    %v211 = vld [vmem:[#allocation5 + $0x4c0] sm:$0xff]
    %v212 = vld [vmem:[#allocation5 + $0x4c8] sm:$0xff]
    %v213 = vld [vmem:[#allocation5 + $0x4d0] sm:$0xff]
    %v214 = vld [vmem:[#allocation5 + $0x4d8] sm:$0xff]
    %v215 = vld [vmem:[#allocation5 + $0x4e0] sm:$0xff]
    %v216 = vld [vmem:[#allocation5 + $0x4e8] sm:$0xff]
    %v217 = vld [vmem:[#allocation5 + $0x4f0] sm:$0xff]
    %v218 = vld [vmem:[#allocation5 + $0x4f8] sm:$0xff]
    %v219 = vld [vmem:[#allocation5 + $0x500] sm:$0xff]
    %v220 = vld [vmem:[#allocation5 + $0x508] sm:$0xff]
    %v221 = vld [vmem:[#allocation5 + $0x510] sm:$0xff]
    %v222 = vld [vmem:[#allocation5 + $0x518] sm:$0xff]
    %v223 = vld [vmem:[#allocation5 + $0x520] sm:$0xff]
    %v224 = vld [vmem:[#allocation5 + $0x528] sm:$0xff]
    %v225 = vld [vmem:[#allocation5 + $0x530] sm:$0xff]
    %v226 = vld [vmem:[#allocation5 + $0x538] sm:$0xff]
    %v227 = vld [vmem:[#allocation5 + $0x540] sm:$0xff]
    %v228 = vld [vmem:[#allocation5 + $0x548] sm:$0xff]
    %v229 = vld [vmem:[#allocation5 + $0x550] sm:$0xff]
    %v230 = vld [vmem:[#allocation5 + $0x558] sm:$0xff]
    %v231 = vld [vmem:[#allocation5 + $0x560] sm:$0xff]
    %v232 = vld [vmem:[#allocation5 + $0x568] sm:$0xff]
    %v233 = vld [vmem:[#allocation5 + $0x570] sm:$0xff]
    %v234 = vld [vmem:[#allocation5 + $0x578] sm:$0xff]
    %v235 = vld [vmem:[#allocation5 + $0x580] sm:$0xff]
    %v236 = vld [vmem:[#allocation5 + $0x588] sm:$0xff]
    %v237 = vld [vmem:[#allocation5 + $0x590] sm:$0xff]
    %v238 = vld [vmem:[#allocation5 + $0x598] sm:$0xff]
    %v239 = vld [vmem:[#allocation5 + $0x5a0] sm:$0xff]
    %v240 = vld [vmem:[#allocation5 + $0x5a8] sm:$0xff]
    %v241 = vld [vmem:[#allocation5 + $0x5b0] sm:$0xff]
    %v242 = vld [vmem:[#allocation5 + $0x5b8] sm:$0xff]
    %v243 = vld [vmem:[#allocation5 + $0x5c0] sm:$0xff]
    %v244 = vld [vmem:[#allocation5 + $0x5c8] sm:$0xff]
    %v245 = vld [vmem:[#allocation5 + $0x5d0] sm:$0xff]
    %v246 = vld [vmem:[#allocation5 + $0x5d8] sm:$0xff]
    %v247 = vld [vmem:[#allocation5 + $0x5e0] sm:$0xff]
    %v248 = vld [vmem:[#allocation5 + $0x5e8] sm:$0xff]
    %v249 = vld [vmem:[#allocation5 + $0x5f0] sm:$0xff]
    %v250 = vld [vmem:[#allocation5 + $0x5f8] sm:$0xff]
    %v251 = vld [vmem:[#allocation5 + $0x600] sm:$0xff]
    %v252 = vld [vmem:[#allocation5 + $0x608] sm:$0xff]
    %v253 = vld [vmem:[#allocation5 + $0x610] sm:$0xff]
    %v254 = vld [vmem:[#allocation5 + $0x618] sm:$0xff]
    %v255 = vld [vmem:[#allocation5 + $0x620] sm:$0xff]
    %v256 = vld [vmem:[#allocation5 + $0x628] sm:$0xff]
    %v257 = vld [vmem:[#allocation5 + $0x630] sm:$0xff]
    %v258 = vld [vmem:[#allocation5 + $0x638] sm:$0xff]
    %v259 = vld [vmem:[#allocation5 + $0x640] sm:$0xff]
    %v260 = vld [vmem:[#allocation5 + $0x648] sm:$0xff]
    %v261 = vld [vmem:[#allocation5 + $0x650] sm:$0xff]
    %v262 = vld [vmem:[#allocation5 + $0x658] sm:$0xff]
    %v263 = vld [vmem:[#allocation5 + $0x660] sm:$0xff]
    %v264 = vld [vmem:[#allocation5 + $0x668] sm:$0xff]
    %v265 = vld [vmem:[#allocation5 + $0x670] sm:$0xff]
    %v266 = vld [vmem:[#allocation5 + $0x678] sm:$0xff]
    %v267 = vld [vmem:[#allocation5 + $0x680] sm:$0xff]
    %v268 = vld [vmem:[#allocation5 + $0x688] sm:$0xff]
    %v269 = vld [vmem:[#allocation5 + $0x690] sm:$0xff]
    %v270 = vld [vmem:[#allocation5 + $0x698] sm:$0xff]
    %v271 = vld [vmem:[#allocation5 + $0x6a0] sm:$0xff]
    %v272 = vld [vmem:[#allocation5 + $0x6a8] sm:$0xff]
    %v273 = vld [vmem:[#allocation5 + $0x6b0] sm:$0xff]
    %v274 = vld [vmem:[#allocation5 + $0x6b8] sm:$0xff]
    %v275 = vld [vmem:[#allocation5 + $0x6c0] sm:$0xff]
    %v276 = vld [vmem:[#allocation5 + $0x6c8] sm:$0xff]
    %v277 = vld [vmem:[#allocation5 + $0x6d0] sm:$0xff]
    %v278 = vld [vmem:[#allocation5 + $0x6d8] sm:$0xff]
    %v279 = vld [vmem:[#allocation5 + $0x6e0] sm:$0xff]
    %v280 = vld [vmem:[#allocation5 + $0x6e8] sm:$0xff]
    %v281 = vld [vmem:[#allocation5 + $0x6f0] sm:$0xff]
    %v282 = vld [vmem:[#allocation5 + $0x6f8] sm:$0xff]
    %v283 = vld [vmem:[#allocation5 + $0x700] sm:$0xff]
    %v284 = vld [vmem:[#allocation5 + $0x708] sm:$0xff]
    %v285 = vld [vmem:[#allocation5 + $0x710] sm:$0xff]
    %v286 = vld [vmem:[#allocation5 + $0x718] sm:$0xff]
    %v287 = vld [vmem:[#allocation5 + $0x720] sm:$0xff]
    %v288 = vld [vmem:[#allocation5 + $0x728] sm:$0xff]
    %v289 = vld [vmem:[#allocation5 + $0x730] sm:$0xff]
    %v290 = vld [vmem:[#allocation5 + $0x738] sm:$0xff]
    %v291 = vld [vmem:[#allocation5 + $0x740] sm:$0xff]
    %v292 = vld [vmem:[#allocation5 + $0x748] sm:$0xff]
    %v293 = vld [vmem:[#allocation5 + $0x750] sm:$0xff]
    %v294 = vld [vmem:[#allocation5 + $0x758] sm:$0xff]
    %v295 = vld [vmem:[#allocation5 + $0x760] sm:$0xff]
    %v296 = vld [vmem:[#allocation5 + $0x768] sm:$0xff]
    %v297 = vld [vmem:[#allocation5 + $0x770] sm:$0xff]
    %v298 = vld [vmem:[#allocation5 + $0x778] sm:$0xff]
    %v299 = vld [vmem:[#allocation5 + $0x780] sm:$0xff]
    %v300 = vld [vmem:[#allocation5 + $0x788] sm:$0xff]
    %v301 = vld [vmem:[#allocation5 + $0x790] sm:$0xff]
    %v302 = vld [vmem:[#allocation5 + $0x798] sm:$0xff]
    %v303 = vld [vmem:[#allocation5 + $0x7a0] sm:$0xff]
    %v304 = vld [vmem:[#allocation5 + $0x7a8] sm:$0xff]
    %v305 = vld [vmem:[#allocation5 + $0x7b0] sm:$0xff]
    %v306 = vld [vmem:[#allocation5 + $0x7b8] sm:$0xff]
    %v307 = vld [vmem:[#allocation5 + $0x7c0] sm:$0xff]
    %v308 = vld [vmem:[#allocation5 + $0x7c8] sm:$0xff]
    %v309 = vld [vmem:[#allocation5 + $0x7d0] sm:$0xff]
    %v310 = vld [vmem:[#allocation5 + $0x7d8] sm:$0xff]
    %v311 = vld [vmem:[#allocation5 + $0x7e0] sm:$0xff]
    %v312 = vld [vmem:[#allocation5 + $0x7e8] sm:$0xff]
    %v313 = vld [vmem:[#allocation5 + $0x7f0] sm:$0xff]
    %v314 = vld [vmem:[#allocation5 + $0x7f8] sm:$0xff]
    %v315 = vld [vmem:[#allocation5 + $0x800] sm:$0xff]
    %v316 = vld [vmem:[#allocation5 + $0x808] sm:$0xff]
    %v317 = vld [vmem:[#allocation5 + $0x810] sm:$0xff]
    %v318 = vld [vmem:[#allocation5 + $0x818] sm:$0xff]
    %v319 = vld [vmem:[#allocation5 + $0x820] sm:$0xff]
    %v320 = vld [vmem:[#allocation5 + $0x828] sm:$0xff]
    %v321 = vld [vmem:[#allocation5 + $0x830] sm:$0xff]
    %v322 = vld [vmem:[#allocation5 + $0x838] sm:$0xff]
    %v323 = vld [vmem:[#allocation5 + $0x840] sm:$0xff]
    %v324 = vld [vmem:[#allocation5 + $0x848] sm:$0xff]
    %v325 = vld [vmem:[#allocation5 + $0x850] sm:$0xff]
    %v326 = vld [vmem:[#allocation5 + $0x858] sm:$0xff]
    %v327 = vld [vmem:[#allocation5 + $0x860] sm:$0xff]
    %v328 = vld [vmem:[#allocation5 + $0x868] sm:$0xff]
    %v329 = vld [vmem:[#allocation5 + $0x870] sm:$0xff]
    %v330 = vld [vmem:[#allocation5 + $0x878] sm:$0xff]
    %v331 = vld [vmem:[#allocation5 + $0x880] sm:$0xff]
    %v332 = vld [vmem:[#allocation5 + $0x888] sm:$0xff]
    %v333 = vld [vmem:[#allocation5 + $0x890] sm:$0xff]
    %v334 = vld [vmem:[#allocation5 + $0x898] sm:$0xff]
    %v335 = vld [vmem:[#allocation5 + $0x8a0] sm:$0xff]
    %v336 = vld [vmem:[#allocation5 + $0x8a8] sm:$0xff]
    %v337 = vld [vmem:[#allocation5 + $0x8b0] sm:$0xff]
    %v338 = vld [vmem:[#allocation5 + $0x8b8] sm:$0xff]
    %v339 = vld [vmem:[#allocation5 + $0x8c0] sm:$0xff]
    %v340 = vld [vmem:[#allocation5 + $0x8c8] sm:$0xff]
    %v341 = vld [vmem:[#allocation5 + $0x8d0] sm:$0xff]
    %v342 = vld [vmem:[#allocation5 + $0x8d8] sm:$0xff]
    %v343 = vld [vmem:[#allocation5 + $0x8e0] sm:$0xff]
    %v344 = vld [vmem:[#allocation5 + $0x8e8] sm:$0xff]
    %v345 = vld [vmem:[#allocation5 + $0x8f0] sm:$0xff]
    %v346 = vld [vmem:[#allocation5 + $0x8f8] sm:$0xff]
    %v347 = vld [vmem:[#allocation5 + $0x900] sm:$0xff]
    %v348 = vld [vmem:[#allocation5 + $0x908] sm:$0xff]
    %v349 = vld [vmem:[#allocation5 + $0x910] sm:$0xff]
    %v350 = vld [vmem:[#allocation5 + $0x918] sm:$0xff]
    %v351 = vld [vmem:[#allocation5 + $0x920] sm:$0xff]
    %v352 = vld [vmem:[#allocation5 + $0x928] sm:$0xff]
    %v353 = vld [vmem:[#allocation5 + $0x930] sm:$0xff]
    %v354 = vld [vmem:[#allocation5 + $0x938] sm:$0xff]
    %v355 = vld [vmem:[#allocation5 + $0x940] sm:$0xff]
    %v356 = vld [vmem:[#allocation5 + $0x948] sm:$0xff]
    %v357 = vld [vmem:[#allocation5 + $0x950] sm:$0xff]
    %v358 = vld [vmem:[#allocation5 + $0x958] sm:$0xff]
    %v359 = vld [vmem:[#allocation5 + $0x960] sm:$0xff]
    %v360 = vld [vmem:[#allocation5 + $0x968] sm:$0xff]
    %v361 = vld [vmem:[#allocation5 + $0x970] sm:$0xff]
    %v362 = vld [vmem:[#allocation5 + $0x978] sm:$0xff]
    %v363 = vld [vmem:[#allocation5 + $0x980] sm:$0xff]
    %v364 = vld [vmem:[#allocation5 + $0x988] sm:$0xff]
    %v365 = vld [vmem:[#allocation5 + $0x990] sm:$0xff]
    %v366 = vld [vmem:[#allocation5 + $0x998] sm:$0xff]
    %v367 = vld [vmem:[#allocation5 + $0x9a0] sm:$0xff]
    %v368 = vld [vmem:[#allocation5 + $0x9a8] sm:$0xff]
    %v369 = vld [vmem:[#allocation5 + $0x9b0] sm:$0xff]
    %v370 = vld [vmem:[#allocation5 + $0x9b8] sm:$0xff]
    %v371 = vld [vmem:[#allocation5 + $0x9c0] sm:$0xff]
    %v372 = vld [vmem:[#allocation5 + $0x9c8] sm:$0xff]
    %v373 = vld [vmem:[#allocation5 + $0x9d0] sm:$0xff]
    %v374 = vld [vmem:[#allocation5 + $0x9d8] sm:$0xff]
    %v375 = vld [vmem:[#allocation5 + $0x9e0] sm:$0xff]
    %v376 = vld [vmem:[#allocation5 + $0x9e8] sm:$0xff]
    %v377 = vld [vmem:[#allocation5 + $0x9f0] sm:$0xff]
    %v378 = vld [vmem:[#allocation5 + $0x9f8] sm:$0xff]
    %v379 = vld [vmem:[#allocation5 + $0xa00] sm:$0xff]
    %v380 = vld [vmem:[#allocation5 + $0xa08] sm:$0xff]
    %v381 = vld [vmem:[#allocation5 + $0xa10] sm:$0xff]
    %v382 = vld [vmem:[#allocation5 + $0xa18] sm:$0xff]
    %v383 = vld [vmem:[#allocation5 + $0xa20] sm:$0xff]
    %v384 = vld [vmem:[#allocation5 + $0xa28] sm:$0xff]
    %v385 = vld [vmem:[#allocation5 + $0xa30] sm:$0xff]
    %v386 = vld [vmem:[#allocation5 + $0xa38] sm:$0xff]
    %v387 = vld [vmem:[#allocation5 + $0xa40] sm:$0xff]
    %v388 = vld [vmem:[#allocation5 + $0xa48] sm:$0xff]
    %v389 = vld [vmem:[#allocation5 + $0xa50] sm:$0xff]
    %v390 = vld [vmem:[#allocation5 + $0xa58] sm:$0xff]
    %v391 = vld [vmem:[#allocation5 + $0xa60] sm:$0xff]
    %v392 = vld [vmem:[#allocation5 + $0xa68] sm:$0xff]
    %v393 = vld [vmem:[#allocation5 + $0xa70] sm:$0xff]
    %v394 = vld [vmem:[#allocation5 + $0xa78] sm:$0xff]
    %v395 = vld [vmem:[#allocation5 + $0xa80] sm:$0xff]
    %v396 = vld [vmem:[#allocation5 + $0xa88] sm:$0xff]
    %v397 = vld [vmem:[#allocation5 + $0xa90] sm:$0xff]
    %v398 = vld [vmem:[#allocation5 + $0xa98] sm:$0xff]
    %v399 = vld [vmem:[#allocation5 + $0xaa0] sm:$0xff]
    %v400 = vld [vmem:[#allocation5 + $0xaa8] sm:$0xff]
    %v401 = vld [vmem:[#allocation5 + $0xab0] sm:$0xff]
    %v402 = vld [vmem:[#allocation5 + $0xab8] sm:$0xff]
    %v403 = vld [vmem:[#allocation5 + $0xac0] sm:$0xff]
    %v404 = vld [vmem:[#allocation5 + $0xac8] sm:$0xff]
    %v405 = vld [vmem:[#allocation5 + $0xad0] sm:$0xff]
    %v406 = vld [vmem:[#allocation5 + $0xad8] sm:$0xff]
    %v407 = vld [vmem:[#allocation5 + $0xae0] sm:$0xff]
    %v408 = vld [vmem:[#allocation5 + $0xae8] sm:$0xff]
    %v409 = vld [vmem:[#allocation5 + $0xaf0] sm:$0xff]
    %v410 = vld [vmem:[#allocation5 + $0xaf8] sm:$0xff]
    %v411 = vld [vmem:[#allocation5 + $0xb00] sm:$0xff]
    %v412 = vld [vmem:[#allocation5 + $0xb08] sm:$0xff]
    %v413 = vld [vmem:[#allocation5 + $0xb10] sm:$0xff]
    %v414 = vld [vmem:[#allocation5 + $0xb18] sm:$0xff]
    %v415 = vld [vmem:[#allocation5 + $0xb20] sm:$0xff]
    %v416 = vld [vmem:[#allocation5 + $0xb28] sm:$0xff]
    %v417 = vld [vmem:[#allocation5 + $0xb30] sm:$0xff]
    %v418 = vld [vmem:[#allocation5 + $0xb38] sm:$0xff]
    %v419 = vld [vmem:[#allocation5 + $0xb40] sm:$0xff]
    %v420 = vld [vmem:[#allocation5 + $0xb48] sm:$0xff]
    %v421 = vld [vmem:[#allocation5 + $0xb50] sm:$0xff]
    %v422 = vld [vmem:[#allocation5 + $0xb58] sm:$0xff]
    %v423 = vld [vmem:[#allocation5 + $0xb60] sm:$0xff]
    %v424 = vld [vmem:[#allocation5 + $0xb68] sm:$0xff]
    %v425 = vld [vmem:[#allocation5 + $0xb70] sm:$0xff]
    %v426 = vld [vmem:[#allocation5 + $0xb78] sm:$0xff]
    %v427 = vld [vmem:[#allocation5 + $0xb80] sm:$0xff]
    %v428 = vld [vmem:[#allocation5 + $0xb88] sm:$0xff]
    %v429 = vld [vmem:[#allocation5 + $0xb90] sm:$0xff]
    %v430 = vld [vmem:[#allocation5 + $0xb98] sm:$0xff]
    %v431 = vld [vmem:[#allocation5 + $0xba0] sm:$0xff]
    %v432 = vld [vmem:[#allocation5 + $0xba8] sm:$0xff]
    %v433 = vld [vmem:[#allocation5 + $0xbb0] sm:$0xff]
    %v434 = vld [vmem:[#allocation5 + $0xbb8] sm:$0xff]
    %v435 = vld [vmem:[#allocation5 + $0xbc0] sm:$0xff]
    %v436 = vld [vmem:[#allocation5 + $0xbc8] sm:$0xff]
    %v437 = vld [vmem:[#allocation5 + $0xbd0] sm:$0xff]
    %v438 = vld [vmem:[#allocation5 + $0xbd8] sm:$0xff]
    %v439 = vld [vmem:[#allocation5 + $0xbe0] sm:$0xff]
    %v440 = vld [vmem:[#allocation5 + $0xbe8] sm:$0xff]
    %v441 = vld [vmem:[#allocation5 + $0xbf0] sm:$0xff]
    %v442 = vld [vmem:[#allocation5 + $0xbf8] sm:$0xff]
    %v443 = vld [vmem:[#allocation5 + $0xc00] sm:$0xff]
    %v444 = vld [vmem:[#allocation5 + $0xc08] sm:$0xff]
    %v445 = vld [vmem:[#allocation5 + $0xc10] sm:$0xff]
    %v446 = vld [vmem:[#allocation5 + $0xc18] sm:$0xff]
    %v447 = vld [vmem:[#allocation5 + $0xc20] sm:$0xff]
    %v448 = vld [vmem:[#allocation5 + $0xc28] sm:$0xff]
    %v449 = vld [vmem:[#allocation5 + $0xc30] sm:$0xff]
    %v450 = vld [vmem:[#allocation5 + $0xc38] sm:$0xff]
    %v451 = vld [vmem:[#allocation5 + $0xc40] sm:$0xff]
    %v452 = vld [vmem:[#allocation5 + $0xc48] sm:$0xff]
    %v453 = vld [vmem:[#allocation5 + $0xc50] sm:$0xff]
    %v454 = vld [vmem:[#allocation5 + $0xc58] sm:$0xff]
    %v455 = vld [vmem:[#allocation5 + $0xc60] sm:$0xff]
    %v456 = vld [vmem:[#allocation5 + $0xc68] sm:$0xff]
    %v457 = vld [vmem:[#allocation5 + $0xc70] sm:$0xff]
    %v458 = vld [vmem:[#allocation5 + $0xc78] sm:$0xff]
    %v459 = vld [vmem:[#allocation5 + $0xc80] sm:$0xff]
    %v460 = vld [vmem:[#allocation5 + $0xc88] sm:$0xff]
    %v461 = vld [vmem:[#allocation5 + $0xc90] sm:$0xff]
    %v462 = vld [vmem:[#allocation5 + $0xc98] sm:$0xff]
    %v463 = vld [vmem:[#allocation5 + $0xca0] sm:$0xff]
    %v464 = vld [vmem:[#allocation5 + $0xca8] sm:$0xff]
    %v465 = vld [vmem:[#allocation5 + $0xcb0] sm:$0xff]
    %v466 = vld [vmem:[#allocation5 + $0xcb8] sm:$0xff]
    %v467 = vld [vmem:[#allocation5 + $0xcc0] sm:$0xff]
    %v468 = vld [vmem:[#allocation5 + $0xcc8] sm:$0xff]
    %v469 = vld [vmem:[#allocation5 + $0xcd0] sm:$0xff]
    %v470 = vld [vmem:[#allocation5 + $0xcd8] sm:$0xff]
    %v471 = vld [vmem:[#allocation5 + $0xce0] sm:$0xff]
    %v472 = vld [vmem:[#allocation5 + $0xce8] sm:$0xff]
    %v473 = vld [vmem:[#allocation5 + $0xcf0] sm:$0xff]
    %v474 = vld [vmem:[#allocation5 + $0xcf8] sm:$0xff]
    %v475 = vld [vmem:[#allocation5 + $0xd00] sm:$0xff]
    %v476 = vld [vmem:[#allocation5 + $0xd08] sm:$0xff]
    %v477 = vld [vmem:[#allocation5 + $0xd10] sm:$0xff]
    %v478 = vld [vmem:[#allocation5 + $0xd18] sm:$0xff]
    %v479 = vld [vmem:[#allocation5 + $0xd20] sm:$0xff]
    %v480 = vld [vmem:[#allocation5 + $0xd28] sm:$0xff]
    %v481 = vld [vmem:[#allocation5 + $0xd30] sm:$0xff]
    %v482 = vld [vmem:[#allocation5 + $0xd38] sm:$0xff]
    %v483 = vld [vmem:[#allocation5 + $0xd40] sm:$0xff]
    %v484 = vld [vmem:[#allocation5 + $0xd48] sm:$0xff]
    %v485 = vld [vmem:[#allocation5 + $0xd50] sm:$0xff]
    %v486 = vld [vmem:[#allocation5 + $0xd58] sm:$0xff]
    %v487 = vld [vmem:[#allocation5 + $0xd60] sm:$0xff]
    %v488 = vld [vmem:[#allocation5 + $0xd68] sm:$0xff]
    %v489 = vld [vmem:[#allocation5 + $0xd70] sm:$0xff]
    %v490 = vld [vmem:[#allocation5 + $0xd78] sm:$0xff]
    %v491 = vld [vmem:[#allocation5 + $0xd80] sm:$0xff]
    %v492 = vld [vmem:[#allocation5 + $0xd88] sm:$0xff]
    %v493 = vld [vmem:[#allocation5 + $0xd90] sm:$0xff]
    %v494 = vld [vmem:[#allocation5 + $0xd98] sm:$0xff]
    %v495 = vld [vmem:[#allocation5 + $0xda0] sm:$0xff]
    %v496 = vld [vmem:[#allocation5 + $0xda8] sm:$0xff]
    %v497 = vld [vmem:[#allocation5 + $0xdb0] sm:$0xff]
    %v498 = vld [vmem:[#allocation5 + $0xdb8] sm:$0xff]
    %v499 = vld [vmem:[#allocation5 + $0xdc0] sm:$0xff]
    %v500 = vld [vmem:[#allocation5 + $0xdc8] sm:$0xff]
    %v501 = vld [vmem:[#allocation5 + $0xdd0] sm:$0xff]
    %v502 = vld [vmem:[#allocation5 + $0xdd8] sm:$0xff]
    %v503 = vld [vmem:[#allocation5 + $0xde0] sm:$0xff]
    %v504 = vld [vmem:[#allocation5 + $0xde8] sm:$0xff]
    %v505 = vld [vmem:[#allocation5 + $0xdf0] sm:$0xff]
    %v506 = vld [vmem:[#allocation5 + $0xdf8] sm:$0xff]
    %v507 = vld [vmem:[#allocation5 + $0xe00] sm:$0xff]
    %v508 = vld [vmem:[#allocation5 + $0xe08] sm:$0xff]
    %v509 = vld [vmem:[#allocation5 + $0xe10] sm:$0xff]
    %v510 = vld [vmem:[#allocation5 + $0xe18] sm:$0xff]
    %v511 = vld [vmem:[#allocation5 + $0xe20] sm:$0xff]
    %v512 = vld [vmem:[#allocation5 + $0xe28] sm:$0xff]
    %v513 = vld [vmem:[#allocation5 + $0xe30] sm:$0xff]
    %v514 = vld [vmem:[#allocation5 + $0xe38] sm:$0xff]
    %v515 = vld [vmem:[#allocation5 + $0xe40] sm:$0xff]
    %v516 = vld [vmem:[#allocation5 + $0xe48] sm:$0xff]
    %v517 = vld [vmem:[#allocation5 + $0xe50] sm:$0xff]
    %v518 = vld [vmem:[#allocation5 + $0xe58] sm:$0xff]
    %v519 = vld [vmem:[#allocation5 + $0xe60] sm:$0xff]
    %v520 = vld [vmem:[#allocation5 + $0xe68] sm:$0xff]
    %v521 = vld [vmem:[#allocation5 + $0xe70] sm:$0xff]
    %v522 = vld [vmem:[#allocation5 + $0xe78] sm:$0xff]
    %v523 = vld [vmem:[#allocation5 + $0xe80] sm:$0xff]
    %v524 = vld [vmem:[#allocation5 + $0xe88] sm:$0xff]
    %v525 = vld [vmem:[#allocation5 + $0xe90] sm:$0xff]
    %v526 = vld [vmem:[#allocation5 + $0xe98] sm:$0xff]
    %v527 = vld [vmem:[#allocation5 + $0xea0] sm:$0xff]
    %v528 = vld [vmem:[#allocation5 + $0xea8] sm:$0xff]
    %v529 = vld [vmem:[#allocation5 + $0xeb0] sm:$0xff]
    %v530 = vld [vmem:[#allocation5 + $0xeb8] sm:$0xff]
    %v531 = vld [vmem:[#allocation5 + $0xec0] sm:$0xff]
    %v532 = vld [vmem:[#allocation5 + $0xec8] sm:$0xff]
    %v533 = vld [vmem:[#allocation5 + $0xed0] sm:$0xff]
    %v534 = vld [vmem:[#allocation5 + $0xed8] sm:$0xff]
    %v535 = vld [vmem:[#allocation5 + $0xee0] sm:$0xff]
    %v536 = vld [vmem:[#allocation5 + $0xee8] sm:$0xff]
    %v537 = vld [vmem:[#allocation5 + $0xef0] sm:$0xff]
    %v538 = vld [vmem:[#allocation5 + $0xef8] sm:$0xff]
    %v539 = vld [vmem:[#allocation5 + $0xf00] sm:$0xff]
    %v540 = vld [vmem:[#allocation5 + $0xf08] sm:$0xff]
    %v541 = vld [vmem:[#allocation5 + $0xf10] sm:$0xff]
    %v542 = vld [vmem:[#allocation5 + $0xf18] sm:$0xff]
    %v543 = vld [vmem:[#allocation5 + $0xf20] sm:$0xff]
    %v544 = vld [vmem:[#allocation5 + $0xf28] sm:$0xff]
    %v545 = vld [vmem:[#allocation5 + $0xf30] sm:$0xff]
    %v546 = vld [vmem:[#allocation5 + $0xf38] sm:$0xff]
    %v547 = vld [vmem:[#allocation5 + $0xf40] sm:$0xff]
    %v548 = vld [vmem:[#allocation5 + $0xf48] sm:$0xff]
    %v549 = vld [vmem:[#allocation5 + $0xf50] sm:$0xff]
    %v550 = vld [vmem:[#allocation5 + $0xf58] sm:$0xff]
    %v551 = vld [vmem:[#allocation5 + $0xf60] sm:$0xff]
    %v552 = vld [vmem:[#allocation5 + $0xf68] sm:$0xff]
    %v553 = vld [vmem:[#allocation5 + $0xf70] sm:$0xff]
    %v554 = vld [vmem:[#allocation5 + $0xf78] sm:$0xff]
    %v555 = vld [vmem:[#allocation5 + $0xf80] sm:$0xff]
    %v556 = vld [vmem:[#allocation5 + $0xf88] sm:$0xff]
    %v557 = vld [vmem:[#allocation5 + $0xf90] sm:$0xff]
    %v558 = vld [vmem:[#allocation5 + $0xf98] sm:$0xff]
    %v559 = vld [vmem:[#allocation5 + $0xfa0] sm:$0xff]
    %v560 = vld [vmem:[#allocation5 + $0xfa8] sm:$0xff]
    %v561 = vld [vmem:[#allocation5 + $0xfb0] sm:$0xff]
    %v562 = vld [vmem:[#allocation5 + $0xfb8] sm:$0xff]
    %v563 = vld [vmem:[#allocation5 + $0xfc0] sm:$0xff]
    %v564 = vld [vmem:[#allocation5 + $0xfc8] sm:$0xff]
    %v565 = vld [vmem:[#allocation5 + $0xfd0] sm:$0xff]
    %v566 = vld [vmem:[#allocation5 + $0xfd8] sm:$0xff]
    %v567 = vld [vmem:[#allocation5 + $0xfe0] sm:$0xff]
    %v568 = vld [vmem:[#allocation5 + $0xfe8] sm:$0xff]
    %v569 = vld [vmem:[#allocation5 + $0xff0] sm:$0xff]
    %v570 = vld [vmem:[#allocation5 + $0xff8] sm:$0xff]
    %v571 = vld [vmem:[#allocation5 + $0x1000] sm:$0xff]
    %v572 = vld [vmem:[#allocation5 + $0x1008] sm:$0xff]
    %v573 = vld [vmem:[#allocation5 + $0x1010] sm:$0xff]
    %v574 = vld [vmem:[#allocation5 + $0x1018] sm:$0xff]
    %v575 = vld [vmem:[#allocation5 + $0x1020] sm:$0xff]
    %v576 = vld [vmem:[#allocation5 + $0x1028] sm:$0xff]
    %v577 = vld [vmem:[#allocation5 + $0x1030] sm:$0xff]
    %v578 = vld [vmem:[#allocation5 + $0x1038] sm:$0xff]
    %v579 = vld [vmem:[#allocation5 + $0x1040] sm:$0xff]
    %v580 = vld [vmem:[#allocation5 + $0x1048] sm:$0xff]
    %v581 = vld [vmem:[#allocation5 + $0x1050] sm:$0xff]
    %v582 = vld [vmem:[#allocation5 + $0x1058] sm:$0xff]
    %v583 = vld [vmem:[#allocation5 + $0x1060] sm:$0xff]
    %v584 = vld [vmem:[#allocation5 + $0x1068] sm:$0xff]
    %v585 = vld [vmem:[#allocation5 + $0x1070] sm:$0xff]
    %v586 = vld [vmem:[#allocation5 + $0x1078] sm:$0xff]
    %v587 = vld [vmem:[#allocation5 + $0x1080] sm:$0xff]
    %v588 = vld [vmem:[#allocation5 + $0x1088] sm:$0xff]
    %v589 = vld [vmem:[#allocation5 + $0x1090] sm:$0xff]
    %v590 = vld [vmem:[#allocation5 + $0x1098] sm:$0xff]
    %v591 = vld [vmem:[#allocation5 + $0x10a0] sm:$0xff]
    %v592 = vld [vmem:[#allocation5 + $0x10a8] sm:$0xff]
    %v593 = vld [vmem:[#allocation5 + $0x10b0] sm:$0xff]
    %v594 = vld [vmem:[#allocation5 + $0x10b8] sm:$0xff]
    %v595 = vld [vmem:[#allocation5 + $0x10c0] sm:$0xff]
    %v596 = vld [vmem:[#allocation5 + $0x10c8] sm:$0xff]
    %v597 = vld [vmem:[#allocation5 + $0x10d0] sm:$0xff]
    %v598 = vld [vmem:[#allocation5 + $0x10d8] sm:$0xff]
    %v599 = vld [vmem:[#allocation5 + $0x10e0] sm:$0xff]
    %v600 = vld [vmem:[#allocation5 + $0x10e8] sm:$0xff]
    %v601 = vld [vmem:[#allocation5 + $0x10f0] sm:$0xff]
    %v602 = vld [vmem:[#allocation5 + $0x10f8] sm:$0xff]
    %v603 = vld [vmem:[#allocation5 + $0x1100] sm:$0xff]
    %v604 = vld [vmem:[#allocation5 + $0x1108] sm:$0xff]
    %v605 = vld [vmem:[#allocation5 + $0x1110] sm:$0xff]
    %v606 = vld [vmem:[#allocation5 + $0x1118] sm:$0xff]
    %v607 = vld [vmem:[#allocation5 + $0x1120] sm:$0xff]
    %v608 = vld [vmem:[#allocation5 + $0x1128] sm:$0xff]
    %v609 = vld [vmem:[#allocation5 + $0x1130] sm:$0xff]
    %v610 = vld [vmem:[#allocation5 + $0x1138] sm:$0xff]
    %v611 = vld [vmem:[#allocation5 + $0x1140] sm:$0xff]
    %v612 = vld [vmem:[#allocation5 + $0x1148] sm:$0xff]
    %v613 = vld [vmem:[#allocation5 + $0x1150] sm:$0xff]
    %v614 = vld [vmem:[#allocation5 + $0x1158] sm:$0xff]
    %v615 = vld [vmem:[#allocation5 + $0x1160] sm:$0xff]
    %v616 = vld [vmem:[#allocation5 + $0x1168] sm:$0xff]
    %v617 = vld [vmem:[#allocation5 + $0x1170] sm:$0xff]
    %v618 = vld [vmem:[#allocation5 + $0x1178] sm:$0xff]
    %v619 = vld [vmem:[#allocation5 + $0x1180] sm:$0xff]
    %v620 = vld [vmem:[#allocation5 + $0x1188] sm:$0xff]
    %v621 = vld [vmem:[#allocation5 + $0x1190] sm:$0xff]
    %v622 = vld [vmem:[#allocation5 + $0x1198] sm:$0xff]
    %v623 = vld [vmem:[#allocation5 + $0x11a0] sm:$0xff]
    %v624 = vld [vmem:[#allocation5 + $0x11a8] sm:$0xff]
    %v625 = vld [vmem:[#allocation5 + $0x11b0] sm:$0xff]
    %v626 = vld [vmem:[#allocation5 + $0x11b8] sm:$0xff]
    %v627 = vld [vmem:[#allocation5 + $0x11c0] sm:$0xff]
    %v628 = vld [vmem:[#allocation5 + $0x11c8] sm:$0xff]
    %v629 = vld [vmem:[#allocation5 + $0x11d0] sm:$0xff]
    %v630 = vld [vmem:[#allocation5 + $0x11d8] sm:$0xff]
    %v631 = vld [vmem:[#allocation5 + $0x11e0] sm:$0xff]
    %v632 = vld [vmem:[#allocation5 + $0x11e8] sm:$0xff]
    %v633 = vld [vmem:[#allocation5 + $0x11f0] sm:$0xff]
    %v634 = vld [vmem:[#allocation5 + $0x11f8] sm:$0xff]
    %v635 = vld [vmem:[#allocation5 + $0x1200] sm:$0xff]
    %v636 = vld [vmem:[#allocation5 + $0x1208] sm:$0xff]
    %v637 = vld [vmem:[#allocation5 + $0x1210] sm:$0xff]
    %v638 = vld [vmem:[#allocation5 + $0x1218] sm:$0xff]
    %v639 = vld [vmem:[#allocation5 + $0x1220] sm:$0xff]
    %v640 = vld [vmem:[#allocation5 + $0x1228] sm:$0xff]
    %v641 = vld [vmem:[#allocation5 + $0x1230] sm:$0xff]
    %v642 = vld [vmem:[#allocation5 + $0x1238] sm:$0xff]
    %v643 = vld [vmem:[#allocation5 + $0x1240] sm:$0xff]
    %v644 = vld [vmem:[#allocation5 + $0x1248] sm:$0xff]
    %v645 = vld [vmem:[#allocation5 + $0x1250] sm:$0xff]
    %v646 = vld [vmem:[#allocation5 + $0x1258] sm:$0xff]
    %v647 = vld [vmem:[#allocation5 + $0x1260] sm:$0xff]
    %v648 = vld [vmem:[#allocation5 + $0x1268] sm:$0xff]
    %v649 = vld [vmem:[#allocation5 + $0x1270] sm:$0xff]
    %v650 = vld [vmem:[#allocation5 + $0x1278] sm:$0xff]
    %v651 = vld [vmem:[#allocation5 + $0x1280] sm:$0xff]
    %v652 = vld [vmem:[#allocation5 + $0x1288] sm:$0xff]
    %v653 = vld [vmem:[#allocation5 + $0x1290] sm:$0xff]
    %v654 = vld [vmem:[#allocation5 + $0x1298] sm:$0xff]
    %v655 = vld [vmem:[#allocation5 + $0x12a0] sm:$0xff]
    %v656 = vld [vmem:[#allocation5 + $0x12a8] sm:$0xff]
    %v657 = vld [vmem:[#allocation5 + $0x12b0] sm:$0xff]
    %v658 = vld [vmem:[#allocation5 + $0x12b8] sm:$0xff]
    %v659 = vld [vmem:[#allocation5 + $0x12c0] sm:$0xff]
    %v660 = vld [vmem:[#allocation5 + $0x12c8] sm:$0xff]
    %v661 = vld [vmem:[#allocation5 + $0x12d0] sm:$0xff]
    %v662 = vld [vmem:[#allocation5 + $0x12d8] sm:$0xff]
    %v663 = vld [vmem:[#allocation5 + $0x12e0] sm:$0xff]
    %v664 = vld [vmem:[#allocation5 + $0x12e8] sm:$0xff]
    %v665 = vld [vmem:[#allocation5 + $0x12f0] sm:$0xff]
    %v666 = vld [vmem:[#allocation5 + $0x12f8] sm:$0xff]
    %v667 = vld [vmem:[#allocation5 + $0x1300] sm:$0xff]
    %v668 = vld [vmem:[#allocation5 + $0x1308] sm:$0xff]
    %v669 = vld [vmem:[#allocation5 + $0x1310] sm:$0xff]
    %v670 = vld [vmem:[#allocation5 + $0x1318] sm:$0xff]
    %v671 = vld [vmem:[#allocation5 + $0x1320] sm:$0xff]
    %v672 = vld [vmem:[#allocation5 + $0x1328] sm:$0xff]
    %v673 = vld [vmem:[#allocation5 + $0x1330] sm:$0xff]
    %v674 = vld [vmem:[#allocation5 + $0x1338] sm:$0xff]
    %v675 = vld [vmem:[#allocation5 + $0x1340] sm:$0xff]
    %v676 = vld [vmem:[#allocation5 + $0x1348] sm:$0xff]
    %v677 = vld [vmem:[#allocation5 + $0x1350] sm:$0xff]
    %v678 = vld [vmem:[#allocation5 + $0x1358] sm:$0xff]
    %v679 = vld [vmem:[#allocation5 + $0x1360] sm:$0xff]
    %v680 = vld [vmem:[#allocation5 + $0x1368] sm:$0xff]
    %v681 = vld [vmem:[#allocation5 + $0x1370] sm:$0xff]
    %v682 = vld [vmem:[#allocation5 + $0x1378] sm:$0xff]
    %v683 = vld [vmem:[#allocation5 + $0x1380] sm:$0xff]
    %v684 = vld [vmem:[#allocation5 + $0x1388] sm:$0xff]
    %v685 = vld [vmem:[#allocation5 + $0x1390] sm:$0xff]
    %v686 = vld [vmem:[#allocation5 + $0x1398] sm:$0xff]
    %v687 = vld [vmem:[#allocation5 + $0x13a0] sm:$0xff]
    %v688 = vld [vmem:[#allocation5 + $0x13a8] sm:$0xff]
    %v689 = vld [vmem:[#allocation5 + $0x13b0] sm:$0xff]
    %v690 = vld [vmem:[#allocation5 + $0x13b8] sm:$0xff]
    %v691 = vld [vmem:[#allocation5 + $0x13c0] sm:$0xff]
    %v692 = vld [vmem:[#allocation5 + $0x13c8] sm:$0xff]
    %v693 = vld [vmem:[#allocation5 + $0x13d0] sm:$0xff]
    %v694 = vld [vmem:[#allocation5 + $0x13d8] sm:$0xff]
    %v695 = vld [vmem:[#allocation5 + $0x13e0] sm:$0xff]
    %v696 = vld [vmem:[#allocation5 + $0x13e8] sm:$0xff]
    %v697 = vld [vmem:[#allocation5 + $0x13f0] sm:$0xff]
    %v698 = vld [vmem:[#allocation5 + $0x13f8] sm:$0xff]
    %v699 = vld [vmem:[#allocation5 + $0x1400] sm:$0xff]
    %v700 = vld [vmem:[#allocation5 + $0x1408] sm:$0xff]
    %v701 = vld [vmem:[#allocation5 + $0x1410] sm:$0xff]
    %v702 = vld [vmem:[#allocation5 + $0x1418] sm:$0xff]
    %v703 = vld [vmem:[#allocation5 + $0x1420] sm:$0xff]
    %v704 = vld [vmem:[#allocation5 + $0x1428] sm:$0xff]
    %v705 = vld [vmem:[#allocation5 + $0x1430] sm:$0xff]
    %v706 = vld [vmem:[#allocation5 + $0x1438] sm:$0xff]
    %v707 = vld [vmem:[#allocation5 + $0x1440] sm:$0xff]
    %v708 = vld [vmem:[#allocation5 + $0x1448] sm:$0xff]
    %v709 = vld [vmem:[#allocation5 + $0x1450] sm:$0xff]
    %v710 = vld [vmem:[#allocation5 + $0x1458] sm:$0xff]
    %v711 = vld [vmem:[#allocation5 + $0x1460] sm:$0xff]
    %v712 = vld [vmem:[#allocation5 + $0x1468] sm:$0xff]
    %v713 = vld [vmem:[#allocation5 + $0x1470] sm:$0xff]
    %v714 = vld [vmem:[#allocation5 + $0x1478] sm:$0xff]
    %v715 = vld [vmem:[#allocation5 + $0x1480] sm:$0xff]
    %v716 = vld [vmem:[#allocation5 + $0x1488] sm:$0xff]
    %v717 = vld [vmem:[#allocation5 + $0x1490] sm:$0xff]
    %v718 = vld [vmem:[#allocation5 + $0x1498] sm:$0xff]
    %v719 = vld [vmem:[#allocation5 + $0x14a0] sm:$0xff]
    %v720 = vld [vmem:[#allocation5 + $0x14a8] sm:$0xff]
    %v721 = vld [vmem:[#allocation5 + $0x14b0] sm:$0xff]
    %v722 = vld [vmem:[#allocation5 + $0x14b8] sm:$0xff]
    %v723 = vld [vmem:[#allocation5 + $0x14c0] sm:$0xff]
    %v724 = vld [vmem:[#allocation5 + $0x14c8] sm:$0xff]
    %v725 = vld [vmem:[#allocation5 + $0x14d0] sm:$0xff]
    %v726 = vld [vmem:[#allocation5 + $0x14d8] sm:$0xff]
    %v727 = vld [vmem:[#allocation5 + $0x14e0] sm:$0xff]
    %v728 = vld [vmem:[#allocation5 + $0x14e8] sm:$0xff]
    %v729 = vld [vmem:[#allocation5 + $0x14f0] sm:$0xff]
    %v730 = vld [vmem:[#allocation5 + $0x14f8] sm:$0xff]
    %v731 = vld [vmem:[#allocation5 + $0x1500] sm:$0xff]
    %v732 = vld [vmem:[#allocation5 + $0x1508] sm:$0xff]
    %v733 = vld [vmem:[#allocation5 + $0x1510] sm:$0xff]
    %v734 = vld [vmem:[#allocation5 + $0x1518] sm:$0xff]
    %v735 = vld [vmem:[#allocation5 + $0x1520] sm:$0xff]
    %v736 = vld [vmem:[#allocation5 + $0x1528] sm:$0xff]
    %v737 = vld [vmem:[#allocation5 + $0x1530] sm:$0xff]
    %v738 = vld [vmem:[#allocation5 + $0x1538] sm:$0xff]
    %v739 = vld [vmem:[#allocation5 + $0x1540] sm:$0xff]
    %v740 = vld [vmem:[#allocation5 + $0x1548] sm:$0xff]
    %v741 = vld [vmem:[#allocation5 + $0x1550] sm:$0xff]
    %v742 = vld [vmem:[#allocation5 + $0x1558] sm:$0xff]
    %v743 = vld [vmem:[#allocation5 + $0x1560] sm:$0xff]
    %v744 = vld [vmem:[#allocation5 + $0x1568] sm:$0xff]
    %v745 = vld [vmem:[#allocation5 + $0x1570] sm:$0xff]
    %v746 = vld [vmem:[#allocation5 + $0x1578] sm:$0xff]
    %v747 = vld [vmem:[#allocation5 + $0x1580] sm:$0xff]
    %v748 = vld [vmem:[#allocation5 + $0x1588] sm:$0xff]
    %v749 = vld [vmem:[#allocation5 + $0x1590] sm:$0xff]
    %v750 = vld [vmem:[#allocation5 + $0x1598] sm:$0xff]
    %v751 = vld [vmem:[#allocation5 + $0x15a0] sm:$0xff]
    %v752 = vld [vmem:[#allocation5 + $0x15a8] sm:$0xff]
    %v753 = vld [vmem:[#allocation5 + $0x15b0] sm:$0xff]
    %v754 = vld [vmem:[#allocation5 + $0x15b8] sm:$0xff]
    %v755 = vld [vmem:[#allocation5 + $0x15c0] sm:$0xff]
    %v756 = vld [vmem:[#allocation5 + $0x15c8] sm:$0xff]
    %v757 = vld [vmem:[#allocation5 + $0x15d0] sm:$0xff]
    %v758 = vld [vmem:[#allocation5 + $0x15d8] sm:$0xff]
    %v759 = vld [vmem:[#allocation5 + $0x15e0] sm:$0xff]
    %v760 = vld [vmem:[#allocation5 + $0x15e8] sm:$0xff]
    %v761 = vld [vmem:[#allocation5 + $0x15f0] sm:$0xff]
    %v762 = vld [vmem:[#allocation5 + $0x15f8] sm:$0xff]
    %v763 = vld [vmem:[#allocation5 + $0x1600] sm:$0xff]
    %v764 = vld [vmem:[#allocation5 + $0x1608] sm:$0xff]
    %v765 = vld [vmem:[#allocation5 + $0x1610] sm:$0xff]
    %v766 = vld [vmem:[#allocation5 + $0x1618] sm:$0xff]
    %v767 = vld [vmem:[#allocation5 + $0x1620] sm:$0xff]
    %v768 = vld [vmem:[#allocation5 + $0x1628] sm:$0xff]
    %v769 = vld [vmem:[#allocation5 + $0x1630] sm:$0xff]
    %v770 = vld [vmem:[#allocation5 + $0x1638] sm:$0xff]
    %v771 = vld [vmem:[#allocation5 + $0x1640] sm:$0xff]
    %v772 = vld [vmem:[#allocation5 + $0x1648] sm:$0xff]
    %v773 = vld [vmem:[#allocation5 + $0x1650] sm:$0xff]
    %v774 = vld [vmem:[#allocation5 + $0x1658] sm:$0xff]
    %v775 = vld [vmem:[#allocation5 + $0x1660] sm:$0xff]
    %v776 = vld [vmem:[#allocation5 + $0x1668] sm:$0xff]
    %v777 = vld [vmem:[#allocation5 + $0x1670] sm:$0xff]
    %v778 = vld [vmem:[#allocation5 + $0x1678] sm:$0xff]
    %v779 = vld [vmem:[#allocation5 + $0x1680] sm:$0xff]
    %v780 = vld [vmem:[#allocation5 + $0x1688] sm:$0xff]
    %v781 = vld [vmem:[#allocation5 + $0x1690] sm:$0xff]
    %v782 = vld [vmem:[#allocation5 + $0x1698] sm:$0xff]
    %v783 = vld [vmem:[#allocation5 + $0x16a0] sm:$0xff]
    %v784 = vld [vmem:[#allocation5 + $0x16a8] sm:$0xff]
    %v785 = vld [vmem:[#allocation5 + $0x16b0] sm:$0xff]
    %v786 = vld [vmem:[#allocation5 + $0x16b8] sm:$0xff]
    %v787 = vld [vmem:[#allocation5 + $0x16c0] sm:$0xff]
    %v788 = vld [vmem:[#allocation5 + $0x16c8] sm:$0xff]
    %v789 = vld [vmem:[#allocation5 + $0x16d0] sm:$0xff]
    %v790 = vld [vmem:[#allocation5 + $0x16d8] sm:$0xff]
    %v791 = vld [vmem:[#allocation5 + $0x16e0] sm:$0xff]
    %v792 = vld [vmem:[#allocation5 + $0x16e8] sm:$0xff]
    %v793 = vld [vmem:[#allocation5 + $0x16f0] sm:$0xff]
    %v794 = vld [vmem:[#allocation5 + $0x16f8] sm:$0xff]
    %v795 = vld [vmem:[#allocation5 + $0x1700] sm:$0xff]
    %v796 = vld [vmem:[#allocation5 + $0x1708] sm:$0xff]
    %v797 = vld [vmem:[#allocation5 + $0x1710] sm:$0xff]
    %v798 = vld [vmem:[#allocation5 + $0x1718] sm:$0xff]
    %v799 = vld [vmem:[#allocation5 + $0x1720] sm:$0xff]
    %v800 = vld [vmem:[#allocation5 + $0x1728] sm:$0xff]
    %v801 = vld [vmem:[#allocation5 + $0x1730] sm:$0xff]
    %v802 = vld [vmem:[#allocation5 + $0x1738] sm:$0xff]
    %v803 = vld [vmem:[#allocation5 + $0x1740] sm:$0xff]
    %v804 = vld [vmem:[#allocation5 + $0x1748] sm:$0xff]
    %v805 = vld [vmem:[#allocation5 + $0x1750] sm:$0xff]
    %v806 = vld [vmem:[#allocation5 + $0x1758] sm:$0xff]
    %v807 = vld [vmem:[#allocation5 + $0x1760] sm:$0xff]
    %v808 = vld [vmem:[#allocation5 + $0x1768] sm:$0xff]
    %v809 = vld [vmem:[#allocation5 + $0x1770] sm:$0xff]
    %v810 = vld [vmem:[#allocation5 + $0x1778] sm:$0xff]
    %v811 = vld [vmem:[#allocation5 + $0x1780] sm:$0xff]
    %v812 = vld [vmem:[#allocation5 + $0x1788] sm:$0xff]
    %v813 = vld [vmem:[#allocation5 + $0x1790] sm:$0xff]
    %v814 = vld [vmem:[#allocation5 + $0x1798] sm:$0xff]
    %v815 = vld [vmem:[#allocation5 + $0x17a0] sm:$0xff]
    %v816 = vld [vmem:[#allocation5 + $0x17a8] sm:$0xff]
    %v817 = vld [vmem:[#allocation5 + $0x17b0] sm:$0xff]
    %v818 = vld [vmem:[#allocation5 + $0x17b8] sm:$0xff]
    %v819 = vld [vmem:[#allocation5 + $0x17c0] sm:$0xff]
    %v820 = vld [vmem:[#allocation5 + $0x17c8] sm:$0xff]
    %v821 = vld [vmem:[#allocation5 + $0x17d0] sm:$0xff]
    %v822 = vld [vmem:[#allocation5 + $0x17d8] sm:$0xff]
    %v823 = vld [vmem:[#allocation5 + $0x17e0] sm:$0xff]
    %v824 = vld [vmem:[#allocation5 + $0x17e8] sm:$0xff]
    %v825 = vld [vmem:[#allocation5 + $0x17f0] sm:$0xff]
    %v826 = vld [vmem:[#allocation5 + $0x17f8] sm:$0xff]
    %v827 = vld [vmem:[#allocation7] sm:$0xff]
    %v828 = vld [vmem:[#allocation7 + $0x8] sm:$0xff]
    %v831 = vperm.slane %v827, 0
    %v832 = vperm.slane %v827, 1
    %v833 = vperm.slane %v827, 2
    %v834 = vperm.slane %v827, 3
    %v835 = vperm.slane %v827, 4
    %v836 = vperm.slane %v827, 5
    %v837 = vperm.slane %v827, 6
    %v838 = vperm.slane %v827, 7
    %v839 = vperm.slane %v828, 0
    %v840 = vperm.slane %v828, 1
    %v841 = vperm.slane %v828, 2
    %v842 = vperm.slane %v828, 3
    %v843 = vperm.slane %v828, 4
    %v844 = vperm.slane %v828, 5
    %v845 = vperm.slane %v828, 6
    %v846 = vperm.slane %v828, 7
    %864 = vst [vmem:[#allocation1] ss:$9 sm:$0xff] %v58
    %v865 = vld [vmem:[#allocation1] sm:$0xff]
    %v866 = vld [vmem:[#allocation1 + $0x9] sm:$0xff]
    %v867 = vld [vmem:[#allocation1 + $0x12] sm:$0xff]
    %v868 = vld [vmem:[#allocation1 + $0x1b] sm:$0xff]
    %v869 = vld [vmem:[#allocation1 + $0x24] sm:$0xff]
    %v870 = vld [vmem:[#allocation1 + $0x2d] sm:$0xff]
    %v1645 = vunpack.c.l.b16 %v59
    %v1646 = vunpack.c.h.b16 %v59
    %v1647 = vunpack.c.l.b16 %v60
    %v1648 = vunpack.c.h.b16 %v60
    %v1649 = vunpack.c.l.b16 %v61
    %v1650 = vunpack.c.h.b16 %v61
    %v1651 = vunpack.c.l.b16 %v62
    %v1652 = vunpack.c.h.b16 %v62
    %v1653 = vunpack.c.l.b16 %v63
    %v1654 = vunpack.c.h.b16 %v63
    %v1655 = vunpack.c.l.b16 %v64
    %v1656 = vunpack.c.h.b16 %v64
    %v1657 = vunpack.c.l.b16 %v65
    %v1658 = vunpack.c.h.b16 %v65
    %v1659 = vunpack.c.l.b16 %v66
    %v1660 = vunpack.c.h.b16 %v66
    %v1661 = vunpack.c.l.b16 %v67
    %v1662 = vunpack.c.h.b16 %v67
    %v1663 = vunpack.c.l.b16 %v68
    %v1664 = vunpack.c.h.b16 %v68
    %v1665 = vunpack.c.l.b16 %v69
    %v1666 = vunpack.c.h.b16 %v69
    %v1667 = vunpack.c.l.b16 %v70
    %v1668 = vunpack.c.h.b16 %v70
    %v1669 = vunpack.c.l.b16 %v71
    %v1670 = vunpack.c.h.b16 %v71
    %v1671 = vunpack.c.l.b16 %v72
    %v1672 = vunpack.c.h.b16 %v72
    %v1673 = vunpack.c.l.b16 %v73
    %v1674 = vunpack.c.h.b16 %v73
    %v1675 = vunpack.c.l.b16 %v74
    %v1676 = vunpack.c.h.b16 %v74
    %v1677 = vunpack.c.l.b16 %v75
    %v1678 = vunpack.c.h.b16 %v75
    %v1679 = vunpack.c.l.b16 %v76
    %v1680 = vunpack.c.h.b16 %v76
    %v1681 = vunpack.c.l.b16 %v77
    %v1682 = vunpack.c.h.b16 %v77
    %v1683 = vunpack.c.l.b16 %v78
    %v1684 = vunpack.c.h.b16 %v78
    %v1685 = vunpack.c.l.b16 %v79
    %v1686 = vunpack.c.h.b16 %v79
    %v1687 = vunpack.c.l.b16 %v80
    %v1688 = vunpack.c.h.b16 %v80
    %v1689 = vunpack.c.l.b16 %v81
    %v1690 = vunpack.c.h.b16 %v81
    %v1691 = vunpack.c.l.b16 %v82
    %v1692 = vunpack.c.h.b16 %v82
    %v1693 = vunpack.c.l.b16 %v83
    %v1694 = vunpack.c.h.b16 %v83
    %v1695 = vunpack.c.l.b16 %v84
    %v1696 = vunpack.c.h.b16 %v84
    %v1697 = vunpack.c.l.b16 %v85
    %v1698 = vunpack.c.h.b16 %v85
    %v1699 = vunpack.c.l.b16 %v86
    %v1700 = vunpack.c.h.b16 %v86
    %v1701 = vunpack.c.l.b16 %v87
    %v1702 = vunpack.c.h.b16 %v87
    %v1703 = vunpack.c.l.b16 %v88
    %v1704 = vunpack.c.h.b16 %v88
    %v1705 = vunpack.c.l.b16 %v89
    %v1706 = vunpack.c.h.b16 %v89
    %v1707 = vunpack.c.l.b16 %v90
    %v1708 = vunpack.c.h.b16 %v90
    %v1709 = vunpack.c.l.b16 %v91
    %v1710 = vunpack.c.h.b16 %v91
    %v1711 = vunpack.c.l.b16 %v92
    %v1712 = vunpack.c.h.b16 %v92
    %v1713 = vunpack.c.l.b16 %v93
    %v1714 = vunpack.c.h.b16 %v93
    %v1715 = vunpack.c.l.b16 %v94
    %v1716 = vunpack.c.h.b16 %v94
    %v1717 = vunpack.c.l.b16 %v95
    %v1718 = vunpack.c.h.b16 %v95
    %v1719 = vunpack.c.l.b16 %v96
    %v1720 = vunpack.c.h.b16 %v96
    %v1721 = vunpack.c.l.b16 %v97
    %v1722 = vunpack.c.h.b16 %v97
    %v1723 = vunpack.c.l.b16 %v98
    %v1724 = vunpack.c.h.b16 %v98
    %v1725 = vunpack.c.l.b16 %v99
    %v1726 = vunpack.c.h.b16 %v99
    %v1727 = vunpack.c.l.b16 %v100
    %v1728 = vunpack.c.h.b16 %v100
    %v1729 = vunpack.c.l.b16 %v101
    %v1730 = vunpack.c.h.b16 %v101
    %v1731 = vunpack.c.l.b16 %v102
    %v1732 = vunpack.c.h.b16 %v102
    %v1733 = vunpack.c.l.b16 %v103
    %v1734 = vunpack.c.h.b16 %v103
    %v1735 = vunpack.c.l.b16 %v104
    %v1736 = vunpack.c.h.b16 %v104
    %v1737 = vunpack.c.l.b16 %v105
    %v1738 = vunpack.c.h.b16 %v105
    %v1739 = vunpack.c.l.b16 %v106
    %v1740 = vunpack.c.h.b16 %v106
    %v1741 = vunpack.c.l.b16 %v107
    %v1742 = vunpack.c.h.b16 %v107
    %v1743 = vunpack.c.l.b16 %v108
    %v1744 = vunpack.c.h.b16 %v108
    %v1745 = vunpack.c.l.b16 %v109
    %v1746 = vunpack.c.h.b16 %v109
    %v1747 = vunpack.c.l.b16 %v110
    %v1748 = vunpack.c.h.b16 %v110
    %v1749 = vunpack.c.l.b16 %v111
    %v1750 = vunpack.c.h.b16 %v111
    %v1751 = vunpack.c.l.b16 %v112
    %v1752 = vunpack.c.h.b16 %v112
    %v1753 = vunpack.c.l.b16 %v113
    %v1754 = vunpack.c.h.b16 %v113
    %v1755 = vunpack.c.l.b16 %v114
    %v1756 = vunpack.c.h.b16 %v114
    %v1757 = vunpack.c.l.b16 %v115
    %v1758 = vunpack.c.h.b16 %v115
    %v1759 = vunpack.c.l.b16 %v116
    %v1760 = vunpack.c.h.b16 %v116
    %v1761 = vunpack.c.l.b16 %v117
    %v1762 = vunpack.c.h.b16 %v117
    %v1763 = vunpack.c.l.b16 %v118
    %v1764 = vunpack.c.h.b16 %v118
    %v1765 = vunpack.c.l.b16 %v119
    %v1766 = vunpack.c.h.b16 %v119
    %v1767 = vunpack.c.l.b16 %v120
    %v1768 = vunpack.c.h.b16 %v120
    %v1769 = vunpack.c.l.b16 %v121
    %v1770 = vunpack.c.h.b16 %v121
    %v1771 = vunpack.c.l.b16 %v122
    %v1772 = vunpack.c.h.b16 %v122
    %v1773 = vunpack.c.l.b16 %v123
    %v1774 = vunpack.c.h.b16 %v123
    %v1775 = vunpack.c.l.b16 %v124
    %v1776 = vunpack.c.h.b16 %v124
    %v1777 = vunpack.c.l.b16 %v125
    %v1778 = vunpack.c.h.b16 %v125
    %v1779 = vunpack.c.l.b16 %v126
    %v1780 = vunpack.c.h.b16 %v126
    %v1781 = vunpack.c.l.b16 %v127
    %v1782 = vunpack.c.h.b16 %v127
    %v1783 = vunpack.c.l.b16 %v128
    %v1784 = vunpack.c.h.b16 %v128
    %v1785 = vunpack.c.l.b16 %v129
    %v1786 = vunpack.c.h.b16 %v129
    %v1787 = vunpack.c.l.b16 %v130
    %v1788 = vunpack.c.h.b16 %v130
    %v1789 = vunpack.c.l.b16 %v131
    %v1790 = vunpack.c.h.b16 %v131
    %v1791 = vunpack.c.l.b16 %v132
    %v1792 = vunpack.c.h.b16 %v132
    %v1793 = vunpack.c.l.b16 %v133
    %v1794 = vunpack.c.h.b16 %v133
    %v1795 = vunpack.c.l.b16 %v134
    %v1796 = vunpack.c.h.b16 %v134
    %v1797 = vunpack.c.l.b16 %v135
    %v1798 = vunpack.c.h.b16 %v135
    %v1799 = vunpack.c.l.b16 %v136
    %v1800 = vunpack.c.h.b16 %v136
    %v1801 = vunpack.c.l.b16 %v137
    %v1802 = vunpack.c.h.b16 %v137
    %v1803 = vunpack.c.l.b16 %v138
    %v1804 = vunpack.c.h.b16 %v138
    %v1805 = vunpack.c.l.b16 %v139
    %v1806 = vunpack.c.h.b16 %v139
    %v1807 = vunpack.c.l.b16 %v140
    %v1808 = vunpack.c.h.b16 %v140
    %v1809 = vunpack.c.l.b16 %v141
    %v1810 = vunpack.c.h.b16 %v141
    %v1811 = vunpack.c.l.b16 %v142
    %v1812 = vunpack.c.h.b16 %v142
    %v1813 = vunpack.c.l.b16 %v143
    %v1814 = vunpack.c.h.b16 %v143
    %v1815 = vunpack.c.l.b16 %v144
    %v1816 = vunpack.c.h.b16 %v144
    %v1817 = vunpack.c.l.b16 %v145
    %v1818 = vunpack.c.h.b16 %v145
    %v1819 = vunpack.c.l.b16 %v146
    %v1820 = vunpack.c.h.b16 %v146
    %v1821 = vunpack.c.l.b16 %v147
    %v1822 = vunpack.c.h.b16 %v147
    %v1823 = vunpack.c.l.b16 %v148
    %v1824 = vunpack.c.h.b16 %v148
    %v1825 = vunpack.c.l.b16 %v149
    %v1826 = vunpack.c.h.b16 %v149
    %v1827 = vunpack.c.l.b16 %v150
    %v1828 = vunpack.c.h.b16 %v150
    %v1829 = vunpack.c.l.b16 %v151
    %v1830 = vunpack.c.h.b16 %v151
    %v1831 = vunpack.c.l.b16 %v152
    %v1832 = vunpack.c.h.b16 %v152
    %v1833 = vunpack.c.l.b16 %v153
    %v1834 = vunpack.c.h.b16 %v153
    %v1835 = vunpack.c.l.b16 %v154
    %v1836 = vunpack.c.h.b16 %v154
    %v1837 = vunpack.c.l.b16 %v155
    %v1838 = vunpack.c.h.b16 %v155
    %v1839 = vunpack.c.l.b16 %v156
    %v1840 = vunpack.c.h.b16 %v156
    %v1841 = vunpack.c.l.b16 %v157
    %v1842 = vunpack.c.h.b16 %v157
    %v1843 = vunpack.c.l.b16 %v158
    %v1844 = vunpack.c.h.b16 %v158
    %v1845 = vunpack.c.l.b16 %v159
    %v1846 = vunpack.c.h.b16 %v159
    %v1847 = vunpack.c.l.b16 %v160
    %v1848 = vunpack.c.h.b16 %v160
    %v1849 = vunpack.c.l.b16 %v161
    %v1850 = vunpack.c.h.b16 %v161
    %v1851 = vunpack.c.l.b16 %v162
    %v1852 = vunpack.c.h.b16 %v162
    %v1853 = vunpack.c.l.b16 %v163
    %v1854 = vunpack.c.h.b16 %v163
    %v1855 = vunpack.c.l.b16 %v164
    %v1856 = vunpack.c.h.b16 %v164
    %v1857 = vunpack.c.l.b16 %v165
    %v1858 = vunpack.c.h.b16 %v165
    %v1859 = vunpack.c.l.b16 %v166
    %v1860 = vunpack.c.h.b16 %v166
    %v1861 = vunpack.c.l.b16 %v167
    %v1862 = vunpack.c.h.b16 %v167
    %v1863 = vunpack.c.l.b16 %v168
    %v1864 = vunpack.c.h.b16 %v168
    %v1865 = vunpack.c.l.b16 %v169
    %v1866 = vunpack.c.h.b16 %v169
    %v1867 = vunpack.c.l.b16 %v170
    %v1868 = vunpack.c.h.b16 %v170
    %v1869 = vunpack.c.l.b16 %v171
    %v1870 = vunpack.c.h.b16 %v171
    %v1871 = vunpack.c.l.b16 %v172
    %v1872 = vunpack.c.h.b16 %v172
    %v1873 = vunpack.c.l.b16 %v173
    %v1874 = vunpack.c.h.b16 %v173
    %v1875 = vunpack.c.l.b16 %v174
    %v1876 = vunpack.c.h.b16 %v174
    %v1877 = vunpack.c.l.b16 %v175
    %v1878 = vunpack.c.h.b16 %v175
    %v1879 = vunpack.c.l.b16 %v176
    %v1880 = vunpack.c.h.b16 %v176
    %v1881 = vunpack.c.l.b16 %v177
    %v1882 = vunpack.c.h.b16 %v177
    %v1883 = vunpack.c.l.b16 %v178
    %v1884 = vunpack.c.h.b16 %v178
    %v1885 = vunpack.c.l.b16 %v179
    %v1886 = vunpack.c.h.b16 %v179
    %v1887 = vunpack.c.l.b16 %v180
    %v1888 = vunpack.c.h.b16 %v180
    %v1889 = vunpack.c.l.b16 %v181
    %v1890 = vunpack.c.h.b16 %v181
    %v1891 = vunpack.c.l.b16 %v182
    %v1892 = vunpack.c.h.b16 %v182
    %v1893 = vunpack.c.l.b16 %v183
    %v1894 = vunpack.c.h.b16 %v183
    %v1895 = vunpack.c.l.b16 %v184
    %v1896 = vunpack.c.h.b16 %v184
    %v1897 = vunpack.c.l.b16 %v185
    %v1898 = vunpack.c.h.b16 %v185
    %v1899 = vunpack.c.l.b16 %v186
    %v1900 = vunpack.c.h.b16 %v186
    %v1901 = vunpack.c.l.b16 %v187
    %v1902 = vunpack.c.h.b16 %v187
    %v1903 = vunpack.c.l.b16 %v188
    %v1904 = vunpack.c.h.b16 %v188
    %v1905 = vunpack.c.l.b16 %v189
    %v1906 = vunpack.c.h.b16 %v189
    %v1907 = vunpack.c.l.b16 %v190
    %v1908 = vunpack.c.h.b16 %v190
    %v1909 = vunpack.c.l.b16 %v191
    %v1910 = vunpack.c.h.b16 %v191
    %v1911 = vunpack.c.l.b16 %v192
    %v1912 = vunpack.c.h.b16 %v192
    %v1913 = vunpack.c.l.b16 %v193
    %v1914 = vunpack.c.h.b16 %v193
    %v1915 = vunpack.c.l.b16 %v194
    %v1916 = vunpack.c.h.b16 %v194
    %v1917 = vunpack.c.l.b16 %v195
    %v1918 = vunpack.c.h.b16 %v195
    %v1919 = vunpack.c.l.b16 %v196
    %v1920 = vunpack.c.h.b16 %v196
    %v1921 = vunpack.c.l.b16 %v197
    %v1922 = vunpack.c.h.b16 %v197
    %v1923 = vunpack.c.l.b16 %v198
    %v1924 = vunpack.c.h.b16 %v198
    %v1925 = vunpack.c.l.b16 %v199
    %v1926 = vunpack.c.h.b16 %v199
    %v1927 = vunpack.c.l.b16 %v200
    %v1928 = vunpack.c.h.b16 %v200
    %v1929 = vunpack.c.l.b16 %v201
    %v1930 = vunpack.c.h.b16 %v201
    %v1931 = vunpack.c.l.b16 %v202
    %v1932 = vunpack.c.h.b16 %v202
    %v1933 = vunpack.c.l.b16 %v203
    %v1934 = vunpack.c.h.b16 %v203
    %v1935 = vunpack.c.l.b16 %v204
    %v1936 = vunpack.c.h.b16 %v204
    %v1937 = vunpack.c.l.b16 %v205
    %v1938 = vunpack.c.h.b16 %v205
    %v1939 = vunpack.c.l.b16 %v206
    %v1940 = vunpack.c.h.b16 %v206
    %v1941 = vunpack.c.l.b16 %v207
    %v1942 = vunpack.c.h.b16 %v207
    %v1943 = vunpack.c.l.b16 %v208
    %v1944 = vunpack.c.h.b16 %v208
    %v1945 = vunpack.c.l.b16 %v209
    %v1946 = vunpack.c.h.b16 %v209
    %v1947 = vunpack.c.l.b16 %v210
    %v1948 = vunpack.c.h.b16 %v210
    %v1949 = vunpack.c.l.b16 %v211
    %v1950 = vunpack.c.h.b16 %v211
    %v1951 = vunpack.c.l.b16 %v212
    %v1952 = vunpack.c.h.b16 %v212
    %v1953 = vunpack.c.l.b16 %v213
    %v1954 = vunpack.c.h.b16 %v213
    %v1955 = vunpack.c.l.b16 %v214
    %v1956 = vunpack.c.h.b16 %v214
    %v1957 = vunpack.c.l.b16 %v215
    %v1958 = vunpack.c.h.b16 %v215
    %v1959 = vunpack.c.l.b16 %v216
    %v1960 = vunpack.c.h.b16 %v216
    %v1961 = vunpack.c.l.b16 %v217
    %v1962 = vunpack.c.h.b16 %v217
    %v1963 = vunpack.c.l.b16 %v218
    %v1964 = vunpack.c.h.b16 %v218
    %v1965 = vunpack.c.l.b16 %v219
    %v1966 = vunpack.c.h.b16 %v219
    %v1967 = vunpack.c.l.b16 %v220
    %v1968 = vunpack.c.h.b16 %v220
    %v1969 = vunpack.c.l.b16 %v221
    %v1970 = vunpack.c.h.b16 %v221
    %v1971 = vunpack.c.l.b16 %v222
    %v1972 = vunpack.c.h.b16 %v222
    %v1973 = vunpack.c.l.b16 %v223
    %v1974 = vunpack.c.h.b16 %v223
    %v1975 = vunpack.c.l.b16 %v224
    %v1976 = vunpack.c.h.b16 %v224
    %v1977 = vunpack.c.l.b16 %v225
    %v1978 = vunpack.c.h.b16 %v225
    %v1979 = vunpack.c.l.b16 %v226
    %v1980 = vunpack.c.h.b16 %v226
    %v1981 = vunpack.c.l.b16 %v227
    %v1982 = vunpack.c.h.b16 %v227
    %v1983 = vunpack.c.l.b16 %v228
    %v1984 = vunpack.c.h.b16 %v228
    %v1985 = vunpack.c.l.b16 %v229
    %v1986 = vunpack.c.h.b16 %v229
    %v1987 = vunpack.c.l.b16 %v230
    %v1988 = vunpack.c.h.b16 %v230
    %v1989 = vunpack.c.l.b16 %v231
    %v1990 = vunpack.c.h.b16 %v231
    %v1991 = vunpack.c.l.b16 %v232
    %v1992 = vunpack.c.h.b16 %v232
    %v1993 = vunpack.c.l.b16 %v233
    %v1994 = vunpack.c.h.b16 %v233
    %v1995 = vunpack.c.l.b16 %v234
    %v1996 = vunpack.c.h.b16 %v234
    %v1997 = vunpack.c.l.b16 %v235
    %v1998 = vunpack.c.h.b16 %v235
    %v1999 = vunpack.c.l.b16 %v236
    %v2000 = vunpack.c.h.b16 %v236
    %v2001 = vunpack.c.l.b16 %v237
    %v2002 = vunpack.c.h.b16 %v237
    %v2003 = vunpack.c.l.b16 %v238
    %v2004 = vunpack.c.h.b16 %v238
    %v2005 = vunpack.c.l.b16 %v239
    %v2006 = vunpack.c.h.b16 %v239
    %v2007 = vunpack.c.l.b16 %v240
    %v2008 = vunpack.c.h.b16 %v240
    %v2009 = vunpack.c.l.b16 %v241
    %v2010 = vunpack.c.h.b16 %v241
    %v2011 = vunpack.c.l.b16 %v242
    %v2012 = vunpack.c.h.b16 %v242
    %v2013 = vunpack.c.l.b16 %v243
    %v2014 = vunpack.c.h.b16 %v243
    %v2015 = vunpack.c.l.b16 %v244
    %v2016 = vunpack.c.h.b16 %v244
    %v2017 = vunpack.c.l.b16 %v245
    %v2018 = vunpack.c.h.b16 %v245
    %v2019 = vunpack.c.l.b16 %v246
    %v2020 = vunpack.c.h.b16 %v246
    %v2021 = vunpack.c.l.b16 %v247
    %v2022 = vunpack.c.h.b16 %v247
    %v2023 = vunpack.c.l.b16 %v248
    %v2024 = vunpack.c.h.b16 %v248
    %v2025 = vunpack.c.l.b16 %v249
    %v2026 = vunpack.c.h.b16 %v249
    %v2027 = vunpack.c.l.b16 %v250
    %v2028 = vunpack.c.h.b16 %v250
    %v2029 = vunpack.c.l.b16 %v251
    %v2030 = vunpack.c.h.b16 %v251
    %v2031 = vunpack.c.l.b16 %v252
    %v2032 = vunpack.c.h.b16 %v252
    %v2033 = vunpack.c.l.b16 %v253
    %v2034 = vunpack.c.h.b16 %v253
    %v2035 = vunpack.c.l.b16 %v254
    %v2036 = vunpack.c.h.b16 %v254
    %v2037 = vunpack.c.l.b16 %v255
    %v2038 = vunpack.c.h.b16 %v255
    %v2039 = vunpack.c.l.b16 %v256
    %v2040 = vunpack.c.h.b16 %v256
    %v2041 = vunpack.c.l.b16 %v257
    %v2042 = vunpack.c.h.b16 %v257
    %v2043 = vunpack.c.l.b16 %v258
    %v2044 = vunpack.c.h.b16 %v258
    %v2045 = vunpack.c.l.b16 %v259
    %v2046 = vunpack.c.h.b16 %v259
    %v2047 = vunpack.c.l.b16 %v260
    %v2048 = vunpack.c.h.b16 %v260
    %v2049 = vunpack.c.l.b16 %v261
    %v2050 = vunpack.c.h.b16 %v261
    %v2051 = vunpack.c.l.b16 %v262
    %v2052 = vunpack.c.h.b16 %v262
    %v2053 = vunpack.c.l.b16 %v263
    %v2054 = vunpack.c.h.b16 %v263
    %v2055 = vunpack.c.l.b16 %v264
    %v2056 = vunpack.c.h.b16 %v264
    %v2057 = vunpack.c.l.b16 %v265
    %v2058 = vunpack.c.h.b16 %v265
    %v2059 = vunpack.c.l.b16 %v266
    %v2060 = vunpack.c.h.b16 %v266
    %v2061 = vunpack.c.l.b16 %v267
    %v2062 = vunpack.c.h.b16 %v267
    %v2063 = vunpack.c.l.b16 %v268
    %v2064 = vunpack.c.h.b16 %v268
    %v2065 = vunpack.c.l.b16 %v269
    %v2066 = vunpack.c.h.b16 %v269
    %v2067 = vunpack.c.l.b16 %v270
    %v2068 = vunpack.c.h.b16 %v270
    %v2069 = vunpack.c.l.b16 %v271
    %v2070 = vunpack.c.h.b16 %v271
    %v2071 = vunpack.c.l.b16 %v272
    %v2072 = vunpack.c.h.b16 %v272
    %v2073 = vunpack.c.l.b16 %v273
    %v2074 = vunpack.c.h.b16 %v273
    %v2075 = vunpack.c.l.b16 %v274
    %v2076 = vunpack.c.h.b16 %v274
    %v2077 = vunpack.c.l.b16 %v275
    %v2078 = vunpack.c.h.b16 %v275
    %v2079 = vunpack.c.l.b16 %v276
    %v2080 = vunpack.c.h.b16 %v276
    %v2081 = vunpack.c.l.b16 %v277
    %v2082 = vunpack.c.h.b16 %v277
    %v2083 = vunpack.c.l.b16 %v278
    %v2084 = vunpack.c.h.b16 %v278
    %v2085 = vunpack.c.l.b16 %v279
    %v2086 = vunpack.c.h.b16 %v279
    %v2087 = vunpack.c.l.b16 %v280
    %v2088 = vunpack.c.h.b16 %v280
    %v2089 = vunpack.c.l.b16 %v281
    %v2090 = vunpack.c.h.b16 %v281
    %v2091 = vunpack.c.l.b16 %v282
    %v2092 = vunpack.c.h.b16 %v282
    %v2093 = vunpack.c.l.b16 %v283
    %v2094 = vunpack.c.h.b16 %v283
    %v2095 = vunpack.c.l.b16 %v284
    %v2096 = vunpack.c.h.b16 %v284
    %v2097 = vunpack.c.l.b16 %v285
    %v2098 = vunpack.c.h.b16 %v285
    %v2099 = vunpack.c.l.b16 %v286
    %v2100 = vunpack.c.h.b16 %v286
    %v2101 = vunpack.c.l.b16 %v287
    %v2102 = vunpack.c.h.b16 %v287
    %v2103 = vunpack.c.l.b16 %v288
    %v2104 = vunpack.c.h.b16 %v288
    %v2105 = vunpack.c.l.b16 %v289
    %v2106 = vunpack.c.h.b16 %v289
    %v2107 = vunpack.c.l.b16 %v290
    %v2108 = vunpack.c.h.b16 %v290
    %v2109 = vunpack.c.l.b16 %v291
    %v2110 = vunpack.c.h.b16 %v291
    %v2111 = vunpack.c.l.b16 %v292
    %v2112 = vunpack.c.h.b16 %v292
    %v2113 = vunpack.c.l.b16 %v293
    %v2114 = vunpack.c.h.b16 %v293
    %v2115 = vunpack.c.l.b16 %v294
    %v2116 = vunpack.c.h.b16 %v294
    %v2117 = vunpack.c.l.b16 %v295
    %v2118 = vunpack.c.h.b16 %v295
    %v2119 = vunpack.c.l.b16 %v296
    %v2120 = vunpack.c.h.b16 %v296
    %v2121 = vunpack.c.l.b16 %v297
    %v2122 = vunpack.c.h.b16 %v297
    %v2123 = vunpack.c.l.b16 %v298
    %v2124 = vunpack.c.h.b16 %v298
    %v2125 = vunpack.c.l.b16 %v299
    %v2126 = vunpack.c.h.b16 %v299
    %v2127 = vunpack.c.l.b16 %v300
    %v2128 = vunpack.c.h.b16 %v300
    %v2129 = vunpack.c.l.b16 %v301
    %v2130 = vunpack.c.h.b16 %v301
    %v2131 = vunpack.c.l.b16 %v302
    %v2132 = vunpack.c.h.b16 %v302
    %v2133 = vunpack.c.l.b16 %v303
    %v2134 = vunpack.c.h.b16 %v303
    %v2135 = vunpack.c.l.b16 %v304
    %v2136 = vunpack.c.h.b16 %v304
    %v2137 = vunpack.c.l.b16 %v305
    %v2138 = vunpack.c.h.b16 %v305
    %v2139 = vunpack.c.l.b16 %v306
    %v2140 = vunpack.c.h.b16 %v306
    %v2141 = vunpack.c.l.b16 %v307
    %v2142 = vunpack.c.h.b16 %v307
    %v2143 = vunpack.c.l.b16 %v308
    %v2144 = vunpack.c.h.b16 %v308
    %v2145 = vunpack.c.l.b16 %v309
    %v2146 = vunpack.c.h.b16 %v309
    %v2147 = vunpack.c.l.b16 %v310
    %v2148 = vunpack.c.h.b16 %v310
    %v2149 = vunpack.c.l.b16 %v311
    %v2150 = vunpack.c.h.b16 %v311
    %v2151 = vunpack.c.l.b16 %v312
    %v2152 = vunpack.c.h.b16 %v312
    %v2153 = vunpack.c.l.b16 %v313
    %v2154 = vunpack.c.h.b16 %v313
    %v2155 = vunpack.c.l.b16 %v314
    %v2156 = vunpack.c.h.b16 %v314
    %v2157 = vunpack.c.l.b16 %v315
    %v2158 = vunpack.c.h.b16 %v315
    %v2159 = vunpack.c.l.b16 %v316
    %v2160 = vunpack.c.h.b16 %v316
    %v2161 = vunpack.c.l.b16 %v317
    %v2162 = vunpack.c.h.b16 %v317
    %v2163 = vunpack.c.l.b16 %v318
    %v2164 = vunpack.c.h.b16 %v318
    %v2165 = vunpack.c.l.b16 %v319
    %v2166 = vunpack.c.h.b16 %v319
    %v2167 = vunpack.c.l.b16 %v320
    %v2168 = vunpack.c.h.b16 %v320
    %v2169 = vunpack.c.l.b16 %v321
    %v2170 = vunpack.c.h.b16 %v321
    %v2171 = vunpack.c.l.b16 %v322
    %v2172 = vunpack.c.h.b16 %v322
    %v2173 = vunpack.c.l.b16 %v323
    %v2174 = vunpack.c.h.b16 %v323
    %v2175 = vunpack.c.l.b16 %v324
    %v2176 = vunpack.c.h.b16 %v324
    %v2177 = vunpack.c.l.b16 %v325
    %v2178 = vunpack.c.h.b16 %v325
    %v2179 = vunpack.c.l.b16 %v326
    %v2180 = vunpack.c.h.b16 %v326
    %v2181 = vunpack.c.l.b16 %v327
    %v2182 = vunpack.c.h.b16 %v327
    %v2183 = vunpack.c.l.b16 %v328
    %v2184 = vunpack.c.h.b16 %v328
    %v2185 = vunpack.c.l.b16 %v329
    %v2186 = vunpack.c.h.b16 %v329
    %v2187 = vunpack.c.l.b16 %v330
    %v2188 = vunpack.c.h.b16 %v330
    %v2189 = vunpack.c.l.b16 %v331
    %v2190 = vunpack.c.h.b16 %v331
    %v2191 = vunpack.c.l.b16 %v332
    %v2192 = vunpack.c.h.b16 %v332
    %v2193 = vunpack.c.l.b16 %v333
    %v2194 = vunpack.c.h.b16 %v333
    %v2195 = vunpack.c.l.b16 %v334
    %v2196 = vunpack.c.h.b16 %v334
    %v2197 = vunpack.c.l.b16 %v335
    %v2198 = vunpack.c.h.b16 %v335
    %v2199 = vunpack.c.l.b16 %v336
    %v2200 = vunpack.c.h.b16 %v336
    %v2201 = vunpack.c.l.b16 %v337
    %v2202 = vunpack.c.h.b16 %v337
    %v2203 = vunpack.c.l.b16 %v338
    %v2204 = vunpack.c.h.b16 %v338
    %v2205 = vunpack.c.l.b16 %v339
    %v2206 = vunpack.c.h.b16 %v339
    %v2207 = vunpack.c.l.b16 %v340
    %v2208 = vunpack.c.h.b16 %v340
    %v2209 = vunpack.c.l.b16 %v341
    %v2210 = vunpack.c.h.b16 %v341
    %v2211 = vunpack.c.l.b16 %v342
    %v2212 = vunpack.c.h.b16 %v342
    %v2213 = vunpack.c.l.b16 %v343
    %v2214 = vunpack.c.h.b16 %v343
    %v2215 = vunpack.c.l.b16 %v344
    %v2216 = vunpack.c.h.b16 %v344
    %v2217 = vunpack.c.l.b16 %v345
    %v2218 = vunpack.c.h.b16 %v345
    %v2219 = vunpack.c.l.b16 %v346
    %v2220 = vunpack.c.h.b16 %v346
    %v2221 = vunpack.c.l.b16 %v347
    %v2222 = vunpack.c.h.b16 %v347
    %v2223 = vunpack.c.l.b16 %v348
    %v2224 = vunpack.c.h.b16 %v348
    %v2225 = vunpack.c.l.b16 %v349
    %v2226 = vunpack.c.h.b16 %v349
    %v2227 = vunpack.c.l.b16 %v350
    %v2228 = vunpack.c.h.b16 %v350
    %v2229 = vunpack.c.l.b16 %v351
    %v2230 = vunpack.c.h.b16 %v351
    %v2231 = vunpack.c.l.b16 %v352
    %v2232 = vunpack.c.h.b16 %v352
    %v2233 = vunpack.c.l.b16 %v353
    %v2234 = vunpack.c.h.b16 %v353
    %v2235 = vunpack.c.l.b16 %v354
    %v2236 = vunpack.c.h.b16 %v354
    %v2237 = vunpack.c.l.b16 %v355
    %v2238 = vunpack.c.h.b16 %v355
    %v2239 = vunpack.c.l.b16 %v356
    %v2240 = vunpack.c.h.b16 %v356
    %v2241 = vunpack.c.l.b16 %v357
    %v2242 = vunpack.c.h.b16 %v357
    %v2243 = vunpack.c.l.b16 %v358
    %v2244 = vunpack.c.h.b16 %v358
    %v2245 = vunpack.c.l.b16 %v359
    %v2246 = vunpack.c.h.b16 %v359
    %v2247 = vunpack.c.l.b16 %v360
    %v2248 = vunpack.c.h.b16 %v360
    %v2249 = vunpack.c.l.b16 %v361
    %v2250 = vunpack.c.h.b16 %v361
    %v2251 = vunpack.c.l.b16 %v362
    %v2252 = vunpack.c.h.b16 %v362
    %v2253 = vunpack.c.l.b16 %v363
    %v2254 = vunpack.c.h.b16 %v363
    %v2255 = vunpack.c.l.b16 %v364
    %v2256 = vunpack.c.h.b16 %v364
    %v2257 = vunpack.c.l.b16 %v365
    %v2258 = vunpack.c.h.b16 %v365
    %v2259 = vunpack.c.l.b16 %v366
    %v2260 = vunpack.c.h.b16 %v366
    %v2261 = vunpack.c.l.b16 %v367
    %v2262 = vunpack.c.h.b16 %v367
    %v2263 = vunpack.c.l.b16 %v368
    %v2264 = vunpack.c.h.b16 %v368
    %v2265 = vunpack.c.l.b16 %v369
    %v2266 = vunpack.c.h.b16 %v369
    %v2267 = vunpack.c.l.b16 %v370
    %v2268 = vunpack.c.h.b16 %v370
    %v2269 = vunpack.c.l.b16 %v371
    %v2270 = vunpack.c.h.b16 %v371
    %v2271 = vunpack.c.l.b16 %v372
    %v2272 = vunpack.c.h.b16 %v372
    %v2273 = vunpack.c.l.b16 %v373
    %v2274 = vunpack.c.h.b16 %v373
    %v2275 = vunpack.c.l.b16 %v374
    %v2276 = vunpack.c.h.b16 %v374
    %v2277 = vunpack.c.l.b16 %v375
    %v2278 = vunpack.c.h.b16 %v375
    %v2279 = vunpack.c.l.b16 %v376
    %v2280 = vunpack.c.h.b16 %v376
    %v2281 = vunpack.c.l.b16 %v377
    %v2282 = vunpack.c.h.b16 %v377
    %v2283 = vunpack.c.l.b16 %v378
    %v2284 = vunpack.c.h.b16 %v378
    %v2285 = vunpack.c.l.b16 %v379
    %v2286 = vunpack.c.h.b16 %v379
    %v2287 = vunpack.c.l.b16 %v380
    %v2288 = vunpack.c.h.b16 %v380
    %v2289 = vunpack.c.l.b16 %v381
    %v2290 = vunpack.c.h.b16 %v381
    %v2291 = vunpack.c.l.b16 %v382
    %v2292 = vunpack.c.h.b16 %v382
    %v2293 = vunpack.c.l.b16 %v383
    %v2294 = vunpack.c.h.b16 %v383
    %v2295 = vunpack.c.l.b16 %v384
    %v2296 = vunpack.c.h.b16 %v384
    %v2297 = vunpack.c.l.b16 %v385
    %v2298 = vunpack.c.h.b16 %v385
    %v2299 = vunpack.c.l.b16 %v386
    %v2300 = vunpack.c.h.b16 %v386
    %v2301 = vunpack.c.l.b16 %v387
    %v2302 = vunpack.c.h.b16 %v387
    %v2303 = vunpack.c.l.b16 %v388
    %v2304 = vunpack.c.h.b16 %v388
    %v2305 = vunpack.c.l.b16 %v389
    %v2306 = vunpack.c.h.b16 %v389
    %v2307 = vunpack.c.l.b16 %v390
    %v2308 = vunpack.c.h.b16 %v390
    %v2309 = vunpack.c.l.b16 %v391
    %v2310 = vunpack.c.h.b16 %v391
    %v2311 = vunpack.c.l.b16 %v392
    %v2312 = vunpack.c.h.b16 %v392
    %v2313 = vunpack.c.l.b16 %v393
    %v2314 = vunpack.c.h.b16 %v393
    %v2315 = vunpack.c.l.b16 %v394
    %v2316 = vunpack.c.h.b16 %v394
    %v2317 = vunpack.c.l.b16 %v395
    %v2318 = vunpack.c.h.b16 %v395
    %v2319 = vunpack.c.l.b16 %v396
    %v2320 = vunpack.c.h.b16 %v396
    %v2321 = vunpack.c.l.b16 %v397
    %v2322 = vunpack.c.h.b16 %v397
    %v2323 = vunpack.c.l.b16 %v398
    %v2324 = vunpack.c.h.b16 %v398
    %v2325 = vunpack.c.l.b16 %v399
    %v2326 = vunpack.c.h.b16 %v399
    %v2327 = vunpack.c.l.b16 %v400
    %v2328 = vunpack.c.h.b16 %v400
    %v2329 = vunpack.c.l.b16 %v401
    %v2330 = vunpack.c.h.b16 %v401
    %v2331 = vunpack.c.l.b16 %v402
    %v2332 = vunpack.c.h.b16 %v402
    %v2333 = vunpack.c.l.b16 %v403
    %v2334 = vunpack.c.h.b16 %v403
    %v2335 = vunpack.c.l.b16 %v404
    %v2336 = vunpack.c.h.b16 %v404
    %v2337 = vunpack.c.l.b16 %v405
    %v2338 = vunpack.c.h.b16 %v405
    %v2339 = vunpack.c.l.b16 %v406
    %v2340 = vunpack.c.h.b16 %v406
    %v2341 = vunpack.c.l.b16 %v407
    %v2342 = vunpack.c.h.b16 %v407
    %v2343 = vunpack.c.l.b16 %v408
    %v2344 = vunpack.c.h.b16 %v408
    %v2345 = vunpack.c.l.b16 %v409
    %v2346 = vunpack.c.h.b16 %v409
    %v2347 = vunpack.c.l.b16 %v410
    %v2348 = vunpack.c.h.b16 %v410
    %v2349 = vunpack.c.l.b16 %v411
    %v2350 = vunpack.c.h.b16 %v411
    %v2351 = vunpack.c.l.b16 %v412
    %v2352 = vunpack.c.h.b16 %v412
    %v2353 = vunpack.c.l.b16 %v413
    %v2354 = vunpack.c.h.b16 %v413
    %v2355 = vunpack.c.l.b16 %v414
    %v2356 = vunpack.c.h.b16 %v414
    %v2357 = vunpack.c.l.b16 %v415
    %v2358 = vunpack.c.h.b16 %v415
    %v2359 = vunpack.c.l.b16 %v416
    %v2360 = vunpack.c.h.b16 %v416
    %v2361 = vunpack.c.l.b16 %v417
    %v2362 = vunpack.c.h.b16 %v417
    %v2363 = vunpack.c.l.b16 %v418
    %v2364 = vunpack.c.h.b16 %v418
    %v2365 = vunpack.c.l.b16 %v419
    %v2366 = vunpack.c.h.b16 %v419
    %v2367 = vunpack.c.l.b16 %v420
    %v2368 = vunpack.c.h.b16 %v420
    %v2369 = vunpack.c.l.b16 %v421
    %v2370 = vunpack.c.h.b16 %v421
    %v2371 = vunpack.c.l.b16 %v422
    %v2372 = vunpack.c.h.b16 %v422
    %v2373 = vunpack.c.l.b16 %v423
    %v2374 = vunpack.c.h.b16 %v423
    %v2375 = vunpack.c.l.b16 %v424
    %v2376 = vunpack.c.h.b16 %v424
    %v2377 = vunpack.c.l.b16 %v425
    %v2378 = vunpack.c.h.b16 %v425
    %v2379 = vunpack.c.l.b16 %v426
    %v2380 = vunpack.c.h.b16 %v426
    %v2381 = vunpack.c.l.b16 %v427
    %v2382 = vunpack.c.h.b16 %v427
    %v2383 = vunpack.c.l.b16 %v428
    %v2384 = vunpack.c.h.b16 %v428
    %v2385 = vunpack.c.l.b16 %v429
    %v2386 = vunpack.c.h.b16 %v429
    %v2387 = vunpack.c.l.b16 %v430
    %v2388 = vunpack.c.h.b16 %v430
    %v2389 = vunpack.c.l.b16 %v431
    %v2390 = vunpack.c.h.b16 %v431
    %v2391 = vunpack.c.l.b16 %v432
    %v2392 = vunpack.c.h.b16 %v432
    %v2393 = vunpack.c.l.b16 %v433
    %v2394 = vunpack.c.h.b16 %v433
    %v2395 = vunpack.c.l.b16 %v434
    %v2396 = vunpack.c.h.b16 %v434
    %v2397 = vunpack.c.l.b16 %v435
    %v2398 = vunpack.c.h.b16 %v435
    %v2399 = vunpack.c.l.b16 %v436
    %v2400 = vunpack.c.h.b16 %v436
    %v2401 = vunpack.c.l.b16 %v437
    %v2402 = vunpack.c.h.b16 %v437
    %v2403 = vunpack.c.l.b16 %v438
    %v2404 = vunpack.c.h.b16 %v438
    %v2405 = vunpack.c.l.b16 %v439
    %v2406 = vunpack.c.h.b16 %v439
    %v2407 = vunpack.c.l.b16 %v440
    %v2408 = vunpack.c.h.b16 %v440
    %v2409 = vunpack.c.l.b16 %v441
    %v2410 = vunpack.c.h.b16 %v441
    %v2411 = vunpack.c.l.b16 %v442
    %v2412 = vunpack.c.h.b16 %v442
    %v2413 = vunpack.c.l.b16 %v443
    %v2414 = vunpack.c.h.b16 %v443
    %v2415 = vunpack.c.l.b16 %v444
    %v2416 = vunpack.c.h.b16 %v444
    %v2417 = vunpack.c.l.b16 %v445
    %v2418 = vunpack.c.h.b16 %v445
    %v2419 = vunpack.c.l.b16 %v446
    %v2420 = vunpack.c.h.b16 %v446
    %v2421 = vunpack.c.l.b16 %v447
    %v2422 = vunpack.c.h.b16 %v447
    %v2423 = vunpack.c.l.b16 %v448
    %v2424 = vunpack.c.h.b16 %v448
    %v2425 = vunpack.c.l.b16 %v449
    %v2426 = vunpack.c.h.b16 %v449
    %v2427 = vunpack.c.l.b16 %v450
    %v2428 = vunpack.c.h.b16 %v450
    %v2429 = vunpack.c.l.b16 %v451
    %v2430 = vunpack.c.h.b16 %v451
    %v2431 = vunpack.c.l.b16 %v452
    %v2432 = vunpack.c.h.b16 %v452
    %v2433 = vunpack.c.l.b16 %v453
    %v2434 = vunpack.c.h.b16 %v453
    %v2435 = vunpack.c.l.b16 %v454
    %v2436 = vunpack.c.h.b16 %v454
    %v2437 = vunpack.c.l.b16 %v455
    %v2438 = vunpack.c.h.b16 %v455
    %v2439 = vunpack.c.l.b16 %v456
    %v2440 = vunpack.c.h.b16 %v456
    %v2441 = vunpack.c.l.b16 %v457
    %v2442 = vunpack.c.h.b16 %v457
    %v2443 = vunpack.c.l.b16 %v458
    %v2444 = vunpack.c.h.b16 %v458
    %v2445 = vunpack.c.l.b16 %v459
    %v2446 = vunpack.c.h.b16 %v459
    %v2447 = vunpack.c.l.b16 %v460
    %v2448 = vunpack.c.h.b16 %v460
    %v2449 = vunpack.c.l.b16 %v461
    %v2450 = vunpack.c.h.b16 %v461
    %v2451 = vunpack.c.l.b16 %v462
    %v2452 = vunpack.c.h.b16 %v462
    %v2453 = vunpack.c.l.b16 %v463
    %v2454 = vunpack.c.h.b16 %v463
    %v2455 = vunpack.c.l.b16 %v464
    %v2456 = vunpack.c.h.b16 %v464
    %v2457 = vunpack.c.l.b16 %v465
    %v2458 = vunpack.c.h.b16 %v465
    %v2459 = vunpack.c.l.b16 %v466
    %v2460 = vunpack.c.h.b16 %v466
    %v2461 = vunpack.c.l.b16 %v467
    %v2462 = vunpack.c.h.b16 %v467
    %v2463 = vunpack.c.l.b16 %v468
    %v2464 = vunpack.c.h.b16 %v468
    %v2465 = vunpack.c.l.b16 %v469
    %v2466 = vunpack.c.h.b16 %v469
    %v2467 = vunpack.c.l.b16 %v470
    %v2468 = vunpack.c.h.b16 %v470
    %v2469 = vunpack.c.l.b16 %v471
    %v2470 = vunpack.c.h.b16 %v471
    %v2471 = vunpack.c.l.b16 %v472
    %v2472 = vunpack.c.h.b16 %v472
    %v2473 = vunpack.c.l.b16 %v473
    %v2474 = vunpack.c.h.b16 %v473
    %v2475 = vunpack.c.l.b16 %v474
    %v2476 = vunpack.c.h.b16 %v474
    %v2477 = vunpack.c.l.b16 %v475
    %v2478 = vunpack.c.h.b16 %v475
    %v2479 = vunpack.c.l.b16 %v476
    %v2480 = vunpack.c.h.b16 %v476
    %v2481 = vunpack.c.l.b16 %v477
    %v2482 = vunpack.c.h.b16 %v477
    %v2483 = vunpack.c.l.b16 %v478
    %v2484 = vunpack.c.h.b16 %v478
    %v2485 = vunpack.c.l.b16 %v479
    %v2486 = vunpack.c.h.b16 %v479
    %v2487 = vunpack.c.l.b16 %v480
    %v2488 = vunpack.c.h.b16 %v480
    %v2489 = vunpack.c.l.b16 %v481
    %v2490 = vunpack.c.h.b16 %v481
    %v2491 = vunpack.c.l.b16 %v482
    %v2492 = vunpack.c.h.b16 %v482
    %v2493 = vunpack.c.l.b16 %v483
    %v2494 = vunpack.c.h.b16 %v483
    %v2495 = vunpack.c.l.b16 %v484
    %v2496 = vunpack.c.h.b16 %v484
    %v2497 = vunpack.c.l.b16 %v485
    %v2498 = vunpack.c.h.b16 %v485
    %v2499 = vunpack.c.l.b16 %v486
    %v2500 = vunpack.c.h.b16 %v486
    %v2501 = vunpack.c.l.b16 %v487
    %v2502 = vunpack.c.h.b16 %v487
    %v2503 = vunpack.c.l.b16 %v488
    %v2504 = vunpack.c.h.b16 %v488
    %v2505 = vunpack.c.l.b16 %v489
    %v2506 = vunpack.c.h.b16 %v489
    %v2507 = vunpack.c.l.b16 %v490
    %v2508 = vunpack.c.h.b16 %v490
    %v2509 = vunpack.c.l.b16 %v491
    %v2510 = vunpack.c.h.b16 %v491
    %v2511 = vunpack.c.l.b16 %v492
    %v2512 = vunpack.c.h.b16 %v492
    %v2513 = vunpack.c.l.b16 %v493
    %v2514 = vunpack.c.h.b16 %v493
    %v2515 = vunpack.c.l.b16 %v494
    %v2516 = vunpack.c.h.b16 %v494
    %v2517 = vunpack.c.l.b16 %v495
    %v2518 = vunpack.c.h.b16 %v495
    %v2519 = vunpack.c.l.b16 %v496
    %v2520 = vunpack.c.h.b16 %v496
    %v2521 = vunpack.c.l.b16 %v497
    %v2522 = vunpack.c.h.b16 %v497
    %v2523 = vunpack.c.l.b16 %v498
    %v2524 = vunpack.c.h.b16 %v498
    %v2525 = vunpack.c.l.b16 %v499
    %v2526 = vunpack.c.h.b16 %v499
    %v2527 = vunpack.c.l.b16 %v500
    %v2528 = vunpack.c.h.b16 %v500
    %v2529 = vunpack.c.l.b16 %v501
    %v2530 = vunpack.c.h.b16 %v501
    %v2531 = vunpack.c.l.b16 %v502
    %v2532 = vunpack.c.h.b16 %v502
    %v2533 = vunpack.c.l.b16 %v503
    %v2534 = vunpack.c.h.b16 %v503
    %v2535 = vunpack.c.l.b16 %v504
    %v2536 = vunpack.c.h.b16 %v504
    %v2537 = vunpack.c.l.b16 %v505
    %v2538 = vunpack.c.h.b16 %v505
    %v2539 = vunpack.c.l.b16 %v506
    %v2540 = vunpack.c.h.b16 %v506
    %v2541 = vunpack.c.l.b16 %v507
    %v2542 = vunpack.c.h.b16 %v507
    %v2543 = vunpack.c.l.b16 %v508
    %v2544 = vunpack.c.h.b16 %v508
    %v2545 = vunpack.c.l.b16 %v509
    %v2546 = vunpack.c.h.b16 %v509
    %v2547 = vunpack.c.l.b16 %v510
    %v2548 = vunpack.c.h.b16 %v510
    %v2549 = vunpack.c.l.b16 %v511
    %v2550 = vunpack.c.h.b16 %v511
    %v2551 = vunpack.c.l.b16 %v512
    %v2552 = vunpack.c.h.b16 %v512
    %v2553 = vunpack.c.l.b16 %v513
    %v2554 = vunpack.c.h.b16 %v513
    %v2555 = vunpack.c.l.b16 %v514
    %v2556 = vunpack.c.h.b16 %v514
    %v2557 = vunpack.c.l.b16 %v515
    %v2558 = vunpack.c.h.b16 %v515
    %v2559 = vunpack.c.l.b16 %v516
    %v2560 = vunpack.c.h.b16 %v516
    %v2561 = vunpack.c.l.b16 %v517
    %v2562 = vunpack.c.h.b16 %v517
    %v2563 = vunpack.c.l.b16 %v518
    %v2564 = vunpack.c.h.b16 %v518
    %v2565 = vunpack.c.l.b16 %v519
    %v2566 = vunpack.c.h.b16 %v519
    %v2567 = vunpack.c.l.b16 %v520
    %v2568 = vunpack.c.h.b16 %v520
    %v2569 = vunpack.c.l.b16 %v521
    %v2570 = vunpack.c.h.b16 %v521
    %v2571 = vunpack.c.l.b16 %v522
    %v2572 = vunpack.c.h.b16 %v522
    %v2573 = vunpack.c.l.b16 %v523
    %v2574 = vunpack.c.h.b16 %v523
    %v2575 = vunpack.c.l.b16 %v524
    %v2576 = vunpack.c.h.b16 %v524
    %v2577 = vunpack.c.l.b16 %v525
    %v2578 = vunpack.c.h.b16 %v525
    %v2579 = vunpack.c.l.b16 %v526
    %v2580 = vunpack.c.h.b16 %v526
    %v2581 = vunpack.c.l.b16 %v527
    %v2582 = vunpack.c.h.b16 %v527
    %v2583 = vunpack.c.l.b16 %v528
    %v2584 = vunpack.c.h.b16 %v528
    %v2585 = vunpack.c.l.b16 %v529
    %v2586 = vunpack.c.h.b16 %v529
    %v2587 = vunpack.c.l.b16 %v530
    %v2588 = vunpack.c.h.b16 %v530
    %v2589 = vunpack.c.l.b16 %v531
    %v2590 = vunpack.c.h.b16 %v531
    %v2591 = vunpack.c.l.b16 %v532
    %v2592 = vunpack.c.h.b16 %v532
    %v2593 = vunpack.c.l.b16 %v533
    %v2594 = vunpack.c.h.b16 %v533
    %v2595 = vunpack.c.l.b16 %v534
    %v2596 = vunpack.c.h.b16 %v534
    %v2597 = vunpack.c.l.b16 %v535
    %v2598 = vunpack.c.h.b16 %v535
    %v2599 = vunpack.c.l.b16 %v536
    %v2600 = vunpack.c.h.b16 %v536
    %v2601 = vunpack.c.l.b16 %v537
    %v2602 = vunpack.c.h.b16 %v537
    %v2603 = vunpack.c.l.b16 %v538
    %v2604 = vunpack.c.h.b16 %v538
    %v2605 = vunpack.c.l.b16 %v539
    %v2606 = vunpack.c.h.b16 %v539
    %v2607 = vunpack.c.l.b16 %v540
    %v2608 = vunpack.c.h.b16 %v540
    %v2609 = vunpack.c.l.b16 %v541
    %v2610 = vunpack.c.h.b16 %v541
    %v2611 = vunpack.c.l.b16 %v542
    %v2612 = vunpack.c.h.b16 %v542
    %v2613 = vunpack.c.l.b16 %v543
    %v2614 = vunpack.c.h.b16 %v543
    %v2615 = vunpack.c.l.b16 %v544
    %v2616 = vunpack.c.h.b16 %v544
    %v2617 = vunpack.c.l.b16 %v545
    %v2618 = vunpack.c.h.b16 %v545
    %v2619 = vunpack.c.l.b16 %v546
    %v2620 = vunpack.c.h.b16 %v546
    %v2621 = vunpack.c.l.b16 %v547
    %v2622 = vunpack.c.h.b16 %v547
    %v2623 = vunpack.c.l.b16 %v548
    %v2624 = vunpack.c.h.b16 %v548
    %v2625 = vunpack.c.l.b16 %v549
    %v2626 = vunpack.c.h.b16 %v549
    %v2627 = vunpack.c.l.b16 %v550
    %v2628 = vunpack.c.h.b16 %v550
    %v2629 = vunpack.c.l.b16 %v551
    %v2630 = vunpack.c.h.b16 %v551
    %v2631 = vunpack.c.l.b16 %v552
    %v2632 = vunpack.c.h.b16 %v552
    %v2633 = vunpack.c.l.b16 %v553
    %v2634 = vunpack.c.h.b16 %v553
    %v2635 = vunpack.c.l.b16 %v554
    %v2636 = vunpack.c.h.b16 %v554
    %v2637 = vunpack.c.l.b16 %v555
    %v2638 = vunpack.c.h.b16 %v555
    %v2639 = vunpack.c.l.b16 %v556
    %v2640 = vunpack.c.h.b16 %v556
    %v2641 = vunpack.c.l.b16 %v557
    %v2642 = vunpack.c.h.b16 %v557
    %v2643 = vunpack.c.l.b16 %v558
    %v2644 = vunpack.c.h.b16 %v558
    %v2645 = vunpack.c.l.b16 %v559
    %v2646 = vunpack.c.h.b16 %v559
    %v2647 = vunpack.c.l.b16 %v560
    %v2648 = vunpack.c.h.b16 %v560
    %v2649 = vunpack.c.l.b16 %v561
    %v2650 = vunpack.c.h.b16 %v561
    %v2651 = vunpack.c.l.b16 %v562
    %v2652 = vunpack.c.h.b16 %v562
    %v2653 = vunpack.c.l.b16 %v563
    %v2654 = vunpack.c.h.b16 %v563
    %v2655 = vunpack.c.l.b16 %v564
    %v2656 = vunpack.c.h.b16 %v564
    %v2657 = vunpack.c.l.b16 %v565
    %v2658 = vunpack.c.h.b16 %v565
    %v2659 = vunpack.c.l.b16 %v566
    %v2660 = vunpack.c.h.b16 %v566
    %v2661 = vunpack.c.l.b16 %v567
    %v2662 = vunpack.c.h.b16 %v567
    %v2663 = vunpack.c.l.b16 %v568
    %v2664 = vunpack.c.h.b16 %v568
    %v2665 = vunpack.c.l.b16 %v569
    %v2666 = vunpack.c.h.b16 %v569
    %v2667 = vunpack.c.l.b16 %v570
    %v2668 = vunpack.c.h.b16 %v570
    %v2669 = vunpack.c.l.b16 %v571
    %v2670 = vunpack.c.h.b16 %v571
    %v2671 = vunpack.c.l.b16 %v572
    %v2672 = vunpack.c.h.b16 %v572
    %v2673 = vunpack.c.l.b16 %v573
    %v2674 = vunpack.c.h.b16 %v573
    %v2675 = vunpack.c.l.b16 %v574
    %v2676 = vunpack.c.h.b16 %v574
    %v2677 = vunpack.c.l.b16 %v575
    %v2678 = vunpack.c.h.b16 %v575
    %v2679 = vunpack.c.l.b16 %v576
    %v2680 = vunpack.c.h.b16 %v576
    %v2681 = vunpack.c.l.b16 %v577
    %v2682 = vunpack.c.h.b16 %v577
    %v2683 = vunpack.c.l.b16 %v578
    %v2684 = vunpack.c.h.b16 %v578
    %v2685 = vunpack.c.l.b16 %v579
    %v2686 = vunpack.c.h.b16 %v579
    %v2687 = vunpack.c.l.b16 %v580
    %v2688 = vunpack.c.h.b16 %v580
    %v2689 = vunpack.c.l.b16 %v581
    %v2690 = vunpack.c.h.b16 %v581
    %v2691 = vunpack.c.l.b16 %v582
    %v2692 = vunpack.c.h.b16 %v582
    %v2693 = vunpack.c.l.b16 %v583
    %v2694 = vunpack.c.h.b16 %v583
    %v2695 = vunpack.c.l.b16 %v584
    %v2696 = vunpack.c.h.b16 %v584
    %v2697 = vunpack.c.l.b16 %v585
    %v2698 = vunpack.c.h.b16 %v585
    %v2699 = vunpack.c.l.b16 %v586
    %v2700 = vunpack.c.h.b16 %v586
    %v2701 = vunpack.c.l.b16 %v587
    %v2702 = vunpack.c.h.b16 %v587
    %v2703 = vunpack.c.l.b16 %v588
    %v2704 = vunpack.c.h.b16 %v588
    %v2705 = vunpack.c.l.b16 %v589
    %v2706 = vunpack.c.h.b16 %v589
    %v2707 = vunpack.c.l.b16 %v590
    %v2708 = vunpack.c.h.b16 %v590
    %v2709 = vunpack.c.l.b16 %v591
    %v2710 = vunpack.c.h.b16 %v591
    %v2711 = vunpack.c.l.b16 %v592
    %v2712 = vunpack.c.h.b16 %v592
    %v2713 = vunpack.c.l.b16 %v593
    %v2714 = vunpack.c.h.b16 %v593
    %v2715 = vunpack.c.l.b16 %v594
    %v2716 = vunpack.c.h.b16 %v594
    %v2717 = vunpack.c.l.b16 %v595
    %v2718 = vunpack.c.h.b16 %v595
    %v2719 = vunpack.c.l.b16 %v596
    %v2720 = vunpack.c.h.b16 %v596
    %v2721 = vunpack.c.l.b16 %v597
    %v2722 = vunpack.c.h.b16 %v597
    %v2723 = vunpack.c.l.b16 %v598
    %v2724 = vunpack.c.h.b16 %v598
    %v2725 = vunpack.c.l.b16 %v599
    %v2726 = vunpack.c.h.b16 %v599
    %v2727 = vunpack.c.l.b16 %v600
    %v2728 = vunpack.c.h.b16 %v600
    %v2729 = vunpack.c.l.b16 %v601
    %v2730 = vunpack.c.h.b16 %v601
    %v2731 = vunpack.c.l.b16 %v602
    %v2732 = vunpack.c.h.b16 %v602
    %v2733 = vunpack.c.l.b16 %v603
    %v2734 = vunpack.c.h.b16 %v603
    %v2735 = vunpack.c.l.b16 %v604
    %v2736 = vunpack.c.h.b16 %v604
    %v2737 = vunpack.c.l.b16 %v605
    %v2738 = vunpack.c.h.b16 %v605
    %v2739 = vunpack.c.l.b16 %v606
    %v2740 = vunpack.c.h.b16 %v606
    %v2741 = vunpack.c.l.b16 %v607
    %v2742 = vunpack.c.h.b16 %v607
    %v2743 = vunpack.c.l.b16 %v608
    %v2744 = vunpack.c.h.b16 %v608
    %v2745 = vunpack.c.l.b16 %v609
    %v2746 = vunpack.c.h.b16 %v609
    %v2747 = vunpack.c.l.b16 %v610
    %v2748 = vunpack.c.h.b16 %v610
    %v2749 = vunpack.c.l.b16 %v611
    %v2750 = vunpack.c.h.b16 %v611
    %v2751 = vunpack.c.l.b16 %v612
    %v2752 = vunpack.c.h.b16 %v612
    %v2753 = vunpack.c.l.b16 %v613
    %v2754 = vunpack.c.h.b16 %v613
    %v2755 = vunpack.c.l.b16 %v614
    %v2756 = vunpack.c.h.b16 %v614
    %v2757 = vunpack.c.l.b16 %v615
    %v2758 = vunpack.c.h.b16 %v615
    %v2759 = vunpack.c.l.b16 %v616
    %v2760 = vunpack.c.h.b16 %v616
    %v2761 = vunpack.c.l.b16 %v617
    %v2762 = vunpack.c.h.b16 %v617
    %v2763 = vunpack.c.l.b16 %v618
    %v2764 = vunpack.c.h.b16 %v618
    %v2765 = vunpack.c.l.b16 %v619
    %v2766 = vunpack.c.h.b16 %v619
    %v2767 = vunpack.c.l.b16 %v620
    %v2768 = vunpack.c.h.b16 %v620
    %v2769 = vunpack.c.l.b16 %v621
    %v2770 = vunpack.c.h.b16 %v621
    %v2771 = vunpack.c.l.b16 %v622
    %v2772 = vunpack.c.h.b16 %v622
    %v2773 = vunpack.c.l.b16 %v623
    %v2774 = vunpack.c.h.b16 %v623
    %v2775 = vunpack.c.l.b16 %v624
    %v2776 = vunpack.c.h.b16 %v624
    %v2777 = vunpack.c.l.b16 %v625
    %v2778 = vunpack.c.h.b16 %v625
    %v2779 = vunpack.c.l.b16 %v626
    %v2780 = vunpack.c.h.b16 %v626
    %v2781 = vunpack.c.l.b16 %v627
    %v2782 = vunpack.c.h.b16 %v627
    %v2783 = vunpack.c.l.b16 %v628
    %v2784 = vunpack.c.h.b16 %v628
    %v2785 = vunpack.c.l.b16 %v629
    %v2786 = vunpack.c.h.b16 %v629
    %v2787 = vunpack.c.l.b16 %v630
    %v2788 = vunpack.c.h.b16 %v630
    %v2789 = vunpack.c.l.b16 %v631
    %v2790 = vunpack.c.h.b16 %v631
    %v2791 = vunpack.c.l.b16 %v632
    %v2792 = vunpack.c.h.b16 %v632
    %v2793 = vunpack.c.l.b16 %v633
    %v2794 = vunpack.c.h.b16 %v633
    %v2795 = vunpack.c.l.b16 %v634
    %v2796 = vunpack.c.h.b16 %v634
    %v2797 = vunpack.c.l.b16 %v635
    %v2798 = vunpack.c.h.b16 %v635
    %v2799 = vunpack.c.l.b16 %v636
    %v2800 = vunpack.c.h.b16 %v636
    %v2801 = vunpack.c.l.b16 %v637
    %v2802 = vunpack.c.h.b16 %v637
    %v2803 = vunpack.c.l.b16 %v638
    %v2804 = vunpack.c.h.b16 %v638
    %v2805 = vunpack.c.l.b16 %v639
    %v2806 = vunpack.c.h.b16 %v639
    %v2807 = vunpack.c.l.b16 %v640
    %v2808 = vunpack.c.h.b16 %v640
    %v2809 = vunpack.c.l.b16 %v641
    %v2810 = vunpack.c.h.b16 %v641
    %v2811 = vunpack.c.l.b16 %v642
    %v2812 = vunpack.c.h.b16 %v642
    %v2813 = vunpack.c.l.b16 %v643
    %v2814 = vunpack.c.h.b16 %v643
    %v2815 = vunpack.c.l.b16 %v644
    %v2816 = vunpack.c.h.b16 %v644
    %v2817 = vunpack.c.l.b16 %v645
    %v2818 = vunpack.c.h.b16 %v645
    %v2819 = vunpack.c.l.b16 %v646
    %v2820 = vunpack.c.h.b16 %v646
    %v2821 = vunpack.c.l.b16 %v647
    %v2822 = vunpack.c.h.b16 %v647
    %v2823 = vunpack.c.l.b16 %v648
    %v2824 = vunpack.c.h.b16 %v648
    %v2825 = vunpack.c.l.b16 %v649
    %v2826 = vunpack.c.h.b16 %v649
    %v2827 = vunpack.c.l.b16 %v650
    %v2828 = vunpack.c.h.b16 %v650
    %v2829 = vunpack.c.l.b16 %v651
    %v2830 = vunpack.c.h.b16 %v651
    %v2831 = vunpack.c.l.b16 %v652
    %v2832 = vunpack.c.h.b16 %v652
    %v2833 = vunpack.c.l.b16 %v653
    %v2834 = vunpack.c.h.b16 %v653
    %v2835 = vunpack.c.l.b16 %v654
    %v2836 = vunpack.c.h.b16 %v654
    %v2837 = vunpack.c.l.b16 %v655
    %v2838 = vunpack.c.h.b16 %v655
    %v2839 = vunpack.c.l.b16 %v656
    %v2840 = vunpack.c.h.b16 %v656
    %v2841 = vunpack.c.l.b16 %v657
    %v2842 = vunpack.c.h.b16 %v657
    %v2843 = vunpack.c.l.b16 %v658
    %v2844 = vunpack.c.h.b16 %v658
    %v2845 = vunpack.c.l.b16 %v659
    %v2846 = vunpack.c.h.b16 %v659
    %v2847 = vunpack.c.l.b16 %v660
    %v2848 = vunpack.c.h.b16 %v660
    %v2849 = vunpack.c.l.b16 %v661
    %v2850 = vunpack.c.h.b16 %v661
    %v2851 = vunpack.c.l.b16 %v662
    %v2852 = vunpack.c.h.b16 %v662
    %v2853 = vunpack.c.l.b16 %v663
    %v2854 = vunpack.c.h.b16 %v663
    %v2855 = vunpack.c.l.b16 %v664
    %v2856 = vunpack.c.h.b16 %v664
    %v2857 = vunpack.c.l.b16 %v665
    %v2858 = vunpack.c.h.b16 %v665
    %v2859 = vunpack.c.l.b16 %v666
    %v2860 = vunpack.c.h.b16 %v666
    %v2861 = vunpack.c.l.b16 %v667
    %v2862 = vunpack.c.h.b16 %v667
    %v2863 = vunpack.c.l.b16 %v668
    %v2864 = vunpack.c.h.b16 %v668
    %v2865 = vunpack.c.l.b16 %v669
    %v2866 = vunpack.c.h.b16 %v669
    %v2867 = vunpack.c.l.b16 %v670
    %v2868 = vunpack.c.h.b16 %v670
    %v2869 = vunpack.c.l.b16 %v671
    %v2870 = vunpack.c.h.b16 %v671
    %v2871 = vunpack.c.l.b16 %v672
    %v2872 = vunpack.c.h.b16 %v672
    %v2873 = vunpack.c.l.b16 %v673
    %v2874 = vunpack.c.h.b16 %v673
    %v2875 = vunpack.c.l.b16 %v674
    %v2876 = vunpack.c.h.b16 %v674
    %v2877 = vunpack.c.l.b16 %v675
    %v2878 = vunpack.c.h.b16 %v675
    %v2879 = vunpack.c.l.b16 %v676
    %v2880 = vunpack.c.h.b16 %v676
    %v2881 = vunpack.c.l.b16 %v677
    %v2882 = vunpack.c.h.b16 %v677
    %v2883 = vunpack.c.l.b16 %v678
    %v2884 = vunpack.c.h.b16 %v678
    %v2885 = vunpack.c.l.b16 %v679
    %v2886 = vunpack.c.h.b16 %v679
    %v2887 = vunpack.c.l.b16 %v680
    %v2888 = vunpack.c.h.b16 %v680
    %v2889 = vunpack.c.l.b16 %v681
    %v2890 = vunpack.c.h.b16 %v681
    %v2891 = vunpack.c.l.b16 %v682
    %v2892 = vunpack.c.h.b16 %v682
    %v2893 = vunpack.c.l.b16 %v683
    %v2894 = vunpack.c.h.b16 %v683
    %v2895 = vunpack.c.l.b16 %v684
    %v2896 = vunpack.c.h.b16 %v684
    %v2897 = vunpack.c.l.b16 %v685
    %v2898 = vunpack.c.h.b16 %v685
    %v2899 = vunpack.c.l.b16 %v686
    %v2900 = vunpack.c.h.b16 %v686
    %v2901 = vunpack.c.l.b16 %v687
    %v2902 = vunpack.c.h.b16 %v687
    %v2903 = vunpack.c.l.b16 %v688
    %v2904 = vunpack.c.h.b16 %v688
    %v2905 = vunpack.c.l.b16 %v689
    %v2906 = vunpack.c.h.b16 %v689
    %v2907 = vunpack.c.l.b16 %v690
    %v2908 = vunpack.c.h.b16 %v690
    %v2909 = vunpack.c.l.b16 %v691
    %v2910 = vunpack.c.h.b16 %v691
    %v2911 = vunpack.c.l.b16 %v692
    %v2912 = vunpack.c.h.b16 %v692
    %v2913 = vunpack.c.l.b16 %v693
    %v2914 = vunpack.c.h.b16 %v693
    %v2915 = vunpack.c.l.b16 %v694
    %v2916 = vunpack.c.h.b16 %v694
    %v2917 = vunpack.c.l.b16 %v695
    %v2918 = vunpack.c.h.b16 %v695
    %v2919 = vunpack.c.l.b16 %v696
    %v2920 = vunpack.c.h.b16 %v696
    %v2921 = vunpack.c.l.b16 %v697
    %v2922 = vunpack.c.h.b16 %v697
    %v2923 = vunpack.c.l.b16 %v698
    %v2924 = vunpack.c.h.b16 %v698
    %v2925 = vunpack.c.l.b16 %v699
    %v2926 = vunpack.c.h.b16 %v699
    %v2927 = vunpack.c.l.b16 %v700
    %v2928 = vunpack.c.h.b16 %v700
    %v2929 = vunpack.c.l.b16 %v701
    %v2930 = vunpack.c.h.b16 %v701
    %v2931 = vunpack.c.l.b16 %v702
    %v2932 = vunpack.c.h.b16 %v702
    %v2933 = vunpack.c.l.b16 %v703
    %v2934 = vunpack.c.h.b16 %v703
    %v2935 = vunpack.c.l.b16 %v704
    %v2936 = vunpack.c.h.b16 %v704
    %v2937 = vunpack.c.l.b16 %v705
    %v2938 = vunpack.c.h.b16 %v705
    %v2939 = vunpack.c.l.b16 %v706
    %v2940 = vunpack.c.h.b16 %v706
    %v2941 = vunpack.c.l.b16 %v707
    %v2942 = vunpack.c.h.b16 %v707
    %v2943 = vunpack.c.l.b16 %v708
    %v2944 = vunpack.c.h.b16 %v708
    %v2945 = vunpack.c.l.b16 %v709
    %v2946 = vunpack.c.h.b16 %v709
    %v2947 = vunpack.c.l.b16 %v710
    %v2948 = vunpack.c.h.b16 %v710
    %v2949 = vunpack.c.l.b16 %v711
    %v2950 = vunpack.c.h.b16 %v711
    %v2951 = vunpack.c.l.b16 %v712
    %v2952 = vunpack.c.h.b16 %v712
    %v2953 = vunpack.c.l.b16 %v713
    %v2954 = vunpack.c.h.b16 %v713
    %v2955 = vunpack.c.l.b16 %v714
    %v2956 = vunpack.c.h.b16 %v714
    %v2957 = vunpack.c.l.b16 %v715
    %v2958 = vunpack.c.h.b16 %v715
    %v2959 = vunpack.c.l.b16 %v716
    %v2960 = vunpack.c.h.b16 %v716
    %v2961 = vunpack.c.l.b16 %v717
    %v2962 = vunpack.c.h.b16 %v717
    %v2963 = vunpack.c.l.b16 %v718
    %v2964 = vunpack.c.h.b16 %v718
    %v2965 = vunpack.c.l.b16 %v719
    %v2966 = vunpack.c.h.b16 %v719
    %v2967 = vunpack.c.l.b16 %v720
    %v2968 = vunpack.c.h.b16 %v720
    %v2969 = vunpack.c.l.b16 %v721
    %v2970 = vunpack.c.h.b16 %v721
    %v2971 = vunpack.c.l.b16 %v722
    %v2972 = vunpack.c.h.b16 %v722
    %v2973 = vunpack.c.l.b16 %v723
    %v2974 = vunpack.c.h.b16 %v723
    %v2975 = vunpack.c.l.b16 %v724
    %v2976 = vunpack.c.h.b16 %v724
    %v2977 = vunpack.c.l.b16 %v725
    %v2978 = vunpack.c.h.b16 %v725
    %v2979 = vunpack.c.l.b16 %v726
    %v2980 = vunpack.c.h.b16 %v726
    %v2981 = vunpack.c.l.b16 %v727
    %v2982 = vunpack.c.h.b16 %v727
    %v2983 = vunpack.c.l.b16 %v728
    %v2984 = vunpack.c.h.b16 %v728
    %v2985 = vunpack.c.l.b16 %v729
    %v2986 = vunpack.c.h.b16 %v729
    %v2987 = vunpack.c.l.b16 %v730
    %v2988 = vunpack.c.h.b16 %v730
    %v2989 = vunpack.c.l.b16 %v731
    %v2990 = vunpack.c.h.b16 %v731
    %v2991 = vunpack.c.l.b16 %v732
    %v2992 = vunpack.c.h.b16 %v732
    %v2993 = vunpack.c.l.b16 %v733
    %v2994 = vunpack.c.h.b16 %v733
    %v2995 = vunpack.c.l.b16 %v734
    %v2996 = vunpack.c.h.b16 %v734
    %v2997 = vunpack.c.l.b16 %v735
    %v2998 = vunpack.c.h.b16 %v735
    %v2999 = vunpack.c.l.b16 %v736
    %v3000 = vunpack.c.h.b16 %v736
    %v3001 = vunpack.c.l.b16 %v737
    %v3002 = vunpack.c.h.b16 %v737
    %v3003 = vunpack.c.l.b16 %v738
    %v3004 = vunpack.c.h.b16 %v738
    %v3005 = vunpack.c.l.b16 %v739
    %v3006 = vunpack.c.h.b16 %v739
    %v3007 = vunpack.c.l.b16 %v740
    %v3008 = vunpack.c.h.b16 %v740
    %v3009 = vunpack.c.l.b16 %v741
    %v3010 = vunpack.c.h.b16 %v741
    %v3011 = vunpack.c.l.b16 %v742
    %v3012 = vunpack.c.h.b16 %v742
    %v3013 = vunpack.c.l.b16 %v743
    %v3014 = vunpack.c.h.b16 %v743
    %v3015 = vunpack.c.l.b16 %v744
    %v3016 = vunpack.c.h.b16 %v744
    %v3017 = vunpack.c.l.b16 %v745
    %v3018 = vunpack.c.h.b16 %v745
    %v3019 = vunpack.c.l.b16 %v746
    %v3020 = vunpack.c.h.b16 %v746
    %v3021 = vunpack.c.l.b16 %v747
    %v3022 = vunpack.c.h.b16 %v747
    %v3023 = vunpack.c.l.b16 %v748
    %v3024 = vunpack.c.h.b16 %v748
    %v3025 = vunpack.c.l.b16 %v749
    %v3026 = vunpack.c.h.b16 %v749
    %v3027 = vunpack.c.l.b16 %v750
    %v3028 = vunpack.c.h.b16 %v750
    %v3029 = vunpack.c.l.b16 %v751
    %v3030 = vunpack.c.h.b16 %v751
    %v3031 = vunpack.c.l.b16 %v752
    %v3032 = vunpack.c.h.b16 %v752
    %v3033 = vunpack.c.l.b16 %v753
    %v3034 = vunpack.c.h.b16 %v753
    %v3035 = vunpack.c.l.b16 %v754
    %v3036 = vunpack.c.h.b16 %v754
    %v3037 = vunpack.c.l.b16 %v755
    %v3038 = vunpack.c.h.b16 %v755
    %v3039 = vunpack.c.l.b16 %v756
    %v3040 = vunpack.c.h.b16 %v756
    %v3041 = vunpack.c.l.b16 %v757
    %v3042 = vunpack.c.h.b16 %v757
    %v3043 = vunpack.c.l.b16 %v758
    %v3044 = vunpack.c.h.b16 %v758
    %v3045 = vunpack.c.l.b16 %v759
    %v3046 = vunpack.c.h.b16 %v759
    %v3047 = vunpack.c.l.b16 %v760
    %v3048 = vunpack.c.h.b16 %v760
    %v3049 = vunpack.c.l.b16 %v761
    %v3050 = vunpack.c.h.b16 %v761
    %v3051 = vunpack.c.l.b16 %v762
    %v3052 = vunpack.c.h.b16 %v762
    %v3053 = vunpack.c.l.b16 %v763
    %v3054 = vunpack.c.h.b16 %v763
    %v3055 = vunpack.c.l.b16 %v764
    %v3056 = vunpack.c.h.b16 %v764
    %v3057 = vunpack.c.l.b16 %v765
    %v3058 = vunpack.c.h.b16 %v765
    %v3059 = vunpack.c.l.b16 %v766
    %v3060 = vunpack.c.h.b16 %v766
    %v3061 = vunpack.c.l.b16 %v767
    %v3062 = vunpack.c.h.b16 %v767
    %v3063 = vunpack.c.l.b16 %v768
    %v3064 = vunpack.c.h.b16 %v768
    %v3065 = vunpack.c.l.b16 %v769
    %v3066 = vunpack.c.h.b16 %v769
    %v3067 = vunpack.c.l.b16 %v770
    %v3068 = vunpack.c.h.b16 %v770
    %v3069 = vunpack.c.l.b16 %v771
    %v3070 = vunpack.c.h.b16 %v771
    %v3071 = vunpack.c.l.b16 %v772
    %v3072 = vunpack.c.h.b16 %v772
    %v3073 = vunpack.c.l.b16 %v773
    %v3074 = vunpack.c.h.b16 %v773
    %v3075 = vunpack.c.l.b16 %v774
    %v3076 = vunpack.c.h.b16 %v774
    %v3077 = vunpack.c.l.b16 %v775
    %v3078 = vunpack.c.h.b16 %v775
    %v3079 = vunpack.c.l.b16 %v776
    %v3080 = vunpack.c.h.b16 %v776
    %v3081 = vunpack.c.l.b16 %v777
    %v3082 = vunpack.c.h.b16 %v777
    %v3083 = vunpack.c.l.b16 %v778
    %v3084 = vunpack.c.h.b16 %v778
    %v3085 = vunpack.c.l.b16 %v779
    %v3086 = vunpack.c.h.b16 %v779
    %v3087 = vunpack.c.l.b16 %v780
    %v3088 = vunpack.c.h.b16 %v780
    %v3089 = vunpack.c.l.b16 %v781
    %v3090 = vunpack.c.h.b16 %v781
    %v3091 = vunpack.c.l.b16 %v782
    %v3092 = vunpack.c.h.b16 %v782
    %v3093 = vunpack.c.l.b16 %v783
    %v3094 = vunpack.c.h.b16 %v783
    %v3095 = vunpack.c.l.b16 %v784
    %v3096 = vunpack.c.h.b16 %v784
    %v3097 = vunpack.c.l.b16 %v785
    %v3098 = vunpack.c.h.b16 %v785
    %v3099 = vunpack.c.l.b16 %v786
    %v3100 = vunpack.c.h.b16 %v786
    %v3101 = vunpack.c.l.b16 %v787
    %v3102 = vunpack.c.h.b16 %v787
    %v3103 = vunpack.c.l.b16 %v788
    %v3104 = vunpack.c.h.b16 %v788
    %v3105 = vunpack.c.l.b16 %v789
    %v3106 = vunpack.c.h.b16 %v789
    %v3107 = vunpack.c.l.b16 %v790
    %v3108 = vunpack.c.h.b16 %v790
    %v3109 = vunpack.c.l.b16 %v791
    %v3110 = vunpack.c.h.b16 %v791
    %v3111 = vunpack.c.l.b16 %v792
    %v3112 = vunpack.c.h.b16 %v792
    %v3113 = vunpack.c.l.b16 %v793
    %v3114 = vunpack.c.h.b16 %v793
    %v3115 = vunpack.c.l.b16 %v794
    %v3116 = vunpack.c.h.b16 %v794
    %v3117 = vunpack.c.l.b16 %v795
    %v3118 = vunpack.c.h.b16 %v795
    %v3119 = vunpack.c.l.b16 %v796
    %v3120 = vunpack.c.h.b16 %v796
    %v3121 = vunpack.c.l.b16 %v797
    %v3122 = vunpack.c.h.b16 %v797
    %v3123 = vunpack.c.l.b16 %v798
    %v3124 = vunpack.c.h.b16 %v798
    %v3125 = vunpack.c.l.b16 %v799
    %v3126 = vunpack.c.h.b16 %v799
    %v3127 = vunpack.c.l.b16 %v800
    %v3128 = vunpack.c.h.b16 %v800
    %v3129 = vunpack.c.l.b16 %v801
    %v3130 = vunpack.c.h.b16 %v801
    %v3131 = vunpack.c.l.b16 %v802
    %v3132 = vunpack.c.h.b16 %v802
    %v3133 = vunpack.c.l.b16 %v803
    %v3134 = vunpack.c.h.b16 %v803
    %v3135 = vunpack.c.l.b16 %v804
    %v3136 = vunpack.c.h.b16 %v804
    %v3137 = vunpack.c.l.b16 %v805
    %v3138 = vunpack.c.h.b16 %v805
    %v3139 = vunpack.c.l.b16 %v806
    %v3140 = vunpack.c.h.b16 %v806
    %v3141 = vunpack.c.l.b16 %v807
    %v3142 = vunpack.c.h.b16 %v807
    %v3143 = vunpack.c.l.b16 %v808
    %v3144 = vunpack.c.h.b16 %v808
    %v3145 = vunpack.c.l.b16 %v809
    %v3146 = vunpack.c.h.b16 %v809
    %v3147 = vunpack.c.l.b16 %v810
    %v3148 = vunpack.c.h.b16 %v810
    %v3149 = vunpack.c.l.b16 %v811
    %v3150 = vunpack.c.h.b16 %v811
    %v3151 = vunpack.c.l.b16 %v812
    %v3152 = vunpack.c.h.b16 %v812
    %v3153 = vunpack.c.l.b16 %v813
    %v3154 = vunpack.c.h.b16 %v813
    %v3155 = vunpack.c.l.b16 %v814
    %v3156 = vunpack.c.h.b16 %v814
    %v3157 = vunpack.c.l.b16 %v815
    %v3158 = vunpack.c.h.b16 %v815
    %v3159 = vunpack.c.l.b16 %v816
    %v3160 = vunpack.c.h.b16 %v816
    %v3161 = vunpack.c.l.b16 %v817
    %v3162 = vunpack.c.h.b16 %v817
    %v3163 = vunpack.c.l.b16 %v818
    %v3164 = vunpack.c.h.b16 %v818
    %v3165 = vunpack.c.l.b16 %v819
    %v3166 = vunpack.c.h.b16 %v819
    %v3167 = vunpack.c.l.b16 %v820
    %v3168 = vunpack.c.h.b16 %v820
    %v3169 = vunpack.c.l.b16 %v821
    %v3170 = vunpack.c.h.b16 %v821
    %v3171 = vunpack.c.l.b16 %v822
    %v3172 = vunpack.c.h.b16 %v822
    %v3173 = vunpack.c.l.b16 %v823
    %v3174 = vunpack.c.h.b16 %v823
    %v3175 = vunpack.c.l.b16 %v824
    %v3176 = vunpack.c.h.b16 %v824
    %v3177 = vunpack.c.l.b16 %v825
    %v3178 = vunpack.c.h.b16 %v825
    %v3179 = vunpack.c.l.b16 %v826
    %v3180 = vunpack.c.h.b16 %v826
    %v3181 = vpack.c.b16 %v1661, %v1645
    %v3182 = vpack.c.b16 %v1662, %v1646
    %v3183 = vpack.c.b16 %v1663, %v1647
    %v3184 = vpack.c.b16 %v1664, %v1648
    %v3185 = vpack.c.b16 %v1665, %v1649
    %v3186 = vpack.c.b16 %v1666, %v1650
    %v3187 = vpack.c.b16 %v1667, %v1651
    %v3188 = vpack.c.b16 %v1668, %v1652
    %v3189 = vpack.c.b16 %v1669, %v1653
    %v3190 = vpack.c.b16 %v1670, %v1654
    %v3191 = vpack.c.b16 %v1671, %v1655
    %v3192 = vpack.c.b16 %v1672, %v1656
    %v3193 = vpack.c.b16 %v1673, %v1657
    %v3194 = vpack.c.b16 %v1674, %v1658
    %v3195 = vpack.c.b16 %v1675, %v1659
    %v3196 = vpack.c.b16 %v1676, %v1660
    %v3197 = vpack.c.b16 %v1693, %v1677
    %v3198 = vpack.c.b16 %v1694, %v1678
    %v3199 = vpack.c.b16 %v1695, %v1679
    %v3200 = vpack.c.b16 %v1696, %v1680
    %v3201 = vpack.c.b16 %v1697, %v1681
    %v3202 = vpack.c.b16 %v1698, %v1682
    %v3203 = vpack.c.b16 %v1699, %v1683
    %v3204 = vpack.c.b16 %v1700, %v1684
    %v3205 = vpack.c.b16 %v1701, %v1685
    %v3206 = vpack.c.b16 %v1702, %v1686
    %v3207 = vpack.c.b16 %v1703, %v1687
    %v3208 = vpack.c.b16 %v1704, %v1688
    %v3209 = vpack.c.b16 %v1705, %v1689
    %v3210 = vpack.c.b16 %v1706, %v1690
    %v3211 = vpack.c.b16 %v1707, %v1691
    %v3212 = vpack.c.b16 %v1708, %v1692
    %v3213 = vpack.c.b16 %v1725, %v1709
    %v3214 = vpack.c.b16 %v1726, %v1710
    %v3215 = vpack.c.b16 %v1727, %v1711
    %v3216 = vpack.c.b16 %v1728, %v1712
    %v3217 = vpack.c.b16 %v1729, %v1713
    %v3218 = vpack.c.b16 %v1730, %v1714
    %v3219 = vpack.c.b16 %v1731, %v1715
    %v3220 = vpack.c.b16 %v1732, %v1716
    %v3221 = vpack.c.b16 %v1733, %v1717
    %v3222 = vpack.c.b16 %v1734, %v1718
    %v3223 = vpack.c.b16 %v1735, %v1719
    %v3224 = vpack.c.b16 %v1736, %v1720
    %v3225 = vpack.c.b16 %v1737, %v1721
    %v3226 = vpack.c.b16 %v1738, %v1722
    %v3227 = vpack.c.b16 %v1739, %v1723
    %v3228 = vpack.c.b16 %v1740, %v1724
    %v3229 = vpack.c.b16 %v1757, %v1741
    %v3230 = vpack.c.b16 %v1758, %v1742
    %v3231 = vpack.c.b16 %v1759, %v1743
    %v3232 = vpack.c.b16 %v1760, %v1744
    %v3233 = vpack.c.b16 %v1761, %v1745
    %v3234 = vpack.c.b16 %v1762, %v1746
    %v3235 = vpack.c.b16 %v1763, %v1747
    %v3236 = vpack.c.b16 %v1764, %v1748
    %v3237 = vpack.c.b16 %v1765, %v1749
    %v3238 = vpack.c.b16 %v1766, %v1750
    %v3239 = vpack.c.b16 %v1767, %v1751
    %v3240 = vpack.c.b16 %v1768, %v1752
    %v3241 = vpack.c.b16 %v1769, %v1753
    %v3242 = vpack.c.b16 %v1770, %v1754
    %v3243 = vpack.c.b16 %v1771, %v1755
    %v3244 = vpack.c.b16 %v1772, %v1756
    %v3245 = vpack.c.b16 %v1789, %v1773
    %v3246 = vpack.c.b16 %v1790, %v1774
    %v3247 = vpack.c.b16 %v1791, %v1775
    %v3248 = vpack.c.b16 %v1792, %v1776
    %v3249 = vpack.c.b16 %v1793, %v1777
    %v3250 = vpack.c.b16 %v1794, %v1778
    %v3251 = vpack.c.b16 %v1795, %v1779
    %v3252 = vpack.c.b16 %v1796, %v1780
    %v3253 = vpack.c.b16 %v1797, %v1781
    %v3254 = vpack.c.b16 %v1798, %v1782
    %v3255 = vpack.c.b16 %v1799, %v1783
    %v3256 = vpack.c.b16 %v1800, %v1784
    %v3257 = vpack.c.b16 %v1801, %v1785
    %v3258 = vpack.c.b16 %v1802, %v1786
    %v3259 = vpack.c.b16 %v1803, %v1787
    %v3260 = vpack.c.b16 %v1804, %v1788
    %v3261 = vpack.c.b16 %v1821, %v1805
    %v3262 = vpack.c.b16 %v1822, %v1806
    %v3263 = vpack.c.b16 %v1823, %v1807
    %v3264 = vpack.c.b16 %v1824, %v1808
    %v3265 = vpack.c.b16 %v1825, %v1809
    %v3266 = vpack.c.b16 %v1826, %v1810
    %v3267 = vpack.c.b16 %v1827, %v1811
    %v3268 = vpack.c.b16 %v1828, %v1812
    %v3269 = vpack.c.b16 %v1829, %v1813
    %v3270 = vpack.c.b16 %v1830, %v1814
    %v3271 = vpack.c.b16 %v1831, %v1815
    %v3272 = vpack.c.b16 %v1832, %v1816
    %v3273 = vpack.c.b16 %v1833, %v1817
    %v3274 = vpack.c.b16 %v1834, %v1818
    %v3275 = vpack.c.b16 %v1835, %v1819
    %v3276 = vpack.c.b16 %v1836, %v1820
    %v3277 = vpack.c.b16 %v1853, %v1837
    %v3278 = vpack.c.b16 %v1854, %v1838
    %v3279 = vpack.c.b16 %v1855, %v1839
    %v3280 = vpack.c.b16 %v1856, %v1840
    %v3281 = vpack.c.b16 %v1857, %v1841
    %v3282 = vpack.c.b16 %v1858, %v1842
    %v3283 = vpack.c.b16 %v1859, %v1843
    %v3284 = vpack.c.b16 %v1860, %v1844
    %v3285 = vpack.c.b16 %v1861, %v1845
    %v3286 = vpack.c.b16 %v1862, %v1846
    %v3287 = vpack.c.b16 %v1863, %v1847
    %v3288 = vpack.c.b16 %v1864, %v1848
    %v3289 = vpack.c.b16 %v1865, %v1849
    %v3290 = vpack.c.b16 %v1866, %v1850
    %v3291 = vpack.c.b16 %v1867, %v1851
    %v3292 = vpack.c.b16 %v1868, %v1852
    %v3293 = vpack.c.b16 %v1885, %v1869
    %v3294 = vpack.c.b16 %v1886, %v1870
    %v3295 = vpack.c.b16 %v1887, %v1871
    %v3296 = vpack.c.b16 %v1888, %v1872
    %v3297 = vpack.c.b16 %v1889, %v1873
    %v3298 = vpack.c.b16 %v1890, %v1874
    %v3299 = vpack.c.b16 %v1891, %v1875
    %v3300 = vpack.c.b16 %v1892, %v1876
    %v3301 = vpack.c.b16 %v1893, %v1877
    %v3302 = vpack.c.b16 %v1894, %v1878
    %v3303 = vpack.c.b16 %v1895, %v1879
    %v3304 = vpack.c.b16 %v1896, %v1880
    %v3305 = vpack.c.b16 %v1897, %v1881
    %v3306 = vpack.c.b16 %v1898, %v1882
    %v3307 = vpack.c.b16 %v1899, %v1883
    %v3308 = vpack.c.b16 %v1900, %v1884
    %v3309 = vpack.c.b16 %v1917, %v1901
    %v3310 = vpack.c.b16 %v1918, %v1902
    %v3311 = vpack.c.b16 %v1919, %v1903
    %v3312 = vpack.c.b16 %v1920, %v1904
    %v3313 = vpack.c.b16 %v1921, %v1905
    %v3314 = vpack.c.b16 %v1922, %v1906
    %v3315 = vpack.c.b16 %v1923, %v1907
    %v3316 = vpack.c.b16 %v1924, %v1908
    %v3317 = vpack.c.b16 %v1925, %v1909
    %v3318 = vpack.c.b16 %v1926, %v1910
    %v3319 = vpack.c.b16 %v1927, %v1911
    %v3320 = vpack.c.b16 %v1928, %v1912
    %v3321 = vpack.c.b16 %v1929, %v1913
    %v3322 = vpack.c.b16 %v1930, %v1914
    %v3323 = vpack.c.b16 %v1931, %v1915
    %v3324 = vpack.c.b16 %v1932, %v1916
    %v3325 = vpack.c.b16 %v1949, %v1933
    %v3326 = vpack.c.b16 %v1950, %v1934
    %v3327 = vpack.c.b16 %v1951, %v1935
    %v3328 = vpack.c.b16 %v1952, %v1936
    %v3329 = vpack.c.b16 %v1953, %v1937
    %v3330 = vpack.c.b16 %v1954, %v1938
    %v3331 = vpack.c.b16 %v1955, %v1939
    %v3332 = vpack.c.b16 %v1956, %v1940
    %v3333 = vpack.c.b16 %v1957, %v1941
    %v3334 = vpack.c.b16 %v1958, %v1942
    %v3335 = vpack.c.b16 %v1959, %v1943
    %v3336 = vpack.c.b16 %v1960, %v1944
    %v3337 = vpack.c.b16 %v1961, %v1945
    %v3338 = vpack.c.b16 %v1962, %v1946
    %v3339 = vpack.c.b16 %v1963, %v1947
    %v3340 = vpack.c.b16 %v1964, %v1948
    %v3341 = vpack.c.b16 %v1981, %v1965
    %v3342 = vpack.c.b16 %v1982, %v1966
    %v3343 = vpack.c.b16 %v1983, %v1967
    %v3344 = vpack.c.b16 %v1984, %v1968
    %v3345 = vpack.c.b16 %v1985, %v1969
    %v3346 = vpack.c.b16 %v1986, %v1970
    %v3347 = vpack.c.b16 %v1987, %v1971
    %v3348 = vpack.c.b16 %v1988, %v1972
    %v3349 = vpack.c.b16 %v1989, %v1973
    %v3350 = vpack.c.b16 %v1990, %v1974
    %v3351 = vpack.c.b16 %v1991, %v1975
    %v3352 = vpack.c.b16 %v1992, %v1976
    %v3353 = vpack.c.b16 %v1993, %v1977
    %v3354 = vpack.c.b16 %v1994, %v1978
    %v3355 = vpack.c.b16 %v1995, %v1979
    %v3356 = vpack.c.b16 %v1996, %v1980
    %v3357 = vpack.c.b16 %v2013, %v1997
    %v3358 = vpack.c.b16 %v2014, %v1998
    %v3359 = vpack.c.b16 %v2015, %v1999
    %v3360 = vpack.c.b16 %v2016, %v2000
    %v3361 = vpack.c.b16 %v2017, %v2001
    %v3362 = vpack.c.b16 %v2018, %v2002
    %v3363 = vpack.c.b16 %v2019, %v2003
    %v3364 = vpack.c.b16 %v2020, %v2004
    %v3365 = vpack.c.b16 %v2021, %v2005
    %v3366 = vpack.c.b16 %v2022, %v2006
    %v3367 = vpack.c.b16 %v2023, %v2007
    %v3368 = vpack.c.b16 %v2024, %v2008
    %v3369 = vpack.c.b16 %v2025, %v2009
    %v3370 = vpack.c.b16 %v2026, %v2010
    %v3371 = vpack.c.b16 %v2027, %v2011
    %v3372 = vpack.c.b16 %v2028, %v2012
    %v3373 = vpack.c.b16 %v2045, %v2029
    %v3374 = vpack.c.b16 %v2046, %v2030
    %v3375 = vpack.c.b16 %v2047, %v2031
    %v3376 = vpack.c.b16 %v2048, %v2032
    %v3377 = vpack.c.b16 %v2049, %v2033
    %v3378 = vpack.c.b16 %v2050, %v2034
    %v3379 = vpack.c.b16 %v2051, %v2035
    %v3380 = vpack.c.b16 %v2052, %v2036
    %v3381 = vpack.c.b16 %v2053, %v2037
    %v3382 = vpack.c.b16 %v2054, %v2038
    %v3383 = vpack.c.b16 %v2055, %v2039
    %v3384 = vpack.c.b16 %v2056, %v2040
    %v3385 = vpack.c.b16 %v2057, %v2041
    %v3386 = vpack.c.b16 %v2058, %v2042
    %v3387 = vpack.c.b16 %v2059, %v2043
    %v3388 = vpack.c.b16 %v2060, %v2044
    %v3389 = vpack.c.b16 %v2077, %v2061
    %v3390 = vpack.c.b16 %v2078, %v2062
    %v3391 = vpack.c.b16 %v2079, %v2063
    %v3392 = vpack.c.b16 %v2080, %v2064
    %v3393 = vpack.c.b16 %v2081, %v2065
    %v3394 = vpack.c.b16 %v2082, %v2066
    %v3395 = vpack.c.b16 %v2083, %v2067
    %v3396 = vpack.c.b16 %v2084, %v2068
    %v3397 = vpack.c.b16 %v2085, %v2069
    %v3398 = vpack.c.b16 %v2086, %v2070
    %v3399 = vpack.c.b16 %v2087, %v2071
    %v3400 = vpack.c.b16 %v2088, %v2072
    %v3401 = vpack.c.b16 %v2089, %v2073
    %v3402 = vpack.c.b16 %v2090, %v2074
    %v3403 = vpack.c.b16 %v2091, %v2075
    %v3404 = vpack.c.b16 %v2092, %v2076
    %v3405 = vpack.c.b16 %v2109, %v2093
    %v3406 = vpack.c.b16 %v2110, %v2094
    %v3407 = vpack.c.b16 %v2111, %v2095
    %v3408 = vpack.c.b16 %v2112, %v2096
    %v3409 = vpack.c.b16 %v2113, %v2097
    %v3410 = vpack.c.b16 %v2114, %v2098
    %v3411 = vpack.c.b16 %v2115, %v2099
    %v3412 = vpack.c.b16 %v2116, %v2100
    %v3413 = vpack.c.b16 %v2117, %v2101
    %v3414 = vpack.c.b16 %v2118, %v2102
    %v3415 = vpack.c.b16 %v2119, %v2103
    %v3416 = vpack.c.b16 %v2120, %v2104
    %v3417 = vpack.c.b16 %v2121, %v2105
    %v3418 = vpack.c.b16 %v2122, %v2106
    %v3419 = vpack.c.b16 %v2123, %v2107
    %v3420 = vpack.c.b16 %v2124, %v2108
    %v3421 = vpack.c.b16 %v2141, %v2125
    %v3422 = vpack.c.b16 %v2142, %v2126
    %v3423 = vpack.c.b16 %v2143, %v2127
    %v3424 = vpack.c.b16 %v2144, %v2128
    %v3425 = vpack.c.b16 %v2145, %v2129
    %v3426 = vpack.c.b16 %v2146, %v2130
    %v3427 = vpack.c.b16 %v2147, %v2131
    %v3428 = vpack.c.b16 %v2148, %v2132
    %v3429 = vpack.c.b16 %v2149, %v2133
    %v3430 = vpack.c.b16 %v2150, %v2134
    %v3431 = vpack.c.b16 %v2151, %v2135
    %v3432 = vpack.c.b16 %v2152, %v2136
    %v3433 = vpack.c.b16 %v2153, %v2137
    %v3434 = vpack.c.b16 %v2154, %v2138
    %v3435 = vpack.c.b16 %v2155, %v2139
    %v3436 = vpack.c.b16 %v2156, %v2140
    %v3437 = vpack.c.b16 %v2173, %v2157
    %v3438 = vpack.c.b16 %v2174, %v2158
    %v3439 = vpack.c.b16 %v2175, %v2159
    %v3440 = vpack.c.b16 %v2176, %v2160
    %v3441 = vpack.c.b16 %v2177, %v2161
    %v3442 = vpack.c.b16 %v2178, %v2162
    %v3443 = vpack.c.b16 %v2179, %v2163
    %v3444 = vpack.c.b16 %v2180, %v2164
    %v3445 = vpack.c.b16 %v2181, %v2165
    %v3446 = vpack.c.b16 %v2182, %v2166
    %v3447 = vpack.c.b16 %v2183, %v2167
    %v3448 = vpack.c.b16 %v2184, %v2168
    %v3449 = vpack.c.b16 %v2185, %v2169
    %v3450 = vpack.c.b16 %v2186, %v2170
    %v3451 = vpack.c.b16 %v2187, %v2171
    %v3452 = vpack.c.b16 %v2188, %v2172
    %v3453 = vpack.c.b16 %v2205, %v2189
    %v3454 = vpack.c.b16 %v2206, %v2190
    %v3455 = vpack.c.b16 %v2207, %v2191
    %v3456 = vpack.c.b16 %v2208, %v2192
    %v3457 = vpack.c.b16 %v2209, %v2193
    %v3458 = vpack.c.b16 %v2210, %v2194
    %v3459 = vpack.c.b16 %v2211, %v2195
    %v3460 = vpack.c.b16 %v2212, %v2196
    %v3461 = vpack.c.b16 %v2213, %v2197
    %v3462 = vpack.c.b16 %v2214, %v2198
    %v3463 = vpack.c.b16 %v2215, %v2199
    %v3464 = vpack.c.b16 %v2216, %v2200
    %v3465 = vpack.c.b16 %v2217, %v2201
    %v3466 = vpack.c.b16 %v2218, %v2202
    %v3467 = vpack.c.b16 %v2219, %v2203
    %v3468 = vpack.c.b16 %v2220, %v2204
    %v3469 = vpack.c.b16 %v2237, %v2221
    %v3470 = vpack.c.b16 %v2238, %v2222
    %v3471 = vpack.c.b16 %v2239, %v2223
    %v3472 = vpack.c.b16 %v2240, %v2224
    %v3473 = vpack.c.b16 %v2241, %v2225
    %v3474 = vpack.c.b16 %v2242, %v2226
    %v3475 = vpack.c.b16 %v2243, %v2227
    %v3476 = vpack.c.b16 %v2244, %v2228
    %v3477 = vpack.c.b16 %v2245, %v2229
    %v3478 = vpack.c.b16 %v2246, %v2230
    %v3479 = vpack.c.b16 %v2247, %v2231
    %v3480 = vpack.c.b16 %v2248, %v2232
    %v3481 = vpack.c.b16 %v2249, %v2233
    %v3482 = vpack.c.b16 %v2250, %v2234
    %v3483 = vpack.c.b16 %v2251, %v2235
    %v3484 = vpack.c.b16 %v2252, %v2236
    %v3485 = vpack.c.b16 %v2269, %v2253
    %v3486 = vpack.c.b16 %v2270, %v2254
    %v3487 = vpack.c.b16 %v2271, %v2255
    %v3488 = vpack.c.b16 %v2272, %v2256
    %v3489 = vpack.c.b16 %v2273, %v2257
    %v3490 = vpack.c.b16 %v2274, %v2258
    %v3491 = vpack.c.b16 %v2275, %v2259
    %v3492 = vpack.c.b16 %v2276, %v2260
    %v3493 = vpack.c.b16 %v2277, %v2261
    %v3494 = vpack.c.b16 %v2278, %v2262
    %v3495 = vpack.c.b16 %v2279, %v2263
    %v3496 = vpack.c.b16 %v2280, %v2264
    %v3497 = vpack.c.b16 %v2281, %v2265
    %v3498 = vpack.c.b16 %v2282, %v2266
    %v3499 = vpack.c.b16 %v2283, %v2267
    %v3500 = vpack.c.b16 %v2284, %v2268
    %v3501 = vpack.c.b16 %v2301, %v2285
    %v3502 = vpack.c.b16 %v2302, %v2286
    %v3503 = vpack.c.b16 %v2303, %v2287
    %v3504 = vpack.c.b16 %v2304, %v2288
    %v3505 = vpack.c.b16 %v2305, %v2289
    %v3506 = vpack.c.b16 %v2306, %v2290
    %v3507 = vpack.c.b16 %v2307, %v2291
    %v3508 = vpack.c.b16 %v2308, %v2292
    %v3509 = vpack.c.b16 %v2309, %v2293
    %v3510 = vpack.c.b16 %v2310, %v2294
    %v3511 = vpack.c.b16 %v2311, %v2295
    %v3512 = vpack.c.b16 %v2312, %v2296
    %v3513 = vpack.c.b16 %v2313, %v2297
    %v3514 = vpack.c.b16 %v2314, %v2298
    %v3515 = vpack.c.b16 %v2315, %v2299
    %v3516 = vpack.c.b16 %v2316, %v2300
    %v3517 = vpack.c.b16 %v2333, %v2317
    %v3518 = vpack.c.b16 %v2334, %v2318
    %v3519 = vpack.c.b16 %v2335, %v2319
    %v3520 = vpack.c.b16 %v2336, %v2320
    %v3521 = vpack.c.b16 %v2337, %v2321
    %v3522 = vpack.c.b16 %v2338, %v2322
    %v3523 = vpack.c.b16 %v2339, %v2323
    %v3524 = vpack.c.b16 %v2340, %v2324
    %v3525 = vpack.c.b16 %v2341, %v2325
    %v3526 = vpack.c.b16 %v2342, %v2326
    %v3527 = vpack.c.b16 %v2343, %v2327
    %v3528 = vpack.c.b16 %v2344, %v2328
    %v3529 = vpack.c.b16 %v2345, %v2329
    %v3530 = vpack.c.b16 %v2346, %v2330
    %v3531 = vpack.c.b16 %v2347, %v2331
    %v3532 = vpack.c.b16 %v2348, %v2332
    %v3533 = vpack.c.b16 %v2365, %v2349
    %v3534 = vpack.c.b16 %v2366, %v2350
    %v3535 = vpack.c.b16 %v2367, %v2351
    %v3536 = vpack.c.b16 %v2368, %v2352
    %v3537 = vpack.c.b16 %v2369, %v2353
    %v3538 = vpack.c.b16 %v2370, %v2354
    %v3539 = vpack.c.b16 %v2371, %v2355
    %v3540 = vpack.c.b16 %v2372, %v2356
    %v3541 = vpack.c.b16 %v2373, %v2357
    %v3542 = vpack.c.b16 %v2374, %v2358
    %v3543 = vpack.c.b16 %v2375, %v2359
    %v3544 = vpack.c.b16 %v2376, %v2360
    %v3545 = vpack.c.b16 %v2377, %v2361
    %v3546 = vpack.c.b16 %v2378, %v2362
    %v3547 = vpack.c.b16 %v2379, %v2363
    %v3548 = vpack.c.b16 %v2380, %v2364
    %v3549 = vpack.c.b16 %v2397, %v2381
    %v3550 = vpack.c.b16 %v2398, %v2382
    %v3551 = vpack.c.b16 %v2399, %v2383
    %v3552 = vpack.c.b16 %v2400, %v2384
    %v3553 = vpack.c.b16 %v2401, %v2385
    %v3554 = vpack.c.b16 %v2402, %v2386
    %v3555 = vpack.c.b16 %v2403, %v2387
    %v3556 = vpack.c.b16 %v2404, %v2388
    %v3557 = vpack.c.b16 %v2405, %v2389
    %v3558 = vpack.c.b16 %v2406, %v2390
    %v3559 = vpack.c.b16 %v2407, %v2391
    %v3560 = vpack.c.b16 %v2408, %v2392
    %v3561 = vpack.c.b16 %v2409, %v2393
    %v3562 = vpack.c.b16 %v2410, %v2394
    %v3563 = vpack.c.b16 %v2411, %v2395
    %v3564 = vpack.c.b16 %v2412, %v2396
    %v3565 = vpack.c.b16 %v2429, %v2413
    %v3566 = vpack.c.b16 %v2430, %v2414
    %v3567 = vpack.c.b16 %v2431, %v2415
    %v3568 = vpack.c.b16 %v2432, %v2416
    %v3569 = vpack.c.b16 %v2433, %v2417
    %v3570 = vpack.c.b16 %v2434, %v2418
    %v3571 = vpack.c.b16 %v2435, %v2419
    %v3572 = vpack.c.b16 %v2436, %v2420
    %v3573 = vpack.c.b16 %v2437, %v2421
    %v3574 = vpack.c.b16 %v2438, %v2422
    %v3575 = vpack.c.b16 %v2439, %v2423
    %v3576 = vpack.c.b16 %v2440, %v2424
    %v3577 = vpack.c.b16 %v2441, %v2425
    %v3578 = vpack.c.b16 %v2442, %v2426
    %v3579 = vpack.c.b16 %v2443, %v2427
    %v3580 = vpack.c.b16 %v2444, %v2428
    %v3581 = vpack.c.b16 %v2461, %v2445
    %v3582 = vpack.c.b16 %v2462, %v2446
    %v3583 = vpack.c.b16 %v2463, %v2447
    %v3584 = vpack.c.b16 %v2464, %v2448
    %v3585 = vpack.c.b16 %v2465, %v2449
    %v3586 = vpack.c.b16 %v2466, %v2450
    %v3587 = vpack.c.b16 %v2467, %v2451
    %v3588 = vpack.c.b16 %v2468, %v2452
    %v3589 = vpack.c.b16 %v2469, %v2453
    %v3590 = vpack.c.b16 %v2470, %v2454
    %v3591 = vpack.c.b16 %v2471, %v2455
    %v3592 = vpack.c.b16 %v2472, %v2456
    %v3593 = vpack.c.b16 %v2473, %v2457
    %v3594 = vpack.c.b16 %v2474, %v2458
    %v3595 = vpack.c.b16 %v2475, %v2459
    %v3596 = vpack.c.b16 %v2476, %v2460
    %v3597 = vpack.c.b16 %v2493, %v2477
    %v3598 = vpack.c.b16 %v2494, %v2478
    %v3599 = vpack.c.b16 %v2495, %v2479
    %v3600 = vpack.c.b16 %v2496, %v2480
    %v3601 = vpack.c.b16 %v2497, %v2481
    %v3602 = vpack.c.b16 %v2498, %v2482
    %v3603 = vpack.c.b16 %v2499, %v2483
    %v3604 = vpack.c.b16 %v2500, %v2484
    %v3605 = vpack.c.b16 %v2501, %v2485
    %v3606 = vpack.c.b16 %v2502, %v2486
    %v3607 = vpack.c.b16 %v2503, %v2487
    %v3608 = vpack.c.b16 %v2504, %v2488
    %v3609 = vpack.c.b16 %v2505, %v2489
    %v3610 = vpack.c.b16 %v2506, %v2490
    %v3611 = vpack.c.b16 %v2507, %v2491
    %v3612 = vpack.c.b16 %v2508, %v2492
    %v3613 = vpack.c.b16 %v2525, %v2509
    %v3614 = vpack.c.b16 %v2526, %v2510
    %v3615 = vpack.c.b16 %v2527, %v2511
    %v3616 = vpack.c.b16 %v2528, %v2512
    %v3617 = vpack.c.b16 %v2529, %v2513
    %v3618 = vpack.c.b16 %v2530, %v2514
    %v3619 = vpack.c.b16 %v2531, %v2515
    %v3620 = vpack.c.b16 %v2532, %v2516
    %v3621 = vpack.c.b16 %v2533, %v2517
    %v3622 = vpack.c.b16 %v2534, %v2518
    %v3623 = vpack.c.b16 %v2535, %v2519
    %v3624 = vpack.c.b16 %v2536, %v2520
    %v3625 = vpack.c.b16 %v2537, %v2521
    %v3626 = vpack.c.b16 %v2538, %v2522
    %v3627 = vpack.c.b16 %v2539, %v2523
    %v3628 = vpack.c.b16 %v2540, %v2524
    %v3629 = vpack.c.b16 %v2557, %v2541
    %v3630 = vpack.c.b16 %v2558, %v2542
    %v3631 = vpack.c.b16 %v2559, %v2543
    %v3632 = vpack.c.b16 %v2560, %v2544
    %v3633 = vpack.c.b16 %v2561, %v2545
    %v3634 = vpack.c.b16 %v2562, %v2546
    %v3635 = vpack.c.b16 %v2563, %v2547
    %v3636 = vpack.c.b16 %v2564, %v2548
    %v3637 = vpack.c.b16 %v2565, %v2549
    %v3638 = vpack.c.b16 %v2566, %v2550
    %v3639 = vpack.c.b16 %v2567, %v2551
    %v3640 = vpack.c.b16 %v2568, %v2552
    %v3641 = vpack.c.b16 %v2569, %v2553
    %v3642 = vpack.c.b16 %v2570, %v2554
    %v3643 = vpack.c.b16 %v2571, %v2555
    %v3644 = vpack.c.b16 %v2572, %v2556
    %v3645 = vpack.c.b16 %v2589, %v2573
    %v3646 = vpack.c.b16 %v2590, %v2574
    %v3647 = vpack.c.b16 %v2591, %v2575
    %v3648 = vpack.c.b16 %v2592, %v2576
    %v3649 = vpack.c.b16 %v2593, %v2577
    %v3650 = vpack.c.b16 %v2594, %v2578
    %v3651 = vpack.c.b16 %v2595, %v2579
    %v3652 = vpack.c.b16 %v2596, %v2580
    %v3653 = vpack.c.b16 %v2597, %v2581
    %v3654 = vpack.c.b16 %v2598, %v2582
    %v3655 = vpack.c.b16 %v2599, %v2583
    %v3656 = vpack.c.b16 %v2600, %v2584
    %v3657 = vpack.c.b16 %v2601, %v2585
    %v3658 = vpack.c.b16 %v2602, %v2586
    %v3659 = vpack.c.b16 %v2603, %v2587
    %v3660 = vpack.c.b16 %v2604, %v2588
    %v3661 = vpack.c.b16 %v2621, %v2605
    %v3662 = vpack.c.b16 %v2622, %v2606
    %v3663 = vpack.c.b16 %v2623, %v2607
    %v3664 = vpack.c.b16 %v2624, %v2608
    %v3665 = vpack.c.b16 %v2625, %v2609
    %v3666 = vpack.c.b16 %v2626, %v2610
    %v3667 = vpack.c.b16 %v2627, %v2611
    %v3668 = vpack.c.b16 %v2628, %v2612
    %v3669 = vpack.c.b16 %v2629, %v2613
    %v3670 = vpack.c.b16 %v2630, %v2614
    %v3671 = vpack.c.b16 %v2631, %v2615
    %v3672 = vpack.c.b16 %v2632, %v2616
    %v3673 = vpack.c.b16 %v2633, %v2617
    %v3674 = vpack.c.b16 %v2634, %v2618
    %v3675 = vpack.c.b16 %v2635, %v2619
    %v3676 = vpack.c.b16 %v2636, %v2620
    %v3677 = vpack.c.b16 %v2653, %v2637
    %v3678 = vpack.c.b16 %v2654, %v2638
    %v3679 = vpack.c.b16 %v2655, %v2639
    %v3680 = vpack.c.b16 %v2656, %v2640
    %v3681 = vpack.c.b16 %v2657, %v2641
    %v3682 = vpack.c.b16 %v2658, %v2642
    %v3683 = vpack.c.b16 %v2659, %v2643
    %v3684 = vpack.c.b16 %v2660, %v2644
    %v3685 = vpack.c.b16 %v2661, %v2645
    %v3686 = vpack.c.b16 %v2662, %v2646
    %v3687 = vpack.c.b16 %v2663, %v2647
    %v3688 = vpack.c.b16 %v2664, %v2648
    %v3689 = vpack.c.b16 %v2665, %v2649
    %v3690 = vpack.c.b16 %v2666, %v2650
    %v3691 = vpack.c.b16 %v2667, %v2651
    %v3692 = vpack.c.b16 %v2668, %v2652
    %v3693 = vpack.c.b16 %v2685, %v2669
    %v3694 = vpack.c.b16 %v2686, %v2670
    %v3695 = vpack.c.b16 %v2687, %v2671
    %v3696 = vpack.c.b16 %v2688, %v2672
    %v3697 = vpack.c.b16 %v2689, %v2673
    %v3698 = vpack.c.b16 %v2690, %v2674
    %v3699 = vpack.c.b16 %v2691, %v2675
    %v3700 = vpack.c.b16 %v2692, %v2676
    %v3701 = vpack.c.b16 %v2693, %v2677
    %v3702 = vpack.c.b16 %v2694, %v2678
    %v3703 = vpack.c.b16 %v2695, %v2679
    %v3704 = vpack.c.b16 %v2696, %v2680
    %v3705 = vpack.c.b16 %v2697, %v2681
    %v3706 = vpack.c.b16 %v2698, %v2682
    %v3707 = vpack.c.b16 %v2699, %v2683
    %v3708 = vpack.c.b16 %v2700, %v2684
    %v3709 = vpack.c.b16 %v2717, %v2701
    %v3710 = vpack.c.b16 %v2718, %v2702
    %v3711 = vpack.c.b16 %v2719, %v2703
    %v3712 = vpack.c.b16 %v2720, %v2704
    %v3713 = vpack.c.b16 %v2721, %v2705
    %v3714 = vpack.c.b16 %v2722, %v2706
    %v3715 = vpack.c.b16 %v2723, %v2707
    %v3716 = vpack.c.b16 %v2724, %v2708
    %v3717 = vpack.c.b16 %v2725, %v2709
    %v3718 = vpack.c.b16 %v2726, %v2710
    %v3719 = vpack.c.b16 %v2727, %v2711
    %v3720 = vpack.c.b16 %v2728, %v2712
    %v3721 = vpack.c.b16 %v2729, %v2713
    %v3722 = vpack.c.b16 %v2730, %v2714
    %v3723 = vpack.c.b16 %v2731, %v2715
    %v3724 = vpack.c.b16 %v2732, %v2716
    %v3725 = vpack.c.b16 %v2749, %v2733
    %v3726 = vpack.c.b16 %v2750, %v2734
    %v3727 = vpack.c.b16 %v2751, %v2735
    %v3728 = vpack.c.b16 %v2752, %v2736
    %v3729 = vpack.c.b16 %v2753, %v2737
    %v3730 = vpack.c.b16 %v2754, %v2738
    %v3731 = vpack.c.b16 %v2755, %v2739
    %v3732 = vpack.c.b16 %v2756, %v2740
    %v3733 = vpack.c.b16 %v2757, %v2741
    %v3734 = vpack.c.b16 %v2758, %v2742
    %v3735 = vpack.c.b16 %v2759, %v2743
    %v3736 = vpack.c.b16 %v2760, %v2744
    %v3737 = vpack.c.b16 %v2761, %v2745
    %v3738 = vpack.c.b16 %v2762, %v2746
    %v3739 = vpack.c.b16 %v2763, %v2747
    %v3740 = vpack.c.b16 %v2764, %v2748
    %v3741 = vpack.c.b16 %v2781, %v2765
    %v3742 = vpack.c.b16 %v2782, %v2766
    %v3743 = vpack.c.b16 %v2783, %v2767
    %v3744 = vpack.c.b16 %v2784, %v2768
    %v3745 = vpack.c.b16 %v2785, %v2769
    %v3746 = vpack.c.b16 %v2786, %v2770
    %v3747 = vpack.c.b16 %v2787, %v2771
    %v3748 = vpack.c.b16 %v2788, %v2772
    %v3749 = vpack.c.b16 %v2789, %v2773
    %v3750 = vpack.c.b16 %v2790, %v2774
    %v3751 = vpack.c.b16 %v2791, %v2775
    %v3752 = vpack.c.b16 %v2792, %v2776
    %v3753 = vpack.c.b16 %v2793, %v2777
    %v3754 = vpack.c.b16 %v2794, %v2778
    %v3755 = vpack.c.b16 %v2795, %v2779
    %v3756 = vpack.c.b16 %v2796, %v2780
    %v3757 = vpack.c.b16 %v2813, %v2797
    %v3758 = vpack.c.b16 %v2814, %v2798
    %v3759 = vpack.c.b16 %v2815, %v2799
    %v3760 = vpack.c.b16 %v2816, %v2800
    %v3761 = vpack.c.b16 %v2817, %v2801
    %v3762 = vpack.c.b16 %v2818, %v2802
    %v3763 = vpack.c.b16 %v2819, %v2803
    %v3764 = vpack.c.b16 %v2820, %v2804
    %v3765 = vpack.c.b16 %v2821, %v2805
    %v3766 = vpack.c.b16 %v2822, %v2806
    %v3767 = vpack.c.b16 %v2823, %v2807
    %v3768 = vpack.c.b16 %v2824, %v2808
    %v3769 = vpack.c.b16 %v2825, %v2809
    %v3770 = vpack.c.b16 %v2826, %v2810
    %v3771 = vpack.c.b16 %v2827, %v2811
    %v3772 = vpack.c.b16 %v2828, %v2812
    %v3773 = vpack.c.b16 %v2845, %v2829
    %v3774 = vpack.c.b16 %v2846, %v2830
    %v3775 = vpack.c.b16 %v2847, %v2831
    %v3776 = vpack.c.b16 %v2848, %v2832
    %v3777 = vpack.c.b16 %v2849, %v2833
    %v3778 = vpack.c.b16 %v2850, %v2834
    %v3779 = vpack.c.b16 %v2851, %v2835
    %v3780 = vpack.c.b16 %v2852, %v2836
    %v3781 = vpack.c.b16 %v2853, %v2837
    %v3782 = vpack.c.b16 %v2854, %v2838
    %v3783 = vpack.c.b16 %v2855, %v2839
    %v3784 = vpack.c.b16 %v2856, %v2840
    %v3785 = vpack.c.b16 %v2857, %v2841
    %v3786 = vpack.c.b16 %v2858, %v2842
    %v3787 = vpack.c.b16 %v2859, %v2843
    %v3788 = vpack.c.b16 %v2860, %v2844
    %v3789 = vpack.c.b16 %v2877, %v2861
    %v3790 = vpack.c.b16 %v2878, %v2862
    %v3791 = vpack.c.b16 %v2879, %v2863
    %v3792 = vpack.c.b16 %v2880, %v2864
    %v3793 = vpack.c.b16 %v2881, %v2865
    %v3794 = vpack.c.b16 %v2882, %v2866
    %v3795 = vpack.c.b16 %v2883, %v2867
    %v3796 = vpack.c.b16 %v2884, %v2868
    %v3797 = vpack.c.b16 %v2885, %v2869
    %v3798 = vpack.c.b16 %v2886, %v2870
    %v3799 = vpack.c.b16 %v2887, %v2871
    %v3800 = vpack.c.b16 %v2888, %v2872
    %v3801 = vpack.c.b16 %v2889, %v2873
    %v3802 = vpack.c.b16 %v2890, %v2874
    %v3803 = vpack.c.b16 %v2891, %v2875
    %v3804 = vpack.c.b16 %v2892, %v2876
    %v3805 = vpack.c.b16 %v2909, %v2893
    %v3806 = vpack.c.b16 %v2910, %v2894
    %v3807 = vpack.c.b16 %v2911, %v2895
    %v3808 = vpack.c.b16 %v2912, %v2896
    %v3809 = vpack.c.b16 %v2913, %v2897
    %v3810 = vpack.c.b16 %v2914, %v2898
    %v3811 = vpack.c.b16 %v2915, %v2899
    %v3812 = vpack.c.b16 %v2916, %v2900
    %v3813 = vpack.c.b16 %v2917, %v2901
    %v3814 = vpack.c.b16 %v2918, %v2902
    %v3815 = vpack.c.b16 %v2919, %v2903
    %v3816 = vpack.c.b16 %v2920, %v2904
    %v3817 = vpack.c.b16 %v2921, %v2905
    %v3818 = vpack.c.b16 %v2922, %v2906
    %v3819 = vpack.c.b16 %v2923, %v2907
    %v3820 = vpack.c.b16 %v2924, %v2908
    %v3821 = vpack.c.b16 %v2941, %v2925
    %v3822 = vpack.c.b16 %v2942, %v2926
    %v3823 = vpack.c.b16 %v2943, %v2927
    %v3824 = vpack.c.b16 %v2944, %v2928
    %v3825 = vpack.c.b16 %v2945, %v2929
    %v3826 = vpack.c.b16 %v2946, %v2930
    %v3827 = vpack.c.b16 %v2947, %v2931
    %v3828 = vpack.c.b16 %v2948, %v2932
    %v3829 = vpack.c.b16 %v2949, %v2933
    %v3830 = vpack.c.b16 %v2950, %v2934
    %v3831 = vpack.c.b16 %v2951, %v2935
    %v3832 = vpack.c.b16 %v2952, %v2936
    %v3833 = vpack.c.b16 %v2953, %v2937
    %v3834 = vpack.c.b16 %v2954, %v2938
    %v3835 = vpack.c.b16 %v2955, %v2939
    %v3836 = vpack.c.b16 %v2956, %v2940
    %v3837 = vpack.c.b16 %v2973, %v2957
    %v3838 = vpack.c.b16 %v2974, %v2958
    %v3839 = vpack.c.b16 %v2975, %v2959
    %v3840 = vpack.c.b16 %v2976, %v2960
    %v3841 = vpack.c.b16 %v2977, %v2961
    %v3842 = vpack.c.b16 %v2978, %v2962
    %v3843 = vpack.c.b16 %v2979, %v2963
    %v3844 = vpack.c.b16 %v2980, %v2964
    %v3845 = vpack.c.b16 %v2981, %v2965
    %v3846 = vpack.c.b16 %v2982, %v2966
    %v3847 = vpack.c.b16 %v2983, %v2967
    %v3848 = vpack.c.b16 %v2984, %v2968
    %v3849 = vpack.c.b16 %v2985, %v2969
    %v3850 = vpack.c.b16 %v2986, %v2970
    %v3851 = vpack.c.b16 %v2987, %v2971
    %v3852 = vpack.c.b16 %v2988, %v2972
    %v3853 = vpack.c.b16 %v3005, %v2989
    %v3854 = vpack.c.b16 %v3006, %v2990
    %v3855 = vpack.c.b16 %v3007, %v2991
    %v3856 = vpack.c.b16 %v3008, %v2992
    %v3857 = vpack.c.b16 %v3009, %v2993
    %v3858 = vpack.c.b16 %v3010, %v2994
    %v3859 = vpack.c.b16 %v3011, %v2995
    %v3860 = vpack.c.b16 %v3012, %v2996
    %v3861 = vpack.c.b16 %v3013, %v2997
    %v3862 = vpack.c.b16 %v3014, %v2998
    %v3863 = vpack.c.b16 %v3015, %v2999
    %v3864 = vpack.c.b16 %v3016, %v3000
    %v3865 = vpack.c.b16 %v3017, %v3001
    %v3866 = vpack.c.b16 %v3018, %v3002
    %v3867 = vpack.c.b16 %v3019, %v3003
    %v3868 = vpack.c.b16 %v3020, %v3004
    %v3869 = vpack.c.b16 %v3037, %v3021
    %v3870 = vpack.c.b16 %v3038, %v3022
    %v3871 = vpack.c.b16 %v3039, %v3023
    %v3872 = vpack.c.b16 %v3040, %v3024
    %v3873 = vpack.c.b16 %v3041, %v3025
    %v3874 = vpack.c.b16 %v3042, %v3026
    %v3875 = vpack.c.b16 %v3043, %v3027
    %v3876 = vpack.c.b16 %v3044, %v3028
    %v3877 = vpack.c.b16 %v3045, %v3029
    %v3878 = vpack.c.b16 %v3046, %v3030
    %v3879 = vpack.c.b16 %v3047, %v3031
    %v3880 = vpack.c.b16 %v3048, %v3032
    %v3881 = vpack.c.b16 %v3049, %v3033
    %v3882 = vpack.c.b16 %v3050, %v3034
    %v3883 = vpack.c.b16 %v3051, %v3035
    %v3884 = vpack.c.b16 %v3052, %v3036
    %v3885 = vpack.c.b16 %v3069, %v3053
    %v3886 = vpack.c.b16 %v3070, %v3054
    %v3887 = vpack.c.b16 %v3071, %v3055
    %v3888 = vpack.c.b16 %v3072, %v3056
    %v3889 = vpack.c.b16 %v3073, %v3057
    %v3890 = vpack.c.b16 %v3074, %v3058
    %v3891 = vpack.c.b16 %v3075, %v3059
    %v3892 = vpack.c.b16 %v3076, %v3060
    %v3893 = vpack.c.b16 %v3077, %v3061
    %v3894 = vpack.c.b16 %v3078, %v3062
    %v3895 = vpack.c.b16 %v3079, %v3063
    %v3896 = vpack.c.b16 %v3080, %v3064
    %v3897 = vpack.c.b16 %v3081, %v3065
    %v3898 = vpack.c.b16 %v3082, %v3066
    %v3899 = vpack.c.b16 %v3083, %v3067
    %v3900 = vpack.c.b16 %v3084, %v3068
    %v3901 = vpack.c.b16 %v3101, %v3085
    %v3902 = vpack.c.b16 %v3102, %v3086
    %v3903 = vpack.c.b16 %v3103, %v3087
    %v3904 = vpack.c.b16 %v3104, %v3088
    %v3905 = vpack.c.b16 %v3105, %v3089
    %v3906 = vpack.c.b16 %v3106, %v3090
    %v3907 = vpack.c.b16 %v3107, %v3091
    %v3908 = vpack.c.b16 %v3108, %v3092
    %v3909 = vpack.c.b16 %v3109, %v3093
    %v3910 = vpack.c.b16 %v3110, %v3094
    %v3911 = vpack.c.b16 %v3111, %v3095
    %v3912 = vpack.c.b16 %v3112, %v3096
    %v3913 = vpack.c.b16 %v3113, %v3097
    %v3914 = vpack.c.b16 %v3114, %v3098
    %v3915 = vpack.c.b16 %v3115, %v3099
    %v3916 = vpack.c.b16 %v3116, %v3100
    %v3917 = vpack.c.b16 %v3133, %v3117
    %v3918 = vpack.c.b16 %v3134, %v3118
    %v3919 = vpack.c.b16 %v3135, %v3119
    %v3920 = vpack.c.b16 %v3136, %v3120
    %v3921 = vpack.c.b16 %v3137, %v3121
    %v3922 = vpack.c.b16 %v3138, %v3122
    %v3923 = vpack.c.b16 %v3139, %v3123
    %v3924 = vpack.c.b16 %v3140, %v3124
    %v3925 = vpack.c.b16 %v3141, %v3125
    %v3926 = vpack.c.b16 %v3142, %v3126
    %v3927 = vpack.c.b16 %v3143, %v3127
    %v3928 = vpack.c.b16 %v3144, %v3128
    %v3929 = vpack.c.b16 %v3145, %v3129
    %v3930 = vpack.c.b16 %v3146, %v3130
    %v3931 = vpack.c.b16 %v3147, %v3131
    %v3932 = vpack.c.b16 %v3148, %v3132
    %v3933 = vpack.c.b16 %v3165, %v3149
    %v3934 = vpack.c.b16 %v3166, %v3150
    %v3935 = vpack.c.b16 %v3167, %v3151
    %v3936 = vpack.c.b16 %v3168, %v3152
    %v3937 = vpack.c.b16 %v3169, %v3153
    %v3938 = vpack.c.b16 %v3170, %v3154
    %v3939 = vpack.c.b16 %v3171, %v3155
    %v3940 = vpack.c.b16 %v3172, %v3156
    %v3941 = vpack.c.b16 %v3173, %v3157
    %v3942 = vpack.c.b16 %v3174, %v3158
    %v3943 = vpack.c.b16 %v3175, %v3159
    %v3944 = vpack.c.b16 %v3176, %v3160
    %v3945 = vpack.c.b16 %v3177, %v3161
    %v3946 = vpack.c.b16 %v3178, %v3162
    %v3947 = vpack.c.b16 %v3179, %v3163
    %v3948 = vpack.c.b16 %v3180, %v3164
    %4717 = vmatpush.bf16.msra.mxu0 %v3293
    %4718 = vmatpush.bf16.msra.mxu0 %v3277
    %4719 = vmatpush.bf16.msra.mxu0 %v3261
    %4720 = vmatpush.bf16.msra.mxu0 %v3245
    %4721 = vmatpush.bf16.msra.mxu0 %v3229
    %4722 = vmatpush.bf16.msra.mxu0 %v3213
    %4723 = vmatpush.bf16.msra.mxu0 %v3197
    %4724 = vmatpush.bf16.msra.mxu0 %v3181
    %4725 = vmatmul.bf16.gmra.mxu0 %v865
    %v4726 = vpop.f32.mrf.mxu0
    %v4727 = vadd.f32 %v831, %v4726
    %v4728 = vpop.f32.mrf.mxu0
    %4729 = vdwg.mxu0
    %4730 = vmatpush.bf16.msra.mxu0 %v3421
    %4731 = vmatpush.bf16.msra.mxu0 %v3405
    %4732 = vmatpush.bf16.msra.mxu0 %v3389
    %4733 = vmatpush.bf16.msra.mxu0 %v3373
    %4734 = vmatpush.bf16.msra.mxu0 %v3357
    %4735 = vmatpush.bf16.msra.mxu0 %v3341
    %4736 = vmatpush.bf16.msra.mxu0 %v3325
    %4737 = vmatpush.bf16.msra.mxu0 %v3309
    %4738 = vmatmul.bf16.gmra.mxu0 %v866
    %v4739 = vpop.f32.mrf.mxu0
    %v4740 = vadd.f32 %v4727, %v4739
    %v4741 = vpop.f32.mrf.mxu0
    %4742 = vdwg.mxu0
    %4743 = vmatpush.bf16.msra.mxu0 %v3549
    %4744 = vmatpush.bf16.msra.mxu0 %v3533
    %4745 = vmatpush.bf16.msra.mxu0 %v3517
    %4746 = vmatpush.bf16.msra.mxu0 %v3501
    %4747 = vmatpush.bf16.msra.mxu0 %v3485
    %4748 = vmatpush.bf16.msra.mxu0 %v3469
    %4749 = vmatpush.bf16.msra.mxu0 %v3453
    %4750 = vmatpush.bf16.msra.mxu0 %v3437
    %4751 = vmatmul.bf16.gmra.mxu0 %v867
    %v4752 = vpop.f32.mrf.mxu0
    %v4753 = vadd.f32 %v4740, %v4752
    %v4754 = vpop.f32.mrf.mxu0
    %4755 = vdwg.mxu0
    %4756 = vmatpush.bf16.msra.mxu0 %v3677
    %4757 = vmatpush.bf16.msra.mxu0 %v3661
    %4758 = vmatpush.bf16.msra.mxu0 %v3645
    %4759 = vmatpush.bf16.msra.mxu0 %v3629
    %4760 = vmatpush.bf16.msra.mxu0 %v3613
    %4761 = vmatpush.bf16.msra.mxu0 %v3597
    %4762 = vmatpush.bf16.msra.mxu0 %v3581
    %4763 = vmatpush.bf16.msra.mxu0 %v3565
    %4764 = vmatmul.bf16.gmra.mxu0 %v868
    %v4765 = vpop.f32.mrf.mxu0
    %v4766 = vadd.f32 %v4753, %v4765
    %v4767 = vpop.f32.mrf.mxu0
    %4768 = vdwg.mxu0
    %4769 = vmatpush.bf16.msra.mxu0 %v3805
    %4770 = vmatpush.bf16.msra.mxu0 %v3789
    %4771 = vmatpush.bf16.msra.mxu0 %v3773
    %4772 = vmatpush.bf16.msra.mxu0 %v3757
    %4773 = vmatpush.bf16.msra.mxu0 %v3741
    %4774 = vmatpush.bf16.msra.mxu0 %v3725
    %4775 = vmatpush.bf16.msra.mxu0 %v3709
    %4776 = vmatpush.bf16.msra.mxu0 %v3693
    %4777 = vmatmul.bf16.gmra.mxu0 %v869
    %v4778 = vpop.f32.mrf.mxu0
    %v4779 = vadd.f32 %v4766, %v4778
    %v4780 = vpop.f32.mrf.mxu0
    %4781 = vdwg.mxu0
    %4782 = vmatpush.bf16.msra.mxu0 %v3933
    %4783 = vmatpush.bf16.msra.mxu0 %v3917
    %4784 = vmatpush.bf16.msra.mxu0 %v3901
    %4785 = vmatpush.bf16.msra.mxu0 %v3885
    %4786 = vmatpush.bf16.msra.mxu0 %v3869
    %4787 = vmatpush.bf16.msra.mxu0 %v3853
    %4788 = vmatpush.bf16.msra.mxu0 %v3837
    %4789 = vmatpush.bf16.msra.mxu0 %v3821
    %4790 = vmatmul.bf16.gmra.mxu0 %v870
    %v4791 = vpop.f32.mrf.mxu0
    %v4792 = vadd.f32 %v4779, %v4791
    %v4793 = vpop.f32.mrf.mxu0
    %4794 = vdwg.mxu0
    %4795 = vmatpush.bf16.msra.mxu0 %v3294
    %4796 = vmatpush.bf16.msra.mxu0 %v3278
    %4797 = vmatpush.bf16.msra.mxu0 %v3262
    %4798 = vmatpush.bf16.msra.mxu0 %v3246
    %4799 = vmatpush.bf16.msra.mxu0 %v3230
    %4800 = vmatpush.bf16.msra.mxu0 %v3214
    %4801 = vmatpush.bf16.msra.mxu0 %v3198
    %4802 = vmatpush.bf16.msra.mxu0 %v3182
    %4803 = vmatmul.bf16.gmra.mxu0 %v865
    %v4804 = vpop.f32.mrf.mxu0
    %v4805 = vadd.f32 %v832, %v4804
    %v4806 = vpop.f32.mrf.mxu0
    %4807 = vdwg.mxu0
    %4808 = vmatpush.bf16.msra.mxu0 %v3422
    %4809 = vmatpush.bf16.msra.mxu0 %v3406
    %4810 = vmatpush.bf16.msra.mxu0 %v3390
    %4811 = vmatpush.bf16.msra.mxu0 %v3374
    %4812 = vmatpush.bf16.msra.mxu0 %v3358
    %4813 = vmatpush.bf16.msra.mxu0 %v3342
    %4814 = vmatpush.bf16.msra.mxu0 %v3326
    %4815 = vmatpush.bf16.msra.mxu0 %v3310
    %4816 = vmatmul.bf16.gmra.mxu0 %v866
    %v4817 = vpop.f32.mrf.mxu0
    %v4818 = vadd.f32 %v4805, %v4817
    %v4819 = vpop.f32.mrf.mxu0
    %4820 = vdwg.mxu0
    %4821 = vmatpush.bf16.msra.mxu0 %v3550
    %4822 = vmatpush.bf16.msra.mxu0 %v3534
    %4823 = vmatpush.bf16.msra.mxu0 %v3518
    %4824 = vmatpush.bf16.msra.mxu0 %v3502
    %4825 = vmatpush.bf16.msra.mxu0 %v3486
    %4826 = vmatpush.bf16.msra.mxu0 %v3470
    %4827 = vmatpush.bf16.msra.mxu0 %v3454
    %4828 = vmatpush.bf16.msra.mxu0 %v3438
    %4829 = vmatmul.bf16.gmra.mxu0 %v867
    %v4830 = vpop.f32.mrf.mxu0
    %v4831 = vadd.f32 %v4818, %v4830
    %v4832 = vpop.f32.mrf.mxu0
    %4833 = vdwg.mxu0
    %4834 = vmatpush.bf16.msra.mxu0 %v3678
    %4835 = vmatpush.bf16.msra.mxu0 %v3662
    %4836 = vmatpush.bf16.msra.mxu0 %v3646
    %4837 = vmatpush.bf16.msra.mxu0 %v3630
    %4838 = vmatpush.bf16.msra.mxu0 %v3614
    %4839 = vmatpush.bf16.msra.mxu0 %v3598
    %4840 = vmatpush.bf16.msra.mxu0 %v3582
    %4841 = vmatpush.bf16.msra.mxu0 %v3566
    %4842 = vmatmul.bf16.gmra.mxu0 %v868
    %v4843 = vpop.f32.mrf.mxu0
    %v4844 = vadd.f32 %v4831, %v4843
    %v4845 = vpop.f32.mrf.mxu0
    %4846 = vdwg.mxu0
    %4847 = vmatpush.bf16.msra.mxu0 %v3806
    %4848 = vmatpush.bf16.msra.mxu0 %v3790
    %4849 = vmatpush.bf16.msra.mxu0 %v3774
    %4850 = vmatpush.bf16.msra.mxu0 %v3758
    %4851 = vmatpush.bf16.msra.mxu0 %v3742
    %4852 = vmatpush.bf16.msra.mxu0 %v3726
    %4853 = vmatpush.bf16.msra.mxu0 %v3710
    %4854 = vmatpush.bf16.msra.mxu0 %v3694
    %4855 = vmatmul.bf16.gmra.mxu0 %v869
    %v4856 = vpop.f32.mrf.mxu0
    %v4857 = vadd.f32 %v4844, %v4856
    %v4858 = vpop.f32.mrf.mxu0
    %4859 = vdwg.mxu0
    %4860 = vmatpush.bf16.msra.mxu0 %v3934
    %4861 = vmatpush.bf16.msra.mxu0 %v3918
    %4862 = vmatpush.bf16.msra.mxu0 %v3902
    %4863 = vmatpush.bf16.msra.mxu0 %v3886
    %4864 = vmatpush.bf16.msra.mxu0 %v3870
    %4865 = vmatpush.bf16.msra.mxu0 %v3854
    %4866 = vmatpush.bf16.msra.mxu0 %v3838
    %4867 = vmatpush.bf16.msra.mxu0 %v3822
    %4868 = vmatmul.bf16.gmra.mxu0 %v870
    %v4869 = vpop.f32.mrf.mxu0
    %v4870 = vadd.f32 %v4857, %v4869
    %v4871 = vpop.f32.mrf.mxu0
    %4872 = vdwg.mxu0
    %4873 = vmatpush.bf16.msra.mxu0 %v3295
    %4874 = vmatpush.bf16.msra.mxu0 %v3279
    %4875 = vmatpush.bf16.msra.mxu0 %v3263
    %4876 = vmatpush.bf16.msra.mxu0 %v3247
    %4877 = vmatpush.bf16.msra.mxu0 %v3231
    %4878 = vmatpush.bf16.msra.mxu0 %v3215
    %4879 = vmatpush.bf16.msra.mxu0 %v3199
    %4880 = vmatpush.bf16.msra.mxu0 %v3183
    %4881 = vmatmul.bf16.gmra.mxu0 %v865
    %v4882 = vpop.f32.mrf.mxu0
    %v4883 = vadd.f32 %v833, %v4882
    %v4884 = vpop.f32.mrf.mxu0
    %4885 = vdwg.mxu0
    %4886 = vmatpush.bf16.msra.mxu0 %v3423
    %4887 = vmatpush.bf16.msra.mxu0 %v3407
    %4888 = vmatpush.bf16.msra.mxu0 %v3391
    %4889 = vmatpush.bf16.msra.mxu0 %v3375
    %4890 = vmatpush.bf16.msra.mxu0 %v3359
    %4891 = vmatpush.bf16.msra.mxu0 %v3343
    %4892 = vmatpush.bf16.msra.mxu0 %v3327
    %4893 = vmatpush.bf16.msra.mxu0 %v3311
    %4894 = vmatmul.bf16.gmra.mxu0 %v866
    %v4895 = vpop.f32.mrf.mxu0
    %v4896 = vadd.f32 %v4883, %v4895
    %v4897 = vpop.f32.mrf.mxu0
    %4898 = vdwg.mxu0
    %4899 = vmatpush.bf16.msra.mxu0 %v3551
    %4900 = vmatpush.bf16.msra.mxu0 %v3535
    %4901 = vmatpush.bf16.msra.mxu0 %v3519
    %4902 = vmatpush.bf16.msra.mxu0 %v3503
    %4903 = vmatpush.bf16.msra.mxu0 %v3487
    %4904 = vmatpush.bf16.msra.mxu0 %v3471
    %4905 = vmatpush.bf16.msra.mxu0 %v3455
    %4906 = vmatpush.bf16.msra.mxu0 %v3439
    %4907 = vmatmul.bf16.gmra.mxu0 %v867
    %v4908 = vpop.f32.mrf.mxu0
    %v4909 = vadd.f32 %v4896, %v4908
    %v4910 = vpop.f32.mrf.mxu0
    %4911 = vdwg.mxu0
    %4912 = vmatpush.bf16.msra.mxu0 %v3679
    %4913 = vmatpush.bf16.msra.mxu0 %v3663
    %4914 = vmatpush.bf16.msra.mxu0 %v3647
    %4915 = vmatpush.bf16.msra.mxu0 %v3631
    %4916 = vmatpush.bf16.msra.mxu0 %v3615
    %4917 = vmatpush.bf16.msra.mxu0 %v3599
    %4918 = vmatpush.bf16.msra.mxu0 %v3583
    %4919 = vmatpush.bf16.msra.mxu0 %v3567
    %4920 = vmatmul.bf16.gmra.mxu0 %v868
    %v4921 = vpop.f32.mrf.mxu0
    %v4922 = vadd.f32 %v4909, %v4921
    %v4923 = vpop.f32.mrf.mxu0
    %4924 = vdwg.mxu0
    %4925 = vmatpush.bf16.msra.mxu0 %v3807
    %4926 = vmatpush.bf16.msra.mxu0 %v3791
    %4927 = vmatpush.bf16.msra.mxu0 %v3775
    %4928 = vmatpush.bf16.msra.mxu0 %v3759
    %4929 = vmatpush.bf16.msra.mxu0 %v3743
    %4930 = vmatpush.bf16.msra.mxu0 %v3727
    %4931 = vmatpush.bf16.msra.mxu0 %v3711
    %4932 = vmatpush.bf16.msra.mxu0 %v3695
    %4933 = vmatmul.bf16.gmra.mxu0 %v869
    %v4934 = vpop.f32.mrf.mxu0
    %v4935 = vadd.f32 %v4922, %v4934
    %v4936 = vpop.f32.mrf.mxu0
    %4937 = vdwg.mxu0
    %4938 = vmatpush.bf16.msra.mxu0 %v3935
    %4939 = vmatpush.bf16.msra.mxu0 %v3919
    %4940 = vmatpush.bf16.msra.mxu0 %v3903
    %4941 = vmatpush.bf16.msra.mxu0 %v3887
    %4942 = vmatpush.bf16.msra.mxu0 %v3871
    %4943 = vmatpush.bf16.msra.mxu0 %v3855
    %4944 = vmatpush.bf16.msra.mxu0 %v3839
    %4945 = vmatpush.bf16.msra.mxu0 %v3823
    %4946 = vmatmul.bf16.gmra.mxu0 %v870
    %v4947 = vpop.f32.mrf.mxu0
    %v4948 = vadd.f32 %v4935, %v4947
    %v4949 = vpop.f32.mrf.mxu0
    %4950 = vdwg.mxu0
    %4951 = vmatpush.bf16.msra.mxu0 %v3296
    %4952 = vmatpush.bf16.msra.mxu0 %v3280
    %4953 = vmatpush.bf16.msra.mxu0 %v3264
    %4954 = vmatpush.bf16.msra.mxu0 %v3248
    %4955 = vmatpush.bf16.msra.mxu0 %v3232
    %4956 = vmatpush.bf16.msra.mxu0 %v3216
    %4957 = vmatpush.bf16.msra.mxu0 %v3200
    %4958 = vmatpush.bf16.msra.mxu0 %v3184
    %4959 = vmatmul.bf16.gmra.mxu0 %v865
    %v4960 = vpop.f32.mrf.mxu0
    %v4961 = vadd.f32 %v834, %v4960
    %v4962 = vpop.f32.mrf.mxu0
    %4963 = vdwg.mxu0
    %4964 = vmatpush.bf16.msra.mxu0 %v3424
    %4965 = vmatpush.bf16.msra.mxu0 %v3408
    %4966 = vmatpush.bf16.msra.mxu0 %v3392
    %4967 = vmatpush.bf16.msra.mxu0 %v3376
    %4968 = vmatpush.bf16.msra.mxu0 %v3360
    %4969 = vmatpush.bf16.msra.mxu0 %v3344
    %4970 = vmatpush.bf16.msra.mxu0 %v3328
    %4971 = vmatpush.bf16.msra.mxu0 %v3312
    %4972 = vmatmul.bf16.gmra.mxu0 %v866
    %v4973 = vpop.f32.mrf.mxu0
    %v4974 = vadd.f32 %v4961, %v4973
    %v4975 = vpop.f32.mrf.mxu0
    %4976 = vdwg.mxu0
    %4977 = vmatpush.bf16.msra.mxu0 %v3552
    %4978 = vmatpush.bf16.msra.mxu0 %v3536
    %4979 = vmatpush.bf16.msra.mxu0 %v3520
    %4980 = vmatpush.bf16.msra.mxu0 %v3504
    %4981 = vmatpush.bf16.msra.mxu0 %v3488
    %4982 = vmatpush.bf16.msra.mxu0 %v3472
    %4983 = vmatpush.bf16.msra.mxu0 %v3456
    %4984 = vmatpush.bf16.msra.mxu0 %v3440
    %4985 = vmatmul.bf16.gmra.mxu0 %v867
    %v4986 = vpop.f32.mrf.mxu0
    %v4987 = vadd.f32 %v4974, %v4986
    %v4988 = vpop.f32.mrf.mxu0
    %4989 = vdwg.mxu0
    %4990 = vmatpush.bf16.msra.mxu0 %v3680
    %4991 = vmatpush.bf16.msra.mxu0 %v3664
    %4992 = vmatpush.bf16.msra.mxu0 %v3648
    %4993 = vmatpush.bf16.msra.mxu0 %v3632
    %4994 = vmatpush.bf16.msra.mxu0 %v3616
    %4995 = vmatpush.bf16.msra.mxu0 %v3600
    %4996 = vmatpush.bf16.msra.mxu0 %v3584
    %4997 = vmatpush.bf16.msra.mxu0 %v3568
    %4998 = vmatmul.bf16.gmra.mxu0 %v868
    %v4999 = vpop.f32.mrf.mxu0
    %v5000 = vadd.f32 %v4987, %v4999
    %v5001 = vpop.f32.mrf.mxu0
    %5002 = vdwg.mxu0
    %5003 = vmatpush.bf16.msra.mxu0 %v3808
    %5004 = vmatpush.bf16.msra.mxu0 %v3792
    %5005 = vmatpush.bf16.msra.mxu0 %v3776
    %5006 = vmatpush.bf16.msra.mxu0 %v3760
    %5007 = vmatpush.bf16.msra.mxu0 %v3744
    %5008 = vmatpush.bf16.msra.mxu0 %v3728
    %5009 = vmatpush.bf16.msra.mxu0 %v3712
    %5010 = vmatpush.bf16.msra.mxu0 %v3696
    %5011 = vmatmul.bf16.gmra.mxu0 %v869
    %v5012 = vpop.f32.mrf.mxu0
    %v5013 = vadd.f32 %v5000, %v5012
    %v5014 = vpop.f32.mrf.mxu0
    %5015 = vdwg.mxu0
    %5016 = vmatpush.bf16.msra.mxu0 %v3936
    %5017 = vmatpush.bf16.msra.mxu0 %v3920
    %5018 = vmatpush.bf16.msra.mxu0 %v3904
    %5019 = vmatpush.bf16.msra.mxu0 %v3888
    %5020 = vmatpush.bf16.msra.mxu0 %v3872
    %5021 = vmatpush.bf16.msra.mxu0 %v3856
    %5022 = vmatpush.bf16.msra.mxu0 %v3840
    %5023 = vmatpush.bf16.msra.mxu0 %v3824
    %5024 = vmatmul.bf16.gmra.mxu0 %v870
    %v5025 = vpop.f32.mrf.mxu0
    %v5026 = vadd.f32 %v5013, %v5025
    %v5027 = vpop.f32.mrf.mxu0
    %5028 = vdwg.mxu0
    %5029 = vmatpush.bf16.msra.mxu0 %v3297
    %5030 = vmatpush.bf16.msra.mxu0 %v3281
    %5031 = vmatpush.bf16.msra.mxu0 %v3265
    %5032 = vmatpush.bf16.msra.mxu0 %v3249
    %5033 = vmatpush.bf16.msra.mxu0 %v3233
    %5034 = vmatpush.bf16.msra.mxu0 %v3217
    %5035 = vmatpush.bf16.msra.mxu0 %v3201
    %5036 = vmatpush.bf16.msra.mxu0 %v3185
    %5037 = vmatmul.bf16.gmra.mxu0 %v865
    %v5038 = vpop.f32.mrf.mxu0
    %v5039 = vadd.f32 %v835, %v5038
    %v5040 = vpop.f32.mrf.mxu0
    %5041 = vdwg.mxu0
    %5042 = vmatpush.bf16.msra.mxu0 %v3425
    %5043 = vmatpush.bf16.msra.mxu0 %v3409
    %5044 = vmatpush.bf16.msra.mxu0 %v3393
    %5045 = vmatpush.bf16.msra.mxu0 %v3377
    %5046 = vmatpush.bf16.msra.mxu0 %v3361
    %5047 = vmatpush.bf16.msra.mxu0 %v3345
    %5048 = vmatpush.bf16.msra.mxu0 %v3329
    %5049 = vmatpush.bf16.msra.mxu0 %v3313
    %5050 = vmatmul.bf16.gmra.mxu0 %v866
    %v5051 = vpop.f32.mrf.mxu0
    %v5052 = vadd.f32 %v5039, %v5051
    %v5053 = vpop.f32.mrf.mxu0
    %5054 = vdwg.mxu0
    %5055 = vmatpush.bf16.msra.mxu0 %v3553
    %5056 = vmatpush.bf16.msra.mxu0 %v3537
    %5057 = vmatpush.bf16.msra.mxu0 %v3521
    %5058 = vmatpush.bf16.msra.mxu0 %v3505
    %5059 = vmatpush.bf16.msra.mxu0 %v3489
    %5060 = vmatpush.bf16.msra.mxu0 %v3473
    %5061 = vmatpush.bf16.msra.mxu0 %v3457
    %5062 = vmatpush.bf16.msra.mxu0 %v3441
    %5063 = vmatmul.bf16.gmra.mxu0 %v867
    %v5064 = vpop.f32.mrf.mxu0
    %v5065 = vadd.f32 %v5052, %v5064
    %v5066 = vpop.f32.mrf.mxu0
    %5067 = vdwg.mxu0
    %5068 = vmatpush.bf16.msra.mxu0 %v3681
    %5069 = vmatpush.bf16.msra.mxu0 %v3665
    %5070 = vmatpush.bf16.msra.mxu0 %v3649
    %5071 = vmatpush.bf16.msra.mxu0 %v3633
    %5072 = vmatpush.bf16.msra.mxu0 %v3617
    %5073 = vmatpush.bf16.msra.mxu0 %v3601
    %5074 = vmatpush.bf16.msra.mxu0 %v3585
    %5075 = vmatpush.bf16.msra.mxu0 %v3569
    %5076 = vmatmul.bf16.gmra.mxu0 %v868
    %v5077 = vpop.f32.mrf.mxu0
    %v5078 = vadd.f32 %v5065, %v5077
    %v5079 = vpop.f32.mrf.mxu0
    %5080 = vdwg.mxu0
    %5081 = vmatpush.bf16.msra.mxu0 %v3809
    %5082 = vmatpush.bf16.msra.mxu0 %v3793
    %5083 = vmatpush.bf16.msra.mxu0 %v3777
    %5084 = vmatpush.bf16.msra.mxu0 %v3761
    %5085 = vmatpush.bf16.msra.mxu0 %v3745
    %5086 = vmatpush.bf16.msra.mxu0 %v3729
    %5087 = vmatpush.bf16.msra.mxu0 %v3713
    %5088 = vmatpush.bf16.msra.mxu0 %v3697
    %5089 = vmatmul.bf16.gmra.mxu0 %v869
    %v5090 = vpop.f32.mrf.mxu0
    %v5091 = vadd.f32 %v5078, %v5090
    %v5092 = vpop.f32.mrf.mxu0
    %5093 = vdwg.mxu0
    %5094 = vmatpush.bf16.msra.mxu0 %v3937
    %5095 = vmatpush.bf16.msra.mxu0 %v3921
    %5096 = vmatpush.bf16.msra.mxu0 %v3905
    %5097 = vmatpush.bf16.msra.mxu0 %v3889
    %5098 = vmatpush.bf16.msra.mxu0 %v3873
    %5099 = vmatpush.bf16.msra.mxu0 %v3857
    %5100 = vmatpush.bf16.msra.mxu0 %v3841
    %5101 = vmatpush.bf16.msra.mxu0 %v3825
    %5102 = vmatmul.bf16.gmra.mxu0 %v870
    %v5103 = vpop.f32.mrf.mxu0
    %v5104 = vadd.f32 %v5091, %v5103
    %v5105 = vpop.f32.mrf.mxu0
    %5106 = vdwg.mxu0
    %5107 = vmatpush.bf16.msra.mxu0 %v3298
    %5108 = vmatpush.bf16.msra.mxu0 %v3282
    %5109 = vmatpush.bf16.msra.mxu0 %v3266
    %5110 = vmatpush.bf16.msra.mxu0 %v3250
    %5111 = vmatpush.bf16.msra.mxu0 %v3234
    %5112 = vmatpush.bf16.msra.mxu0 %v3218
    %5113 = vmatpush.bf16.msra.mxu0 %v3202
    %5114 = vmatpush.bf16.msra.mxu0 %v3186
    %5115 = vmatmul.bf16.gmra.mxu0 %v865
    %v5116 = vpop.f32.mrf.mxu0
    %v5117 = vadd.f32 %v836, %v5116
    %v5118 = vpop.f32.mrf.mxu0
    %5119 = vdwg.mxu0
    %5120 = vmatpush.bf16.msra.mxu0 %v3426
    %5121 = vmatpush.bf16.msra.mxu0 %v3410
    %5122 = vmatpush.bf16.msra.mxu0 %v3394
    %5123 = vmatpush.bf16.msra.mxu0 %v3378
    %5124 = vmatpush.bf16.msra.mxu0 %v3362
    %5125 = vmatpush.bf16.msra.mxu0 %v3346
    %5126 = vmatpush.bf16.msra.mxu0 %v3330
    %5127 = vmatpush.bf16.msra.mxu0 %v3314
    %5128 = vmatmul.bf16.gmra.mxu0 %v866
    %v5129 = vpop.f32.mrf.mxu0
    %v5130 = vadd.f32 %v5117, %v5129
    %v5131 = vpop.f32.mrf.mxu0
    %5132 = vdwg.mxu0
    %5133 = vmatpush.bf16.msra.mxu0 %v3554
    %5134 = vmatpush.bf16.msra.mxu0 %v3538
    %5135 = vmatpush.bf16.msra.mxu0 %v3522
    %5136 = vmatpush.bf16.msra.mxu0 %v3506
    %5137 = vmatpush.bf16.msra.mxu0 %v3490
    %5138 = vmatpush.bf16.msra.mxu0 %v3474
    %5139 = vmatpush.bf16.msra.mxu0 %v3458
    %5140 = vmatpush.bf16.msra.mxu0 %v3442
    %5141 = vmatmul.bf16.gmra.mxu0 %v867
    %v5142 = vpop.f32.mrf.mxu0
    %v5143 = vadd.f32 %v5130, %v5142
    %v5144 = vpop.f32.mrf.mxu0
    %5145 = vdwg.mxu0
    %5146 = vmatpush.bf16.msra.mxu0 %v3682
    %5147 = vmatpush.bf16.msra.mxu0 %v3666
    %5148 = vmatpush.bf16.msra.mxu0 %v3650
    %5149 = vmatpush.bf16.msra.mxu0 %v3634
    %5150 = vmatpush.bf16.msra.mxu0 %v3618
    %5151 = vmatpush.bf16.msra.mxu0 %v3602
    %5152 = vmatpush.bf16.msra.mxu0 %v3586
    %5153 = vmatpush.bf16.msra.mxu0 %v3570
    %5154 = vmatmul.bf16.gmra.mxu0 %v868
    %v5155 = vpop.f32.mrf.mxu0
    %v5156 = vadd.f32 %v5143, %v5155
    %v5157 = vpop.f32.mrf.mxu0
    %5158 = vdwg.mxu0
    %5159 = vmatpush.bf16.msra.mxu0 %v3810
    %5160 = vmatpush.bf16.msra.mxu0 %v3794
    %5161 = vmatpush.bf16.msra.mxu0 %v3778
    %5162 = vmatpush.bf16.msra.mxu0 %v3762
    %5163 = vmatpush.bf16.msra.mxu0 %v3746
    %5164 = vmatpush.bf16.msra.mxu0 %v3730
    %5165 = vmatpush.bf16.msra.mxu0 %v3714
    %5166 = vmatpush.bf16.msra.mxu0 %v3698
    %5167 = vmatmul.bf16.gmra.mxu0 %v869
    %v5168 = vpop.f32.mrf.mxu0
    %v5169 = vadd.f32 %v5156, %v5168
    %v5170 = vpop.f32.mrf.mxu0
    %5171 = vdwg.mxu0
    %5172 = vmatpush.bf16.msra.mxu0 %v3938
    %5173 = vmatpush.bf16.msra.mxu0 %v3922
    %5174 = vmatpush.bf16.msra.mxu0 %v3906
    %5175 = vmatpush.bf16.msra.mxu0 %v3890
    %5176 = vmatpush.bf16.msra.mxu0 %v3874
    %5177 = vmatpush.bf16.msra.mxu0 %v3858
    %5178 = vmatpush.bf16.msra.mxu0 %v3842
    %5179 = vmatpush.bf16.msra.mxu0 %v3826
    %5180 = vmatmul.bf16.gmra.mxu0 %v870
    %v5181 = vpop.f32.mrf.mxu0
    %v5182 = vadd.f32 %v5169, %v5181
    %v5183 = vpop.f32.mrf.mxu0
    %5184 = vdwg.mxu0
    %5185 = vmatpush.bf16.msra.mxu0 %v3299
    %5186 = vmatpush.bf16.msra.mxu0 %v3283
    %5187 = vmatpush.bf16.msra.mxu0 %v3267
    %5188 = vmatpush.bf16.msra.mxu0 %v3251
    %5189 = vmatpush.bf16.msra.mxu0 %v3235
    %5190 = vmatpush.bf16.msra.mxu0 %v3219
    %5191 = vmatpush.bf16.msra.mxu0 %v3203
    %5192 = vmatpush.bf16.msra.mxu0 %v3187
    %5193 = vmatmul.bf16.gmra.mxu0 %v865
    %v5194 = vpop.f32.mrf.mxu0
    %v5195 = vadd.f32 %v837, %v5194
    %v5196 = vpop.f32.mrf.mxu0
    %5197 = vdwg.mxu0
    %5198 = vmatpush.bf16.msra.mxu0 %v3427
    %5199 = vmatpush.bf16.msra.mxu0 %v3411
    %5200 = vmatpush.bf16.msra.mxu0 %v3395
    %5201 = vmatpush.bf16.msra.mxu0 %v3379
    %5202 = vmatpush.bf16.msra.mxu0 %v3363
    %5203 = vmatpush.bf16.msra.mxu0 %v3347
    %5204 = vmatpush.bf16.msra.mxu0 %v3331
    %5205 = vmatpush.bf16.msra.mxu0 %v3315
    %5206 = vmatmul.bf16.gmra.mxu0 %v866
    %v5207 = vpop.f32.mrf.mxu0
    %v5208 = vadd.f32 %v5195, %v5207
    %v5209 = vpop.f32.mrf.mxu0
    %5210 = vdwg.mxu0
    %5211 = vmatpush.bf16.msra.mxu0 %v3555
    %5212 = vmatpush.bf16.msra.mxu0 %v3539
    %5213 = vmatpush.bf16.msra.mxu0 %v3523
    %5214 = vmatpush.bf16.msra.mxu0 %v3507
    %5215 = vmatpush.bf16.msra.mxu0 %v3491
    %5216 = vmatpush.bf16.msra.mxu0 %v3475
    %5217 = vmatpush.bf16.msra.mxu0 %v3459
    %5218 = vmatpush.bf16.msra.mxu0 %v3443
    %5219 = vmatmul.bf16.gmra.mxu0 %v867
    %v5220 = vpop.f32.mrf.mxu0
    %v5221 = vadd.f32 %v5208, %v5220
    %v5222 = vpop.f32.mrf.mxu0
    %5223 = vdwg.mxu0
    %5224 = vmatpush.bf16.msra.mxu0 %v3683
    %5225 = vmatpush.bf16.msra.mxu0 %v3667
    %5226 = vmatpush.bf16.msra.mxu0 %v3651
    %5227 = vmatpush.bf16.msra.mxu0 %v3635
    %5228 = vmatpush.bf16.msra.mxu0 %v3619
    %5229 = vmatpush.bf16.msra.mxu0 %v3603
    %5230 = vmatpush.bf16.msra.mxu0 %v3587
    %5231 = vmatpush.bf16.msra.mxu0 %v3571
    %5232 = vmatmul.bf16.gmra.mxu0 %v868
    %v5233 = vpop.f32.mrf.mxu0
    %v5234 = vadd.f32 %v5221, %v5233
    %v5235 = vpop.f32.mrf.mxu0
    %5236 = vdwg.mxu0
    %5237 = vmatpush.bf16.msra.mxu0 %v3811
    %5238 = vmatpush.bf16.msra.mxu0 %v3795
    %5239 = vmatpush.bf16.msra.mxu0 %v3779
    %5240 = vmatpush.bf16.msra.mxu0 %v3763
    %5241 = vmatpush.bf16.msra.mxu0 %v3747
    %5242 = vmatpush.bf16.msra.mxu0 %v3731
    %5243 = vmatpush.bf16.msra.mxu0 %v3715
    %5244 = vmatpush.bf16.msra.mxu0 %v3699
    %5245 = vmatmul.bf16.gmra.mxu0 %v869
    %v5246 = vpop.f32.mrf.mxu0
    %v5247 = vadd.f32 %v5234, %v5246
    %v5248 = vpop.f32.mrf.mxu0
    %5249 = vdwg.mxu0
    %5250 = vmatpush.bf16.msra.mxu0 %v3939
    %5251 = vmatpush.bf16.msra.mxu0 %v3923
    %5252 = vmatpush.bf16.msra.mxu0 %v3907
    %5253 = vmatpush.bf16.msra.mxu0 %v3891
    %5254 = vmatpush.bf16.msra.mxu0 %v3875
    %5255 = vmatpush.bf16.msra.mxu0 %v3859
    %5256 = vmatpush.bf16.msra.mxu0 %v3843
    %5257 = vmatpush.bf16.msra.mxu0 %v3827
    %5258 = vmatmul.bf16.gmra.mxu0 %v870
    %v5259 = vpop.f32.mrf.mxu0
    %v5260 = vadd.f32 %v5247, %v5259
    %v5261 = vpop.f32.mrf.mxu0
    %5262 = vdwg.mxu0
    %5263 = vmatpush.bf16.msra.mxu0 %v3300
    %5264 = vmatpush.bf16.msra.mxu0 %v3284
    %5265 = vmatpush.bf16.msra.mxu0 %v3268
    %5266 = vmatpush.bf16.msra.mxu0 %v3252
    %5267 = vmatpush.bf16.msra.mxu0 %v3236
    %5268 = vmatpush.bf16.msra.mxu0 %v3220
    %5269 = vmatpush.bf16.msra.mxu0 %v3204
    %5270 = vmatpush.bf16.msra.mxu0 %v3188
    %5271 = vmatmul.bf16.gmra.mxu0 %v865
    %v5272 = vpop.f32.mrf.mxu0
    %v5273 = vadd.f32 %v838, %v5272
    %v5274 = vpop.f32.mrf.mxu0
    %5275 = vdwg.mxu0
    %5276 = vmatpush.bf16.msra.mxu0 %v3428
    %5277 = vmatpush.bf16.msra.mxu0 %v3412
    %5278 = vmatpush.bf16.msra.mxu0 %v3396
    %5279 = vmatpush.bf16.msra.mxu0 %v3380
    %5280 = vmatpush.bf16.msra.mxu0 %v3364
    %5281 = vmatpush.bf16.msra.mxu0 %v3348
    %5282 = vmatpush.bf16.msra.mxu0 %v3332
    %5283 = vmatpush.bf16.msra.mxu0 %v3316
    %5284 = vmatmul.bf16.gmra.mxu0 %v866
    %v5285 = vpop.f32.mrf.mxu0
    %v5286 = vadd.f32 %v5273, %v5285
    %v5287 = vpop.f32.mrf.mxu0
    %5288 = vdwg.mxu0
    %5289 = vmatpush.bf16.msra.mxu0 %v3556
    %5290 = vmatpush.bf16.msra.mxu0 %v3540
    %5291 = vmatpush.bf16.msra.mxu0 %v3524
    %5292 = vmatpush.bf16.msra.mxu0 %v3508
    %5293 = vmatpush.bf16.msra.mxu0 %v3492
    %5294 = vmatpush.bf16.msra.mxu0 %v3476
    %5295 = vmatpush.bf16.msra.mxu0 %v3460
    %5296 = vmatpush.bf16.msra.mxu0 %v3444
    %5297 = vmatmul.bf16.gmra.mxu0 %v867
    %v5298 = vpop.f32.mrf.mxu0
    %v5299 = vadd.f32 %v5286, %v5298
    %v5300 = vpop.f32.mrf.mxu0
    %5301 = vdwg.mxu0
    %5302 = vmatpush.bf16.msra.mxu0 %v3684
    %5303 = vmatpush.bf16.msra.mxu0 %v3668
    %5304 = vmatpush.bf16.msra.mxu0 %v3652
    %5305 = vmatpush.bf16.msra.mxu0 %v3636
    %5306 = vmatpush.bf16.msra.mxu0 %v3620
    %5307 = vmatpush.bf16.msra.mxu0 %v3604
    %5308 = vmatpush.bf16.msra.mxu0 %v3588
    %5309 = vmatpush.bf16.msra.mxu0 %v3572
    %5310 = vmatmul.bf16.gmra.mxu0 %v868
    %v5311 = vpop.f32.mrf.mxu0
    %v5312 = vadd.f32 %v5299, %v5311
    %v5313 = vpop.f32.mrf.mxu0
    %5314 = vdwg.mxu0
    %5315 = vmatpush.bf16.msra.mxu0 %v3812
    %5316 = vmatpush.bf16.msra.mxu0 %v3796
    %5317 = vmatpush.bf16.msra.mxu0 %v3780
    %5318 = vmatpush.bf16.msra.mxu0 %v3764
    %5319 = vmatpush.bf16.msra.mxu0 %v3748
    %5320 = vmatpush.bf16.msra.mxu0 %v3732
    %5321 = vmatpush.bf16.msra.mxu0 %v3716
    %5322 = vmatpush.bf16.msra.mxu0 %v3700
    %5323 = vmatmul.bf16.gmra.mxu0 %v869
    %v5324 = vpop.f32.mrf.mxu0
    %v5325 = vadd.f32 %v5312, %v5324
    %v5326 = vpop.f32.mrf.mxu0
    %5327 = vdwg.mxu0
    %5328 = vmatpush.bf16.msra.mxu0 %v3940
    %5329 = vmatpush.bf16.msra.mxu0 %v3924
    %5330 = vmatpush.bf16.msra.mxu0 %v3908
    %5331 = vmatpush.bf16.msra.mxu0 %v3892
    %5332 = vmatpush.bf16.msra.mxu0 %v3876
    %5333 = vmatpush.bf16.msra.mxu0 %v3860
    %5334 = vmatpush.bf16.msra.mxu0 %v3844
    %5335 = vmatpush.bf16.msra.mxu0 %v3828
    %5336 = vmatmul.bf16.gmra.mxu0 %v870
    %v5337 = vpop.f32.mrf.mxu0
    %v5338 = vadd.f32 %v5325, %v5337
    %v5339 = vpop.f32.mrf.mxu0
    %5340 = vdwg.mxu0
    %5341 = vmatpush.bf16.msra.mxu0 %v3301
    %5342 = vmatpush.bf16.msra.mxu0 %v3285
    %5343 = vmatpush.bf16.msra.mxu0 %v3269
    %5344 = vmatpush.bf16.msra.mxu0 %v3253
    %5345 = vmatpush.bf16.msra.mxu0 %v3237
    %5346 = vmatpush.bf16.msra.mxu0 %v3221
    %5347 = vmatpush.bf16.msra.mxu0 %v3205
    %5348 = vmatpush.bf16.msra.mxu0 %v3189
    %5349 = vmatmul.bf16.gmra.mxu0 %v865
    %v5350 = vpop.f32.mrf.mxu0
    %v5351 = vadd.f32 %v839, %v5350
    %v5352 = vpop.f32.mrf.mxu0
    %5353 = vdwg.mxu0
    %5354 = vmatpush.bf16.msra.mxu0 %v3429
    %5355 = vmatpush.bf16.msra.mxu0 %v3413
    %5356 = vmatpush.bf16.msra.mxu0 %v3397
    %5357 = vmatpush.bf16.msra.mxu0 %v3381
    %5358 = vmatpush.bf16.msra.mxu0 %v3365
    %5359 = vmatpush.bf16.msra.mxu0 %v3349
    %5360 = vmatpush.bf16.msra.mxu0 %v3333
    %5361 = vmatpush.bf16.msra.mxu0 %v3317
    %5362 = vmatmul.bf16.gmra.mxu0 %v866
    %v5363 = vpop.f32.mrf.mxu0
    %v5364 = vadd.f32 %v5351, %v5363
    %v5365 = vpop.f32.mrf.mxu0
    %5366 = vdwg.mxu0
    %5367 = vmatpush.bf16.msra.mxu0 %v3557
    %5368 = vmatpush.bf16.msra.mxu0 %v3541
    %5369 = vmatpush.bf16.msra.mxu0 %v3525
    %5370 = vmatpush.bf16.msra.mxu0 %v3509
    %5371 = vmatpush.bf16.msra.mxu0 %v3493
    %5372 = vmatpush.bf16.msra.mxu0 %v3477
    %5373 = vmatpush.bf16.msra.mxu0 %v3461
    %5374 = vmatpush.bf16.msra.mxu0 %v3445
    %5375 = vmatmul.bf16.gmra.mxu0 %v867
    %v5376 = vpop.f32.mrf.mxu0
    %v5377 = vadd.f32 %v5364, %v5376
    %v5378 = vpop.f32.mrf.mxu0
    %5379 = vdwg.mxu0
    %5380 = vmatpush.bf16.msra.mxu0 %v3685
    %5381 = vmatpush.bf16.msra.mxu0 %v3669
    %5382 = vmatpush.bf16.msra.mxu0 %v3653
    %5383 = vmatpush.bf16.msra.mxu0 %v3637
    %5384 = vmatpush.bf16.msra.mxu0 %v3621
    %5385 = vmatpush.bf16.msra.mxu0 %v3605
    %5386 = vmatpush.bf16.msra.mxu0 %v3589
    %5387 = vmatpush.bf16.msra.mxu0 %v3573
    %5388 = vmatmul.bf16.gmra.mxu0 %v868
    %v5389 = vpop.f32.mrf.mxu0
    %v5390 = vadd.f32 %v5377, %v5389
    %v5391 = vpop.f32.mrf.mxu0
    %5392 = vdwg.mxu0
    %5393 = vmatpush.bf16.msra.mxu0 %v3813
    %5394 = vmatpush.bf16.msra.mxu0 %v3797
    %5395 = vmatpush.bf16.msra.mxu0 %v3781
    %5396 = vmatpush.bf16.msra.mxu0 %v3765
    %5397 = vmatpush.bf16.msra.mxu0 %v3749
    %5398 = vmatpush.bf16.msra.mxu0 %v3733
    %5399 = vmatpush.bf16.msra.mxu0 %v3717
    %5400 = vmatpush.bf16.msra.mxu0 %v3701
    %5401 = vmatmul.bf16.gmra.mxu0 %v869
    %v5402 = vpop.f32.mrf.mxu0
    %v5403 = vadd.f32 %v5390, %v5402
    %v5404 = vpop.f32.mrf.mxu0
    %5405 = vdwg.mxu0
    %5406 = vmatpush.bf16.msra.mxu0 %v3941
    %5407 = vmatpush.bf16.msra.mxu0 %v3925
    %5408 = vmatpush.bf16.msra.mxu0 %v3909
    %5409 = vmatpush.bf16.msra.mxu0 %v3893
    %5410 = vmatpush.bf16.msra.mxu0 %v3877
    %5411 = vmatpush.bf16.msra.mxu0 %v3861
    %5412 = vmatpush.bf16.msra.mxu0 %v3845
    %5413 = vmatpush.bf16.msra.mxu0 %v3829
    %5414 = vmatmul.bf16.gmra.mxu0 %v870
    %v5415 = vpop.f32.mrf.mxu0
    %v5416 = vadd.f32 %v5403, %v5415
    %v5417 = vpop.f32.mrf.mxu0
    %5418 = vdwg.mxu0
    %5419 = vmatpush.bf16.msra.mxu0 %v3302
    %5420 = vmatpush.bf16.msra.mxu0 %v3286
    %5421 = vmatpush.bf16.msra.mxu0 %v3270
    %5422 = vmatpush.bf16.msra.mxu0 %v3254
    %5423 = vmatpush.bf16.msra.mxu0 %v3238
    %5424 = vmatpush.bf16.msra.mxu0 %v3222
    %5425 = vmatpush.bf16.msra.mxu0 %v3206
    %5426 = vmatpush.bf16.msra.mxu0 %v3190
    %5427 = vmatmul.bf16.gmra.mxu0 %v865
    %v5428 = vpop.f32.mrf.mxu0
    %v5429 = vadd.f32 %v840, %v5428
    %v5430 = vpop.f32.mrf.mxu0
    %5431 = vdwg.mxu0
    %5432 = vmatpush.bf16.msra.mxu0 %v3430
    %5433 = vmatpush.bf16.msra.mxu0 %v3414
    %5434 = vmatpush.bf16.msra.mxu0 %v3398
    %5435 = vmatpush.bf16.msra.mxu0 %v3382
    %5436 = vmatpush.bf16.msra.mxu0 %v3366
    %5437 = vmatpush.bf16.msra.mxu0 %v3350
    %5438 = vmatpush.bf16.msra.mxu0 %v3334
    %5439 = vmatpush.bf16.msra.mxu0 %v3318
    %5440 = vmatmul.bf16.gmra.mxu0 %v866
    %v5441 = vpop.f32.mrf.mxu0
    %v5442 = vadd.f32 %v5429, %v5441
    %v5443 = vpop.f32.mrf.mxu0
    %5444 = vdwg.mxu0
    %5445 = vmatpush.bf16.msra.mxu0 %v3558
    %5446 = vmatpush.bf16.msra.mxu0 %v3542
    %5447 = vmatpush.bf16.msra.mxu0 %v3526
    %5448 = vmatpush.bf16.msra.mxu0 %v3510
    %5449 = vmatpush.bf16.msra.mxu0 %v3494
    %5450 = vmatpush.bf16.msra.mxu0 %v3478
    %5451 = vmatpush.bf16.msra.mxu0 %v3462
    %5452 = vmatpush.bf16.msra.mxu0 %v3446
    %5453 = vmatmul.bf16.gmra.mxu0 %v867
    %v5454 = vpop.f32.mrf.mxu0
    %v5455 = vadd.f32 %v5442, %v5454
    %v5456 = vpop.f32.mrf.mxu0
    %5457 = vdwg.mxu0
    %5458 = vmatpush.bf16.msra.mxu0 %v3686
    %5459 = vmatpush.bf16.msra.mxu0 %v3670
    %5460 = vmatpush.bf16.msra.mxu0 %v3654
    %5461 = vmatpush.bf16.msra.mxu0 %v3638
    %5462 = vmatpush.bf16.msra.mxu0 %v3622
    %5463 = vmatpush.bf16.msra.mxu0 %v3606
    %5464 = vmatpush.bf16.msra.mxu0 %v3590
    %5465 = vmatpush.bf16.msra.mxu0 %v3574
    %5466 = vmatmul.bf16.gmra.mxu0 %v868
    %v5467 = vpop.f32.mrf.mxu0
    %v5468 = vadd.f32 %v5455, %v5467
    %v5469 = vpop.f32.mrf.mxu0
    %5470 = vdwg.mxu0
    %5471 = vmatpush.bf16.msra.mxu0 %v3814
    %5472 = vmatpush.bf16.msra.mxu0 %v3798
    %5473 = vmatpush.bf16.msra.mxu0 %v3782
    %5474 = vmatpush.bf16.msra.mxu0 %v3766
    %5475 = vmatpush.bf16.msra.mxu0 %v3750
    %5476 = vmatpush.bf16.msra.mxu0 %v3734
    %5477 = vmatpush.bf16.msra.mxu0 %v3718
    %5478 = vmatpush.bf16.msra.mxu0 %v3702
    %5479 = vmatmul.bf16.gmra.mxu0 %v869
    %v5480 = vpop.f32.mrf.mxu0
    %v5481 = vadd.f32 %v5468, %v5480
    %v5482 = vpop.f32.mrf.mxu0
    %5483 = vdwg.mxu0
    %5484 = vmatpush.bf16.msra.mxu0 %v3942
    %5485 = vmatpush.bf16.msra.mxu0 %v3926
    %5486 = vmatpush.bf16.msra.mxu0 %v3910
    %5487 = vmatpush.bf16.msra.mxu0 %v3894
    %5488 = vmatpush.bf16.msra.mxu0 %v3878
    %5489 = vmatpush.bf16.msra.mxu0 %v3862
    %5490 = vmatpush.bf16.msra.mxu0 %v3846
    %5491 = vmatpush.bf16.msra.mxu0 %v3830
    %5492 = vmatmul.bf16.gmra.mxu0 %v870
    %v5493 = vpop.f32.mrf.mxu0
    %v5494 = vadd.f32 %v5481, %v5493
    %v5495 = vpop.f32.mrf.mxu0
    %5496 = vdwg.mxu0
    %5497 = vmatpush.bf16.msra.mxu0 %v3303
    %5498 = vmatpush.bf16.msra.mxu0 %v3287
    %5499 = vmatpush.bf16.msra.mxu0 %v3271
    %5500 = vmatpush.bf16.msra.mxu0 %v3255
    %5501 = vmatpush.bf16.msra.mxu0 %v3239
    %5502 = vmatpush.bf16.msra.mxu0 %v3223
    %5503 = vmatpush.bf16.msra.mxu0 %v3207
    %5504 = vmatpush.bf16.msra.mxu0 %v3191
    %5505 = vmatmul.bf16.gmra.mxu0 %v865
    %v5506 = vpop.f32.mrf.mxu0
    %v5507 = vadd.f32 %v841, %v5506
    %v5508 = vpop.f32.mrf.mxu0
    %5509 = vdwg.mxu0
    %5510 = vmatpush.bf16.msra.mxu0 %v3431
    %5511 = vmatpush.bf16.msra.mxu0 %v3415
    %5512 = vmatpush.bf16.msra.mxu0 %v3399
    %5513 = vmatpush.bf16.msra.mxu0 %v3383
    %5514 = vmatpush.bf16.msra.mxu0 %v3367
    %5515 = vmatpush.bf16.msra.mxu0 %v3351
    %5516 = vmatpush.bf16.msra.mxu0 %v3335
    %5517 = vmatpush.bf16.msra.mxu0 %v3319
    %5518 = vmatmul.bf16.gmra.mxu0 %v866
    %v5519 = vpop.f32.mrf.mxu0
    %v5520 = vadd.f32 %v5507, %v5519
    %v5521 = vpop.f32.mrf.mxu0
    %5522 = vdwg.mxu0
    %5523 = vmatpush.bf16.msra.mxu0 %v3559
    %5524 = vmatpush.bf16.msra.mxu0 %v3543
    %5525 = vmatpush.bf16.msra.mxu0 %v3527
    %5526 = vmatpush.bf16.msra.mxu0 %v3511
    %5527 = vmatpush.bf16.msra.mxu0 %v3495
    %5528 = vmatpush.bf16.msra.mxu0 %v3479
    %5529 = vmatpush.bf16.msra.mxu0 %v3463
    %5530 = vmatpush.bf16.msra.mxu0 %v3447
    %5531 = vmatmul.bf16.gmra.mxu0 %v867
    %v5532 = vpop.f32.mrf.mxu0
    %v5533 = vadd.f32 %v5520, %v5532
    %v5534 = vpop.f32.mrf.mxu0
    %5535 = vdwg.mxu0
    %5536 = vmatpush.bf16.msra.mxu0 %v3687
    %5537 = vmatpush.bf16.msra.mxu0 %v3671
    %5538 = vmatpush.bf16.msra.mxu0 %v3655
    %5539 = vmatpush.bf16.msra.mxu0 %v3639
    %5540 = vmatpush.bf16.msra.mxu0 %v3623
    %5541 = vmatpush.bf16.msra.mxu0 %v3607
    %5542 = vmatpush.bf16.msra.mxu0 %v3591
    %5543 = vmatpush.bf16.msra.mxu0 %v3575
    %5544 = vmatmul.bf16.gmra.mxu0 %v868
    %v5545 = vpop.f32.mrf.mxu0
    %v5546 = vadd.f32 %v5533, %v5545
    %v5547 = vpop.f32.mrf.mxu0
    %5548 = vdwg.mxu0
    %5549 = vmatpush.bf16.msra.mxu0 %v3815
    %5550 = vmatpush.bf16.msra.mxu0 %v3799
    %5551 = vmatpush.bf16.msra.mxu0 %v3783
    %5552 = vmatpush.bf16.msra.mxu0 %v3767
    %5553 = vmatpush.bf16.msra.mxu0 %v3751
    %5554 = vmatpush.bf16.msra.mxu0 %v3735
    %5555 = vmatpush.bf16.msra.mxu0 %v3719
    %5556 = vmatpush.bf16.msra.mxu0 %v3703
    %5557 = vmatmul.bf16.gmra.mxu0 %v869
    %v5558 = vpop.f32.mrf.mxu0
    %v5559 = vadd.f32 %v5546, %v5558
    %v5560 = vpop.f32.mrf.mxu0
    %5561 = vdwg.mxu0
    %5562 = vmatpush.bf16.msra.mxu0 %v3943
    %5563 = vmatpush.bf16.msra.mxu0 %v3927
    %5564 = vmatpush.bf16.msra.mxu0 %v3911
    %5565 = vmatpush.bf16.msra.mxu0 %v3895
    %5566 = vmatpush.bf16.msra.mxu0 %v3879
    %5567 = vmatpush.bf16.msra.mxu0 %v3863
    %5568 = vmatpush.bf16.msra.mxu0 %v3847
    %5569 = vmatpush.bf16.msra.mxu0 %v3831
    %5570 = vmatmul.bf16.gmra.mxu0 %v870
    %v5571 = vpop.f32.mrf.mxu0
    %v5572 = vadd.f32 %v5559, %v5571
    %v5573 = vpop.f32.mrf.mxu0
    %5574 = vdwg.mxu0
    %5575 = vmatpush.bf16.msra.mxu0 %v3304
    %5576 = vmatpush.bf16.msra.mxu0 %v3288
    %5577 = vmatpush.bf16.msra.mxu0 %v3272
    %5578 = vmatpush.bf16.msra.mxu0 %v3256
    %5579 = vmatpush.bf16.msra.mxu0 %v3240
    %5580 = vmatpush.bf16.msra.mxu0 %v3224
    %5581 = vmatpush.bf16.msra.mxu0 %v3208
    %5582 = vmatpush.bf16.msra.mxu0 %v3192
    %5583 = vmatmul.bf16.gmra.mxu0 %v865
    %v5584 = vpop.f32.mrf.mxu0
    %v5585 = vadd.f32 %v842, %v5584
    %v5586 = vpop.f32.mrf.mxu0
    %5587 = vdwg.mxu0
    %5588 = vmatpush.bf16.msra.mxu0 %v3432
    %5589 = vmatpush.bf16.msra.mxu0 %v3416
    %5590 = vmatpush.bf16.msra.mxu0 %v3400
    %5591 = vmatpush.bf16.msra.mxu0 %v3384
    %5592 = vmatpush.bf16.msra.mxu0 %v3368
    %5593 = vmatpush.bf16.msra.mxu0 %v3352
    %5594 = vmatpush.bf16.msra.mxu0 %v3336
    %5595 = vmatpush.bf16.msra.mxu0 %v3320
    %5596 = vmatmul.bf16.gmra.mxu0 %v866
    %v5597 = vpop.f32.mrf.mxu0
    %v5598 = vadd.f32 %v5585, %v5597
    %v5599 = vpop.f32.mrf.mxu0
    %5600 = vdwg.mxu0
    %5601 = vmatpush.bf16.msra.mxu0 %v3560
    %5602 = vmatpush.bf16.msra.mxu0 %v3544
    %5603 = vmatpush.bf16.msra.mxu0 %v3528
    %5604 = vmatpush.bf16.msra.mxu0 %v3512
    %5605 = vmatpush.bf16.msra.mxu0 %v3496
    %5606 = vmatpush.bf16.msra.mxu0 %v3480
    %5607 = vmatpush.bf16.msra.mxu0 %v3464
    %5608 = vmatpush.bf16.msra.mxu0 %v3448
    %5609 = vmatmul.bf16.gmra.mxu0 %v867
    %v5610 = vpop.f32.mrf.mxu0
    %v5611 = vadd.f32 %v5598, %v5610
    %v5612 = vpop.f32.mrf.mxu0
    %5613 = vdwg.mxu0
    %5614 = vmatpush.bf16.msra.mxu0 %v3688
    %5615 = vmatpush.bf16.msra.mxu0 %v3672
    %5616 = vmatpush.bf16.msra.mxu0 %v3656
    %5617 = vmatpush.bf16.msra.mxu0 %v3640
    %5618 = vmatpush.bf16.msra.mxu0 %v3624
    %5619 = vmatpush.bf16.msra.mxu0 %v3608
    %5620 = vmatpush.bf16.msra.mxu0 %v3592
    %5621 = vmatpush.bf16.msra.mxu0 %v3576
    %5622 = vmatmul.bf16.gmra.mxu0 %v868
    %v5623 = vpop.f32.mrf.mxu0
    %v5624 = vadd.f32 %v5611, %v5623
    %v5625 = vpop.f32.mrf.mxu0
    %5626 = vdwg.mxu0
    %5627 = vmatpush.bf16.msra.mxu0 %v3816
    %5628 = vmatpush.bf16.msra.mxu0 %v3800
    %5629 = vmatpush.bf16.msra.mxu0 %v3784
    %5630 = vmatpush.bf16.msra.mxu0 %v3768
    %5631 = vmatpush.bf16.msra.mxu0 %v3752
    %5632 = vmatpush.bf16.msra.mxu0 %v3736
    %5633 = vmatpush.bf16.msra.mxu0 %v3720
    %5634 = vmatpush.bf16.msra.mxu0 %v3704
    %5635 = vmatmul.bf16.gmra.mxu0 %v869
    %v5636 = vpop.f32.mrf.mxu0
    %v5637 = vadd.f32 %v5624, %v5636
    %v5638 = vpop.f32.mrf.mxu0
    %5639 = vdwg.mxu0
    %5640 = vmatpush.bf16.msra.mxu0 %v3944
    %5641 = vmatpush.bf16.msra.mxu0 %v3928
    %5642 = vmatpush.bf16.msra.mxu0 %v3912
    %5643 = vmatpush.bf16.msra.mxu0 %v3896
    %5644 = vmatpush.bf16.msra.mxu0 %v3880
    %5645 = vmatpush.bf16.msra.mxu0 %v3864
    %5646 = vmatpush.bf16.msra.mxu0 %v3848
    %5647 = vmatpush.bf16.msra.mxu0 %v3832
    %5648 = vmatmul.bf16.gmra.mxu0 %v870
    %v5649 = vpop.f32.mrf.mxu0
    %v5650 = vadd.f32 %v5637, %v5649
    %v5651 = vpop.f32.mrf.mxu0
    %5652 = vdwg.mxu0
    %5653 = vmatpush.bf16.msra.mxu0 %v3305
    %5654 = vmatpush.bf16.msra.mxu0 %v3289
    %5655 = vmatpush.bf16.msra.mxu0 %v3273
    %5656 = vmatpush.bf16.msra.mxu0 %v3257
    %5657 = vmatpush.bf16.msra.mxu0 %v3241
    %5658 = vmatpush.bf16.msra.mxu0 %v3225
    %5659 = vmatpush.bf16.msra.mxu0 %v3209
    %5660 = vmatpush.bf16.msra.mxu0 %v3193
    %5661 = vmatmul.bf16.gmra.mxu0 %v865
    %v5662 = vpop.f32.mrf.mxu0
    %v5663 = vadd.f32 %v843, %v5662
    %v5664 = vpop.f32.mrf.mxu0
    %5665 = vdwg.mxu0
    %5666 = vmatpush.bf16.msra.mxu0 %v3433
    %5667 = vmatpush.bf16.msra.mxu0 %v3417
    %5668 = vmatpush.bf16.msra.mxu0 %v3401
    %5669 = vmatpush.bf16.msra.mxu0 %v3385
    %5670 = vmatpush.bf16.msra.mxu0 %v3369
    %5671 = vmatpush.bf16.msra.mxu0 %v3353
    %5672 = vmatpush.bf16.msra.mxu0 %v3337
    %5673 = vmatpush.bf16.msra.mxu0 %v3321
    %5674 = vmatmul.bf16.gmra.mxu0 %v866
    %v5675 = vpop.f32.mrf.mxu0
    %v5676 = vadd.f32 %v5663, %v5675
    %v5677 = vpop.f32.mrf.mxu0
    %5678 = vdwg.mxu0
    %5679 = vmatpush.bf16.msra.mxu0 %v3561
    %5680 = vmatpush.bf16.msra.mxu0 %v3545
    %5681 = vmatpush.bf16.msra.mxu0 %v3529
    %5682 = vmatpush.bf16.msra.mxu0 %v3513
    %5683 = vmatpush.bf16.msra.mxu0 %v3497
    %5684 = vmatpush.bf16.msra.mxu0 %v3481
    %5685 = vmatpush.bf16.msra.mxu0 %v3465
    %5686 = vmatpush.bf16.msra.mxu0 %v3449
    %5687 = vmatmul.bf16.gmra.mxu0 %v867
    %v5688 = vpop.f32.mrf.mxu0
    %v5689 = vadd.f32 %v5676, %v5688
    %v5690 = vpop.f32.mrf.mxu0
    %5691 = vdwg.mxu0
    %5692 = vmatpush.bf16.msra.mxu0 %v3689
    %5693 = vmatpush.bf16.msra.mxu0 %v3673
    %5694 = vmatpush.bf16.msra.mxu0 %v3657
    %5695 = vmatpush.bf16.msra.mxu0 %v3641
    %5696 = vmatpush.bf16.msra.mxu0 %v3625
    %5697 = vmatpush.bf16.msra.mxu0 %v3609
    %5698 = vmatpush.bf16.msra.mxu0 %v3593
    %5699 = vmatpush.bf16.msra.mxu0 %v3577
    %5700 = vmatmul.bf16.gmra.mxu0 %v868
    %v5701 = vpop.f32.mrf.mxu0
    %v5702 = vadd.f32 %v5689, %v5701
    %v5703 = vpop.f32.mrf.mxu0
    %5704 = vdwg.mxu0
    %5705 = vmatpush.bf16.msra.mxu0 %v3817
    %5706 = vmatpush.bf16.msra.mxu0 %v3801
    %5707 = vmatpush.bf16.msra.mxu0 %v3785
    %5708 = vmatpush.bf16.msra.mxu0 %v3769
    %5709 = vmatpush.bf16.msra.mxu0 %v3753
    %5710 = vmatpush.bf16.msra.mxu0 %v3737
    %5711 = vmatpush.bf16.msra.mxu0 %v3721
    %5712 = vmatpush.bf16.msra.mxu0 %v3705
    %5713 = vmatmul.bf16.gmra.mxu0 %v869
    %v5714 = vpop.f32.mrf.mxu0
    %v5715 = vadd.f32 %v5702, %v5714
    %v5716 = vpop.f32.mrf.mxu0
    %5717 = vdwg.mxu0
    %5718 = vmatpush.bf16.msra.mxu0 %v3945
    %5719 = vmatpush.bf16.msra.mxu0 %v3929
    %5720 = vmatpush.bf16.msra.mxu0 %v3913
    %5721 = vmatpush.bf16.msra.mxu0 %v3897
    %5722 = vmatpush.bf16.msra.mxu0 %v3881
    %5723 = vmatpush.bf16.msra.mxu0 %v3865
    %5724 = vmatpush.bf16.msra.mxu0 %v3849
    %5725 = vmatpush.bf16.msra.mxu0 %v3833
    %5726 = vmatmul.bf16.gmra.mxu0 %v870
    %v5727 = vpop.f32.mrf.mxu0
    %v5728 = vadd.f32 %v5715, %v5727
    %v5729 = vpop.f32.mrf.mxu0
    %5730 = vdwg.mxu0
    %5731 = vmatpush.bf16.msra.mxu0 %v3306
    %5732 = vmatpush.bf16.msra.mxu0 %v3290
    %5733 = vmatpush.bf16.msra.mxu0 %v3274
    %5734 = vmatpush.bf16.msra.mxu0 %v3258
    %5735 = vmatpush.bf16.msra.mxu0 %v3242
    %5736 = vmatpush.bf16.msra.mxu0 %v3226
    %5737 = vmatpush.bf16.msra.mxu0 %v3210
    %5738 = vmatpush.bf16.msra.mxu0 %v3194
    %5739 = vmatmul.bf16.gmra.mxu0 %v865
    %v5740 = vpop.f32.mrf.mxu0
    %v5741 = vadd.f32 %v844, %v5740
    %v5742 = vpop.f32.mrf.mxu0
    %5743 = vdwg.mxu0
    %5744 = vmatpush.bf16.msra.mxu0 %v3434
    %5745 = vmatpush.bf16.msra.mxu0 %v3418
    %5746 = vmatpush.bf16.msra.mxu0 %v3402
    %5747 = vmatpush.bf16.msra.mxu0 %v3386
    %5748 = vmatpush.bf16.msra.mxu0 %v3370
    %5749 = vmatpush.bf16.msra.mxu0 %v3354
    %5750 = vmatpush.bf16.msra.mxu0 %v3338
    %5751 = vmatpush.bf16.msra.mxu0 %v3322
    %5752 = vmatmul.bf16.gmra.mxu0 %v866
    %v5753 = vpop.f32.mrf.mxu0
    %v5754 = vadd.f32 %v5741, %v5753
    %v5755 = vpop.f32.mrf.mxu0
    %5756 = vdwg.mxu0
    %5757 = vmatpush.bf16.msra.mxu0 %v3562
    %5758 = vmatpush.bf16.msra.mxu0 %v3546
    %5759 = vmatpush.bf16.msra.mxu0 %v3530
    %5760 = vmatpush.bf16.msra.mxu0 %v3514
    %5761 = vmatpush.bf16.msra.mxu0 %v3498
    %5762 = vmatpush.bf16.msra.mxu0 %v3482
    %5763 = vmatpush.bf16.msra.mxu0 %v3466
    %5764 = vmatpush.bf16.msra.mxu0 %v3450
    %5765 = vmatmul.bf16.gmra.mxu0 %v867
    %v5766 = vpop.f32.mrf.mxu0
    %v5767 = vadd.f32 %v5754, %v5766
    %v5768 = vpop.f32.mrf.mxu0
    %5769 = vdwg.mxu0
    %5770 = vmatpush.bf16.msra.mxu0 %v3690
    %5771 = vmatpush.bf16.msra.mxu0 %v3674
    %5772 = vmatpush.bf16.msra.mxu0 %v3658
    %5773 = vmatpush.bf16.msra.mxu0 %v3642
    %5774 = vmatpush.bf16.msra.mxu0 %v3626
    %5775 = vmatpush.bf16.msra.mxu0 %v3610
    %5776 = vmatpush.bf16.msra.mxu0 %v3594
    %5777 = vmatpush.bf16.msra.mxu0 %v3578
    %5778 = vmatmul.bf16.gmra.mxu0 %v868
    %v5779 = vpop.f32.mrf.mxu0
    %v5780 = vadd.f32 %v5767, %v5779
    %v5781 = vpop.f32.mrf.mxu0
    %5782 = vdwg.mxu0
    %5783 = vmatpush.bf16.msra.mxu0 %v3818
    %5784 = vmatpush.bf16.msra.mxu0 %v3802
    %5785 = vmatpush.bf16.msra.mxu0 %v3786
    %5786 = vmatpush.bf16.msra.mxu0 %v3770
    %5787 = vmatpush.bf16.msra.mxu0 %v3754
    %5788 = vmatpush.bf16.msra.mxu0 %v3738
    %5789 = vmatpush.bf16.msra.mxu0 %v3722
    %5790 = vmatpush.bf16.msra.mxu0 %v3706
    %5791 = vmatmul.bf16.gmra.mxu0 %v869
    %v5792 = vpop.f32.mrf.mxu0
    %v5793 = vadd.f32 %v5780, %v5792
    %v5794 = vpop.f32.mrf.mxu0
    %5795 = vdwg.mxu0
    %5796 = vmatpush.bf16.msra.mxu0 %v3946
    %5797 = vmatpush.bf16.msra.mxu0 %v3930
    %5798 = vmatpush.bf16.msra.mxu0 %v3914
    %5799 = vmatpush.bf16.msra.mxu0 %v3898
    %5800 = vmatpush.bf16.msra.mxu0 %v3882
    %5801 = vmatpush.bf16.msra.mxu0 %v3866
    %5802 = vmatpush.bf16.msra.mxu0 %v3850
    %5803 = vmatpush.bf16.msra.mxu0 %v3834
    %5804 = vmatmul.bf16.gmra.mxu0 %v870
    %v5805 = vpop.f32.mrf.mxu0
    %v5806 = vadd.f32 %v5793, %v5805
    %v5807 = vpop.f32.mrf.mxu0
    %5808 = vdwg.mxu0
    %5809 = vmatpush.bf16.msra.mxu0 %v3307
    %5810 = vmatpush.bf16.msra.mxu0 %v3291
    %5811 = vmatpush.bf16.msra.mxu0 %v3275
    %5812 = vmatpush.bf16.msra.mxu0 %v3259
    %5813 = vmatpush.bf16.msra.mxu0 %v3243
    %5814 = vmatpush.bf16.msra.mxu0 %v3227
    %5815 = vmatpush.bf16.msra.mxu0 %v3211
    %5816 = vmatpush.bf16.msra.mxu0 %v3195
    %5817 = vmatmul.bf16.gmra.mxu0 %v865
    %v5818 = vpop.f32.mrf.mxu0
    %v5819 = vadd.f32 %v845, %v5818
    %v5820 = vpop.f32.mrf.mxu0
    %5821 = vdwg.mxu0
    %5822 = vmatpush.bf16.msra.mxu0 %v3435
    %5823 = vmatpush.bf16.msra.mxu0 %v3419
    %5824 = vmatpush.bf16.msra.mxu0 %v3403
    %5825 = vmatpush.bf16.msra.mxu0 %v3387
    %5826 = vmatpush.bf16.msra.mxu0 %v3371
    %5827 = vmatpush.bf16.msra.mxu0 %v3355
    %5828 = vmatpush.bf16.msra.mxu0 %v3339
    %5829 = vmatpush.bf16.msra.mxu0 %v3323
    %5830 = vmatmul.bf16.gmra.mxu0 %v866
    %v5831 = vpop.f32.mrf.mxu0
    %v5832 = vadd.f32 %v5819, %v5831
    %v5833 = vpop.f32.mrf.mxu0
    %5834 = vdwg.mxu0
    %5835 = vmatpush.bf16.msra.mxu0 %v3563
    %5836 = vmatpush.bf16.msra.mxu0 %v3547
    %5837 = vmatpush.bf16.msra.mxu0 %v3531
    %5838 = vmatpush.bf16.msra.mxu0 %v3515
    %5839 = vmatpush.bf16.msra.mxu0 %v3499
    %5840 = vmatpush.bf16.msra.mxu0 %v3483
    %5841 = vmatpush.bf16.msra.mxu0 %v3467
    %5842 = vmatpush.bf16.msra.mxu0 %v3451
    %5843 = vmatmul.bf16.gmra.mxu0 %v867
    %v5844 = vpop.f32.mrf.mxu0
    %v5845 = vadd.f32 %v5832, %v5844
    %v5846 = vpop.f32.mrf.mxu0
    %5847 = vdwg.mxu0
    %5848 = vmatpush.bf16.msra.mxu0 %v3691
    %5849 = vmatpush.bf16.msra.mxu0 %v3675
    %5850 = vmatpush.bf16.msra.mxu0 %v3659
    %5851 = vmatpush.bf16.msra.mxu0 %v3643
    %5852 = vmatpush.bf16.msra.mxu0 %v3627
    %5853 = vmatpush.bf16.msra.mxu0 %v3611
    %5854 = vmatpush.bf16.msra.mxu0 %v3595
    %5855 = vmatpush.bf16.msra.mxu0 %v3579
    %5856 = vmatmul.bf16.gmra.mxu0 %v868
    %v5857 = vpop.f32.mrf.mxu0
    %v5858 = vadd.f32 %v5845, %v5857
    %v5859 = vpop.f32.mrf.mxu0
    %5860 = vdwg.mxu0
    %5861 = vmatpush.bf16.msra.mxu0 %v3819
    %5862 = vmatpush.bf16.msra.mxu0 %v3803
    %5863 = vmatpush.bf16.msra.mxu0 %v3787
    %5864 = vmatpush.bf16.msra.mxu0 %v3771
    %5865 = vmatpush.bf16.msra.mxu0 %v3755
    %5866 = vmatpush.bf16.msra.mxu0 %v3739
    %5867 = vmatpush.bf16.msra.mxu0 %v3723
    %5868 = vmatpush.bf16.msra.mxu0 %v3707
    %5869 = vmatmul.bf16.gmra.mxu0 %v869
    %v5870 = vpop.f32.mrf.mxu0
    %v5871 = vadd.f32 %v5858, %v5870
    %v5872 = vpop.f32.mrf.mxu0
    %5873 = vdwg.mxu0
    %5874 = vmatpush.bf16.msra.mxu0 %v3947
    %5875 = vmatpush.bf16.msra.mxu0 %v3931
    %5876 = vmatpush.bf16.msra.mxu0 %v3915
    %5877 = vmatpush.bf16.msra.mxu0 %v3899
    %5878 = vmatpush.bf16.msra.mxu0 %v3883
    %5879 = vmatpush.bf16.msra.mxu0 %v3867
    %5880 = vmatpush.bf16.msra.mxu0 %v3851
    %5881 = vmatpush.bf16.msra.mxu0 %v3835
    %5882 = vmatmul.bf16.gmra.mxu0 %v870
    %v5883 = vpop.f32.mrf.mxu0
    %v5884 = vadd.f32 %v5871, %v5883
    %v5885 = vpop.f32.mrf.mxu0
    %5886 = vdwg.mxu0
    %5887 = vmatpush.bf16.msra.mxu0 %v3308
    %5888 = vmatpush.bf16.msra.mxu0 %v3292
    %5889 = vmatpush.bf16.msra.mxu0 %v3276
    %5890 = vmatpush.bf16.msra.mxu0 %v3260
    %5891 = vmatpush.bf16.msra.mxu0 %v3244
    %5892 = vmatpush.bf16.msra.mxu0 %v3228
    %5893 = vmatpush.bf16.msra.mxu0 %v3212
    %5894 = vmatpush.bf16.msra.mxu0 %v3196
    %5895 = vmatmul.bf16.gmra.mxu0 %v865
    %v5896 = vpop.f32.mrf.mxu0
    %v5897 = vadd.f32 %v846, %v5896
    %v5898 = vpop.f32.mrf.mxu0
    %5899 = vdwg.mxu0
    %5900 = vmatpush.bf16.msra.mxu0 %v3436
    %5901 = vmatpush.bf16.msra.mxu0 %v3420
    %5902 = vmatpush.bf16.msra.mxu0 %v3404
    %5903 = vmatpush.bf16.msra.mxu0 %v3388
    %5904 = vmatpush.bf16.msra.mxu0 %v3372
    %5905 = vmatpush.bf16.msra.mxu0 %v3356
    %5906 = vmatpush.bf16.msra.mxu0 %v3340
    %5907 = vmatpush.bf16.msra.mxu0 %v3324
    %5908 = vmatmul.bf16.gmra.mxu0 %v866
    %v5909 = vpop.f32.mrf.mxu0
    %v5910 = vadd.f32 %v5897, %v5909
    %v5911 = vpop.f32.mrf.mxu0
    %5912 = vdwg.mxu0
    %5913 = vmatpush.bf16.msra.mxu0 %v3564
    %5914 = vmatpush.bf16.msra.mxu0 %v3548
    %5915 = vmatpush.bf16.msra.mxu0 %v3532
    %5916 = vmatpush.bf16.msra.mxu0 %v3516
    %5917 = vmatpush.bf16.msra.mxu0 %v3500
    %5918 = vmatpush.bf16.msra.mxu0 %v3484
    %5919 = vmatpush.bf16.msra.mxu0 %v3468
    %5920 = vmatpush.bf16.msra.mxu0 %v3452
    %5921 = vmatmul.bf16.gmra.mxu0 %v867
    %v5922 = vpop.f32.mrf.mxu0
    %v5923 = vadd.f32 %v5910, %v5922
    %v5924 = vpop.f32.mrf.mxu0
    %5925 = vdwg.mxu0
    %5926 = vmatpush.bf16.msra.mxu0 %v3692
    %5927 = vmatpush.bf16.msra.mxu0 %v3676
    %5928 = vmatpush.bf16.msra.mxu0 %v3660
    %5929 = vmatpush.bf16.msra.mxu0 %v3644
    %5930 = vmatpush.bf16.msra.mxu0 %v3628
    %5931 = vmatpush.bf16.msra.mxu0 %v3612
    %5932 = vmatpush.bf16.msra.mxu0 %v3596
    %5933 = vmatpush.bf16.msra.mxu0 %v3580
    %5934 = vmatmul.bf16.gmra.mxu0 %v868
    %v5935 = vpop.f32.mrf.mxu0
    %v5936 = vadd.f32 %v5923, %v5935
    %v5937 = vpop.f32.mrf.mxu0
    %5938 = vdwg.mxu0
    %5939 = vmatpush.bf16.msra.mxu0 %v3820
    %5940 = vmatpush.bf16.msra.mxu0 %v3804
    %5941 = vmatpush.bf16.msra.mxu0 %v3788
    %5942 = vmatpush.bf16.msra.mxu0 %v3772
    %5943 = vmatpush.bf16.msra.mxu0 %v3756
    %5944 = vmatpush.bf16.msra.mxu0 %v3740
    %5945 = vmatpush.bf16.msra.mxu0 %v3724
    %5946 = vmatpush.bf16.msra.mxu0 %v3708
    %5947 = vmatmul.bf16.gmra.mxu0 %v869
    %v5948 = vpop.f32.mrf.mxu0
    %v5949 = vadd.f32 %v5936, %v5948
    %v5950 = vpop.f32.mrf.mxu0
    %5951 = vdwg.mxu0
    %5952 = vmatpush.bf16.msra.mxu0 %v3948
    %5953 = vmatpush.bf16.msra.mxu0 %v3932
    %5954 = vmatpush.bf16.msra.mxu0 %v3916
    %5955 = vmatpush.bf16.msra.mxu0 %v3900
    %5956 = vmatpush.bf16.msra.mxu0 %v3884
    %5957 = vmatpush.bf16.msra.mxu0 %v3868
    %5958 = vmatpush.bf16.msra.mxu0 %v3852
    %5959 = vmatpush.bf16.msra.mxu0 %v3836
    %5960 = vmatmul.bf16.gmra.mxu0 %v870
    %v5961 = vpop.f32.mrf.mxu0
    %v5962 = vadd.f32 %v5949, %v5961
    %v5963 = vpop.f32.mrf.mxu0
    %5964 = vdwg.mxu0
    %v5965 = vmax.f32 %v4792, 0.0
    %v5966 = vmax.f32 %v4870, 0.0
    %v5967 = vmax.f32 %v4948, 0.0
    %v5968 = vmax.f32 %v5026, 0.0
    %v5969 = vmax.f32 %v5104, 0.0
    %v5970 = vmax.f32 %v5182, 0.0
    %v5971 = vmax.f32 %v5260, 0.0
    %v5972 = vmax.f32 %v5338, 0.0
    %v5973 = vmax.f32 %v5416, 0.0
    %v5974 = vmax.f32 %v5494, 0.0
    %v5975 = vmax.f32 %v5572, 0.0
    %v5976 = vmax.f32 %v5650, 0.0
    %v5977 = vmax.f32 %v5728, 0.0
    %v5978 = vmax.f32 %v5806, 0.0
    %v5979 = vmax.f32 %v5884, 0.0
    %v5980 = vmax.f32 %v5962, 0.0
    %v5997 = vrot.slane %v5966, 6
    %v5998 = vrot.slane %v5967, 4
    %v5999 = vrot.slane %v5968, 2
    %v6000 = vrot.slane %v5970, 6
    %v6001 = vrot.slane %v5971, 4
    %v6002 = vrot.slane %v5972, 2
    %v6003 = vrot.slane %v5974, 6
    %v6004 = vrot.slane %v5975, 4
    %v6005 = vrot.slane %v5976, 2
    %v6006 = vrot.slane %v5978, 6
    %v6007 = vrot.slane %v5979, 4
    %v6008 = vrot.slane %v5980, 2
    %vm6009 = vcmask 1041408
    %v6010 = vsel %vm6009, %v5965, %v5997
    %vm6011 = vcmask 1045508
    %v6012 = vsel %vm6011, %v5998, %v5999
    %vm6013 = vcmask 1043456
    %v6014 = vsel %vm6013, %v6010, %v6012
    %v6015 = vsel %vm6009, %v5969, %v6000
    %v6016 = vsel %vm6011, %v6001, %v6002
    %v6017 = vsel %vm6013, %v6015, %v6016
    %v6018 = vsel %vm6009, %v5973, %v6003
    %v6019 = vsel %vm6011, %v6004, %v6005
    %v6020 = vsel %vm6013, %v6018, %v6019
    %v6021 = vsel %vm6009, %v5977, %v6006
    %v6022 = vsel %vm6011, %v6007, %v6008
    %v6023 = vsel %vm6013, %v6021, %v6022
    %6028 = vst [vmem:[#allocation8] sm:$0xff] %v6014
    %6029 = vst [vmem:[#allocation8 + $0x8] sm:$0xff] %v6017
    %6030 = vst [vmem:[#allocation8 + $0x10] sm:$0xff] %v6020
    %6031 = vst [vmem:[#allocation8 + $0x18] sm:$0xff] %v6023
    // Predicated region
    $region26: #{tpu_custom_call.1} parent=1 // pred_check
      _
    $region27: #{tpu_custom_call.1} parent=1 // pred_check_branch
      %6033 = sbr.rel (0) target = $region29
    $region28: #{tpu_custom_call.1} parent=1 // pred_region
      %6035 = vsyncadd [#allocation4], 0
      %s6037 = sshll.u32 [#allocation8], 4
      %s6038 = int_to_ptr.vmem [resolvable:$true] %s6037
      %s6039 = sshll.u32 %s3, 4
      %s6040 = int_to_ptr.hbm [resolvable:$true] %s6039
      %6042 = dma.vmem_to_hbm [thread:$0]  %s6038, 512, %s6040, [#allocation4]
    $region29: #{tpu_custom_call.1} parent=1 // pred_fallthru
      _
    // Predicated region
    $region30: #{tpu_custom_call.1} parent=1 // pred_check
      _
    $region31: #{tpu_custom_call.1} parent=1 // pred_check_branch
      %6044 = sbr.rel (0) target = $region33
    $region32: #{tpu_custom_call.1} parent=1 // pred_region
      %6046 = dma.done [#allocation4], 512
    $region33: #{tpu_custom_call.1} parent=1 // pred_fallthru
      _
    %6047 = vsyncpa [#allocation3], 1
    %6048 = vsyncpa [#allocation6], 1
    %6049 = vsyncpa [#allocation4], 1

</llo_original>
